<compile_context>
chip_gen: v6e
topology: v6e:2x2x1
jax: 0.10.0
libtpu: 0.0.40
codegen_flags: <defaults>
</compile_context>

<pallas_src>
import functools
import math

import numpy as np
import jax
import jax.numpy as jnp
from jax import lax
from jax.experimental import pallas as pl
from jax.experimental.pallas import tpu as pltpu


# ----------------------------- in-kernel helpers -----------------------------

def _gelu(x):
    # tanh-approximate GELU (see TODO above); math kept in f32.
    return 0.5 * x * (1.0 + jnp.tanh(0.7978845608028654 * (x + 0.044715 * x * x * x)))


def _layer_norm(x, w, b, eps=1e-5):
    mu = jnp.mean(x, axis=-1, keepdims=True)
    var = jnp.mean(jnp.square(x - mu), axis=-1, keepdims=True)
    return (x - mu) * lax.rsqrt(var + eps) * w + b


def _bf(x):
    return x.astype(jnp.bfloat16)


# Row indices into the packed (14, td) bias / LayerNorm-parameter operand.
(B_MLP1, B_MLP2, B_CF1, B_CF2, B_N1W, B_N1B, B_KB, B_QB, B_VB, B_PB,
 B_N2W, B_N2B, B_M1B, B_M2B) = range(14)


# ------------------------------ fused Pallas kernel ---------------------------

def _decoder_kernel(dec_ref, enc_ref,
                    ndw_ref, w1_ref, w2_ref,
                    wpk_ref, fa_ref, fb_ref,
                    cfa_ref, cfbw_ref, cfw2_ref,
                    kqv_ref, wprm_ref, pw_ref,
                    m1w_ref, m2w_ref, brow_ref,
                    o_ref,
                    pkstack_ref,
                    *, kk, m, L, Lp, td):
    f32 = jnp.float32

    def rb(i):                                    # packed bias/norm row, (1, td)
        return brow_ref[i:i + 1, :]

    # ---- dec = mlp(norm(dec)) : (L, dim) -> (L, td) --------------------------
    x = dec_ref[0]
    xn = _layer_norm(x, ndw_ref[0:1, :], ndw_ref[1:2, :])
    h = _gelu(jnp.dot(_bf(xn), w1_ref[...], preferred_element_type=f32) + rb(B_MLP1))
    h = jnp.dot(_bf(h), w2_ref[...], preferred_element_type=f32) + rb(B_MLP2)
    hb = _bf(h)                                                    # (L, td)

    # ---- project + nn.Fold ----------------------------------------------------
    # Nine small projection matmuls are stacked into one (kk*Lp, td) scratch,
    # then folded with a single long-K matmul against the pre-permuted 0/1
    # scatter matrix (projection bias pre-folded into fb_ref offline).
    for k in range(kk):                                            # static unroll
        pk = jnp.dot(hb, wpk_ref[k], preferred_element_type=f32)   # (L, td)
        pkstack_ref[k * Lp:k * Lp + L, :] = _bf(pk)
        if Lp > L:   # zero pad rows (their A columns are 0; keeps them NaN-safe)
            pkstack_ref[k * Lp + L:(k + 1) * Lp, :] = jnp.zeros((Lp - L, td),
                                                                jnp.bfloat16)
    fold = fb_ref[...] + jnp.dot(fa_ref[...], pkstack_ref[...],
                                 preferred_element_type=f32)       # (P, td)

    # ---- concatFuse (concat fused into the first Linear) ----------------------
    enc = enc_ref[0]                                               # (P, td)
    g = (jnp.dot(_bf(fold), cfa_ref[...], preferred_element_type=f32)
         + jnp.dot(_bf(enc), cfbw_ref[...], preferred_element_type=f32)
         + rb(B_CF1))
    fused = (jnp.dot(_bf(_gelu(g)), cfw2_ref[...], preferred_element_type=f32)
             + rb(B_CF2))                                          # (P, td)

    # ---- Token_performer: x + single_attn(norm1(x)); then + mlp(norm2(.)) ----
    xn1 = _layer_norm(fused, rb(B_N1W), rb(B_N1B))
    kqv = jnp.dot(_bf(xn1), kqv_ref[...], preferred_element_type=f32)  # (P, 3td)
    kx = kqv[:, :td] + rb(B_KB)
    qx = kqv[:, td:2 * td] + rb(B_QB)
    vx = kqv[:, 2 * td:] + rb(B_VB)

    inv_sqrt_m = 1.0 / math.sqrt(m)

    def prm_exp(z):                                # z: (P, td) f32
        zb = _bf(z)                                # zd and wtz from the SAME values
        zf = zb.astype(f32)
        zd = 0.5 * jnp.sum(zf * zf, axis=-1, keepdims=True)        # (P, 1)
        wtz = jnp.dot(zb, wprm_ref[...], preferred_element_type=f32)  # (P, m)
        return jnp.exp(wtz - zd) * inv_sqrt_m

    kp = prm_exp(kx)                                               # (P, m)
    qp = prm_exp(qx)                                               # (P, m)
    ksum = jnp.sum(kp, axis=0, keepdims=True)                      # (1, m)
    D = jnp.sum(qp * ksum, axis=-1, keepdims=True) + 1e-8          # (P, 1)
    kptv = lax.dot_general(_bf(vx), _bf(kp), (((0,), (0,)), ((), ())),
                           preferred_element_type=f32)             # (td, m)
    y = lax.dot_general(_bf(qp), _bf(kptv), (((1,), (1,)), ((), ())),
                        preferred_element_type=f32)                # (P, td)
    y = y / D                                                      # exact divide
    attn = (fused + vx
            + jnp.dot(_bf(y), pw_ref[...], preferred_element_type=f32)
            + rb(B_PB))                                            # (P, td)

    xn2 = _layer_norm(attn, rb(B_N2W), rb(B_N2B))
    hh = _gelu(jnp.dot(_bf(xn2), m1w_ref[...], preferred_element_type=f32) + rb(B_M1B))
    hh = jnp.dot(_bf(hh), m2w_ref[...], preferred_element_type=f32) + rb(B_M2B)
    o_ref[0] = attn + hh


# ------------------------------ wrapper / prep ---------------------------------

def build_fold_matrix(out_h, out_w, kh, kw, stride, pad):
    """0/1 scatter matrix A (P, kh*kw*L) so that Fold(x) tokens = A @ rearranged(x)."""
    lh = (out_h + 2 * pad - kh) // stride + 1
    lw = (out_w + 2 * pad - kw) // stride + 1
    A = np.zeros((out_h * out_w, kh * kw * lh * lw), np.float32)
    for ki in range(kh):
        for kj in range(kw):
            for bi in range(lh):
                for bj in range(lw):
                    i = bi * stride - pad + ki
                    j = bj * stride - pad + kj
                    if 0 <= i < out_h and 0 <= j < out_w:
                        col = (ki * kw + kj) * (lh * lw) + bi * lw + bj
                        A[i * out_w + j, col] = 1.0
    return jnp.asarray(A), lh * lw


def init_params(key, dim, td, kh, kw, m):
    """Standard (PyTorch-equivalent) parameter layout: y = x @ W + b."""
    ks = jax.random.split(key, 10)
    lin = lambda k, i, o: jax.random.normal(k, (i, o), jnp.float32) * 0.02
    p = {
        "norm_w": jnp.ones((dim,), jnp.float32), "norm_b": jnp.zeros((dim,), jnp.float32),
        "mlp_w1": lin(ks[0], dim, td), "mlp_b1": jnp.zeros((td,), jnp.float32),
        "mlp_w2": lin(ks[1], td, td), "mlp_b2": jnp.zeros((td,), jnp.float32),
        # project output feature index = c * (kh*kw) + k  (matches nn.Fold channel order)
        "proj_w": lin(ks[2], td, td * kh * kw),
        "proj_b": jnp.zeros((td * kh * kw,), jnp.float32),
        "cf_w1": lin(ks[3], 2 * td, td), "cf_b1": jnp.zeros((td,), jnp.float32),
        "cf_w2": lin(ks[4], td, td), "cf_b2": jnp.zeros((td,), jnp.float32),
        # Token_performer
        "n1_w": jnp.ones((td,), jnp.float32), "n1_b": jnp.zeros((td,), jnp.float32),
        "kqv_w": lin(ks[5], td, 3 * td), "kqv_b": jnp.zeros((3 * td,), jnp.float32),
        "att_proj_w": lin(ks[6], td, td), "att_proj_b": jnp.zeros((td,), jnp.float32),
        "n2_w": jnp.ones((td,), jnp.float32), "n2_b": jnp.zeros((td,), jnp.float32),
        "att_m1_w": lin(ks[7], td, td), "att_m1_b": jnp.zeros((td,), jnp.float32),
        "att_m2_w": lin(ks[8], td, td), "att_m2_b": jnp.zeros((td,), jnp.float32),
    }
    # orthogonal random-feature matrix (stored transposed, (td, m)), scaled by sqrt(m)
    g = jax.random.normal(ks[9], (td, m), jnp.float32)
    qmat, _ = jnp.linalg.qr(g)
    p["w_prm"] = qmat * math.sqrt(m)
    return p


def prepare_kernel_params(params, fold_mat, dim, td, kk, L, Lp):
    """One-time offline re-layout: stacked fold matrix, per-k projection weights,
    pre-folded fold bias, packed bias rows, bf16 weight casts."""
    bf16 = jnp.bfloat16
    P = fold_mat.shape[0]
    A = fold_mat.reshape(P, kk, L)                              # (P, kk, L), 0/1
    A_pad = jnp.pad(A, ((0, 0), (0, 0), (0, Lp - L)))           # pad L -> Lp
    fa = A_pad.reshape(P, kk * Lp).astype(bf16)                 # col = k*Lp + l
    fold_bias = (A.sum(-1) @ params["proj_b"].reshape(td, kk).T).astype(jnp.float32)
    wpk = jnp.transpose(params["proj_w"].reshape(td, td, kk), (2, 0, 1)).astype(bf16)
    norm_dim = jnp.stack([params["norm_w"], params["norm_b"]]).astype(jnp.float32)
    brow = jnp.stack([
        params["mlp_b1"], params["mlp_b2"],
        params["cf_b1"], params["cf_b2"],
        params["n1_w"], params["n1_b"],
        params["kqv_b"][:td], params["kqv_b"][td:2 * td], params["kqv_b"][2 * td:],
        params["att_proj_b"],
        params["n2_w"], params["n2_b"],
        params["att_m1_b"], params["att_m2_b"],
    ]).astype(jnp.float32)                                      # (14, td)
    return (
        norm_dim,
        params["mlp_w1"].astype(bf16), params["mlp_w2"].astype(bf16),
        wpk, fa, fold_bias,
        params["cf_w1"][:td].astype(bf16),       # applied to folded tokens
        params["cf_w1"][td:].astype(bf16),       # applied to enc_fea
        params["cf_w2"].astype(bf16),
        params["kqv_w"].astype(bf16),            # (td, 3td), one stacked matmul
        params["w_prm"].astype(bf16),
        params["att_proj_w"].astype(bf16),
        params["att_m1_w"].astype(bf16), params["att_m2_w"].astype(bf16),
        brow,
    )


def decoder_forward(weights, dec_fea, enc_fea, *, P, td, kk, L, Lp, m):
    B = dec_fea.shape[0]

    def batch_spec(shape):
        nd = len(shape)
        return pl.BlockSpec((1,) + tuple(shape[1:]),
                            lambda b, _n=nd: (b,) + (0,) * (_n - 1))

    def const_spec(a):
        nd = a.ndim
        return pl.BlockSpec(a.shape, lambda b, _n=nd: (0,) * _n)

    in_specs = [batch_spec(dec_fea.shape), batch_spec(enc_fea.shape)]
    in_specs += [const_spec(w) for w in weights]

    kernel = functools.partial(_decoder_kernel, kk=kk, m=m, L=L, Lp=Lp, td=td)
    return pl.pallas_call(
        kernel,
        out_shape=jax.ShapeDtypeStruct((B, P, td), jnp.float32),
        grid=(B,),
        in_specs=in_specs,
        out_specs=pl.BlockSpec((1, P, td), lambda b: (b, 0, 0)),
        scratch_shapes=[pltpu.VMEM((kk * Lp, td), jnp.bfloat16)],
        compiler_params=pltpu.CompilerParams(dimension_semantics=("parallel",)),
    )(dec_fea, enc_fea, *weights)


# ----------------------------------- main --------------------------------------

if __name__ == "__main__":
    # Small shapes consistent with the module (defaults dim=512, token_dim=64,
    # img_size=224, ratio=8 -> shrunk proportionally).
    B = 2
    dim = 32          # decoder input hidden dim
    token_dim = 16
    img_size = 32
    ratio = 4
    kh = kw = 3
    stride, pad = 2, 1
    out_hw = img_size // ratio                     # 8  -> P = 64 output tokens
    m = int(token_dim * 0.5)                       # performer random features
    kk = kh * kw

    fold_mat, L = build_fold_matrix(out_hw, out_hw, kh, kw, stride, pad)   # L = 16
    P = out_hw * out_hw
    Lp = ((L + 7) // 8) * 8                        # sublane-aligned stack stride

    key = jax.random.PRNGKey(0)
    kparam, kdec, kenc = jax.random.split(key, 3)
    params = init_params(kparam, dim, token_dim, kh, kw, m)
    dec_fea = jax.random.normal(kdec, (B, L, dim), jnp.float32)
    enc_fea = jax.random.normal(kenc, (B, P, token_dim), jnp.float32)

    weights = prepare_kernel_params(params, fold_mat, dim, token_dim, kk, L, Lp)
    out = decoder_forward(weights, dec_fea, enc_fea,
                          P=P, td=token_dim, kk=kk, L=L, Lp=Lp, m=m)
    out = jax.block_until_ready(out)
    assert out.shape == (B, P, token_dim)
    assert bool(jnp.all(jnp.isfinite(out)))
    print("KERNEL_OK")
</pallas_src>

<mosaic_0001>
module attributes {stable_mosaic.version = 11 : i64} {
  func.func @_decoder_kernel(%arg0: i32, %arg1: memref<1x16x32xf32, #tpu.memory_space<vmem>>, %arg2: memref<1x64x16xf32, #tpu.memory_space<vmem>>, %arg3: memref<2x32xf32, #tpu.memory_space<vmem>>, %arg4: memref<32x16xbf16, #tpu.memory_space<vmem>>, %arg5: memref<16x16xbf16, #tpu.memory_space<vmem>>, %arg6: memref<9x16x16xbf16, #tpu.memory_space<vmem>>, %arg7: memref<64x144xbf16, #tpu.memory_space<vmem>>, %arg8: memref<64x16xf32, #tpu.memory_space<vmem>>, %arg9: memref<16x16xbf16, #tpu.memory_space<vmem>>, %arg10: memref<16x16xbf16, #tpu.memory_space<vmem>>, %arg11: memref<16x16xbf16, #tpu.memory_space<vmem>>, %arg12: memref<16x48xbf16, #tpu.memory_space<vmem>>, %arg13: memref<16x8xbf16, #tpu.memory_space<vmem>>, %arg14: memref<16x16xbf16, #tpu.memory_space<vmem>>, %arg15: memref<16x16xbf16, #tpu.memory_space<vmem>>, %arg16: memref<16x16xbf16, #tpu.memory_space<vmem>>, %arg17: memref<14x16xf32, #tpu.memory_space<vmem>>, %arg18: memref<1x64x16xf32, #tpu.memory_space<vmem>>, %arg19: memref<144x16xbf16, #tpu.memory_space<vmem>>) attributes {dimension_semantics = [#tpu.dimension_semantics<parallel>], iteration_bounds = array<i64: 2>, scalar_prefetch = 0 : i64, scratch_operands = 1 : i64, tpu.core_type = #tpu.core_type<tc>, window_params = [{transform_indices = @transform_0, window_bounds = array<i64: 1, 16, 32>}, {transform_indices = @transform_1, window_bounds = array<i64: 1, 64, 16>}, {pipeline_mode = #tpu.pipeline_mode<synchronous>, transform_indices = @transform_2, window_bounds = array<i64: 2, 32>}, {pipeline_mode = #tpu.pipeline_mode<synchronous>, transform_indices = @transform_3, window_bounds = array<i64: 32, 16>}, {pipeline_mode = #tpu.pipeline_mode<synchronous>, transform_indices = @transform_4, window_bounds = array<i64: 16, 16>}, {pipeline_mode = #tpu.pipeline_mode<synchronous>, transform_indices = @transform_5, window_bounds = array<i64: 9, 16, 16>}, {pipeline_mode = #tpu.pipeline_mode<synchronous>, transform_indices = @transform_6, window_bounds = array<i64: 64, 144>}, {pipeline_mode = #tpu.pipeline_mode<synchronous>, transform_indices = @transform_7, window_bounds = array<i64: 64, 16>}, {pipeline_mode = #tpu.pipeline_mode<synchronous>, transform_indices = @transform_8, window_bounds = array<i64: 16, 16>}, {pipeline_mode = #tpu.pipeline_mode<synchronous>, transform_indices = @transform_9, window_bounds = array<i64: 16, 16>}, {pipeline_mode = #tpu.pipeline_mode<synchronous>, transform_indices = @transform_10, window_bounds = array<i64: 16, 16>}, {pipeline_mode = #tpu.pipeline_mode<synchronous>, transform_indices = @transform_11, window_bounds = array<i64: 16, 48>}, {pipeline_mode = #tpu.pipeline_mode<synchronous>, transform_indices = @transform_12, window_bounds = array<i64: 16, 8>}, {pipeline_mode = #tpu.pipeline_mode<synchronous>, transform_indices = @transform_13, window_bounds = array<i64: 16, 16>}, {pipeline_mode = #tpu.pipeline_mode<synchronous>, transform_indices = @transform_14, window_bounds = array<i64: 16, 16>}, {pipeline_mode = #tpu.pipeline_mode<synchronous>, transform_indices = @transform_15, window_bounds = array<i64: 16, 16>}, {pipeline_mode = #tpu.pipeline_mode<synchronous>, transform_indices = @transform_16, window_bounds = array<i64: 14, 16>}, {transform_indices = @transform_17, window_bounds = array<i64: 1, 64, 16>}]} {
    %c0 = arith.constant 0 : index
    %c0_0 = arith.constant 0 : index
    %c0_1 = arith.constant 0 : index
    %0 = vector.load %arg1[%c0, %c0_0, %c0_1] : memref<1x16x32xf32, #tpu.memory_space<vmem>>, vector<1x16x32xf32>
    %1 = vector.shape_cast %0 : vector<1x16x32xf32> to vector<16x32xf32>
    %c0_2 = arith.constant 0 : index
    %c0_3 = arith.constant 0 : index
    %2 = vector.load %arg3[%c0_2, %c0_3] : memref<2x32xf32, #tpu.memory_space<vmem>>, vector<1x32xf32>
    %c1 = arith.constant 1 : index
    %c0_4 = arith.constant 0 : index
    %3 = vector.load %arg3[%c1, %c0_4] : memref<2x32xf32, #tpu.memory_space<vmem>>, vector<1x32xf32>
    %cst = arith.constant dense<0.000000e+00> : vector<16xf32>
    %4 = vector.multi_reduction <add>, %1, %cst [1] : vector<16x32xf32> to vector<16xf32>
    %5 = vector.shape_cast %4 : vector<16xf32> to vector<16x1xf32>
    %cst_5 = arith.constant 3.200000e+01 : f32
    %6 = vector.broadcast %cst_5 : f32 to vector<16x1xf32>
    %7 = arith.divf %5, %6 : vector<16x1xf32>
    %8 = vector.broadcast %7 : vector<16x1xf32> to vector<16x32xf32>
    %9 = arith.subf %1, %8 : vector<16x32xf32>
    %10 = arith.mulf %9, %9 : vector<16x32xf32>
    %cst_6 = arith.constant dense<0.000000e+00> : vector<16xf32>
    %11 = vector.multi_reduction <add>, %10, %cst_6 [1] : vector<16x32xf32> to vector<16xf32>
    %12 = vector.shape_cast %11 : vector<16xf32> to vector<16x1xf32>
    %cst_7 = arith.constant 3.200000e+01 : f32
    %13 = vector.broadcast %cst_7 : f32 to vector<16x1xf32>
    %14 = arith.divf %12, %13 : vector<16x1xf32>
    %15 = vector.broadcast %7 : vector<16x1xf32> to vector<16x32xf32>
    %16 = arith.subf %1, %15 : vector<16x32xf32>
    %cst_8 = arith.constant 9.99999974E-6 : f32
    %17 = vector.broadcast %cst_8 : f32 to vector<16x1xf32>
    %18 = arith.addf %14, %17 : vector<16x1xf32>
    %19 = math.rsqrt %18 : vector<16x1xf32>
    %20 = vector.broadcast %19 : vector<16x1xf32> to vector<16x32xf32>
    %21 = arith.mulf %16, %20 : vector<16x32xf32>
    %22 = vector.broadcast %2 : vector<1x32xf32> to vector<16x32xf32>
    %23 = arith.mulf %21, %22 : vector<16x32xf32>
    %24 = vector.broadcast %3 : vector<1x32xf32> to vector<16x32xf32>
    %25 = arith.addf %23, %24 : vector<16x32xf32>
    %26 = arith.truncf %25 : vector<16x32xf32> to vector<16x32xbf16>
    %c0_9 = arith.constant 0 : index
    %c0_10 = arith.constant 0 : index
    %27 = vector.load %arg4[%c0_9, %c0_10] : memref<32x16xbf16, #tpu.memory_space<vmem>>, vector<32x16xbf16>
    %cst_11 = arith.constant dense<0.000000e+00> : vector<16x16xf32>
    %28 = tpu.matmul %26, %27, %cst_11 {dimension_numbers = #tpu.dot_dimension_numbers<[1], [0], [0], [1], [0, 0, 1, 1], [], []>} : vector<16x32xbf16>, vector<32x16xbf16>, vector<16x16xf32> -> vector<16x16xf32>
    %c0_12 = arith.constant 0 : index
    %c0_13 = arith.constant 0 : index
    %29 = vector.load %arg17[%c0_12, %c0_13] : memref<14x16xf32, #tpu.memory_space<vmem>>, vector<1x16xf32>
    %30 = vector.broadcast %29 : vector<1x16xf32> to vector<16x16xf32>
    %31 = arith.addf %28, %30 : vector<16x16xf32>
    %cst_14 = arith.constant 5.000000e-01 : f32
    %32 = vector.broadcast %cst_14 : f32 to vector<16x16xf32>
    %33 = arith.mulf %32, %31 : vector<16x16xf32>
    %cst_15 = arith.constant 4.471500e-02 : f32
    %34 = vector.broadcast %cst_15 : f32 to vector<16x16xf32>
    %35 = arith.mulf %34, %31 : vector<16x16xf32>
    %36 = arith.mulf %35, %31 : vector<16x16xf32>
    %37 = arith.mulf %36, %31 : vector<16x16xf32>
    %38 = arith.addf %31, %37 : vector<16x16xf32>
    %cst_16 = arith.constant 0.797884583 : f32
    %39 = vector.broadcast %cst_16 : f32 to vector<16x16xf32>
    %40 = arith.mulf %39, %38 : vector<16x16xf32>
    %41 = math.tanh %40 : vector<16x16xf32>
    %cst_17 = arith.constant 1.000000e+00 : f32
    %42 = vector.broadcast %cst_17 : f32 to vector<16x16xf32>
    %43 = arith.addf %42, %41 : vector<16x16xf32>
    %44 = arith.mulf %33, %43 : vector<16x16xf32>
    %45 = arith.truncf %44 : vector<16x16xf32> to vector<16x16xbf16>
    %c0_18 = arith.constant 0 : index
    %c0_19 = arith.constant 0 : index
    %46 = vector.load %arg5[%c0_18, %c0_19] : memref<16x16xbf16, #tpu.memory_space<vmem>>, vector<16x16xbf16>
    %cst_20 = arith.constant dense<0.000000e+00> : vector<16x16xf32>
    %47 = tpu.matmul %45, %46, %cst_20 {dimension_numbers = #tpu.dot_dimension_numbers<[1], [0], [0], [1], [0, 0, 1, 1], [], []>} : vector<16x16xbf16>, vector<16x16xbf16>, vector<16x16xf32> -> vector<16x16xf32>
    %c1_21 = arith.constant 1 : index
    %c0_22 = arith.constant 0 : index
    %48 = vector.load %arg17[%c1_21, %c0_22] : memref<14x16xf32, #tpu.memory_space<vmem>>, vector<1x16xf32>
    %49 = vector.broadcast %48 : vector<1x16xf32> to vector<16x16xf32>
    %50 = arith.addf %47, %49 : vector<16x16xf32>
    %51 = arith.truncf %50 : vector<16x16xf32> to vector<16x16xbf16>
    %c0_23 = arith.constant 0 : index
    %c0_24 = arith.constant 0 : index
    %c0_25 = arith.constant 0 : index
    %52 = vector.load %arg6[%c0_23, %c0_24, %c0_25] : memref<9x16x16xbf16, #tpu.memory_space<vmem>>, vector<1x16x16xbf16>
    %53 = vector.shape_cast %52 : vector<1x16x16xbf16> to vector<16x16xbf16>
    %cst_26 = arith.constant dense<0.000000e+00> : vector<16x16xf32>
    %54 = tpu.matmul %51, %53, %cst_26 {dimension_numbers = #tpu.dot_dimension_numbers<[1], [0], [0], [1], [0, 0, 1, 1], [], []>} : vector<16x16xbf16>, vector<16x16xbf16>, vector<16x16xf32> -> vector<16x16xf32>
    %55 = arith.truncf %54 : vector<16x16xf32> to vector<16x16xbf16>
    %c0_27 = arith.constant 0 : index
    %c0_28 = arith.constant 0 : index
    %56 = vector.load %arg19[%c0_27, %c0_28] : memref<144x16xbf16, #tpu.memory_space<vmem>>, vector<16x16xbf16>
    tpu.vector_store %arg19[%c0_27, %c0_28], %55 {strides = array<i32>} : memref<144x16xbf16, #tpu.memory_space<vmem>>, vector<16x16xbf16>,
    %c1_29 = arith.constant 1 : index
    %c0_30 = arith.constant 0 : index
    %c0_31 = arith.constant 0 : index
    %57 = vector.load %arg6[%c1_29, %c0_30, %c0_31] : memref<9x16x16xbf16, #tpu.memory_space<vmem>>, vector<1x16x16xbf16>
    %58 = vector.shape_cast %57 : vector<1x16x16xbf16> to vector<16x16xbf16>
    %cst_32 = arith.constant dense<0.000000e+00> : vector<16x16xf32>
    %59 = tpu.matmul %51, %58, %cst_32 {dimension_numbers = #tpu.dot_dimension_numbers<[1], [0], [0], [1], [0, 0, 1, 1], [], []>} : vector<16x16xbf16>, vector<16x16xbf16>, vector<16x16xf32> -> vector<16x16xf32>
    %60 = arith.truncf %59 : vector<16x16xf32> to vector<16x16xbf16>
    %c16 = arith.constant 16 : index
    %c0_33 = arith.constant 0 : index
    %61 = vector.load %arg19[%c16, %c0_33] : memref<144x16xbf16, #tpu.memory_space<vmem>>, vector<16x16xbf16>
    tpu.vector_store %arg19[%c16, %c0_33], %60 {strides = array<i32>} : memref<144x16xbf16, #tpu.memory_space<vmem>>, vector<16x16xbf16>,
    %c2 = arith.constant 2 : index
    %c0_34 = arith.constant 0 : index
    %c0_35 = arith.constant 0 : index
    %62 = vector.load %arg6[%c2, %c0_34, %c0_35] : memref<9x16x16xbf16, #tpu.memory_space<vmem>>, vector<1x16x16xbf16>
    %63 = vector.shape_cast %62 : vector<1x16x16xbf16> to vector<16x16xbf16>
    %cst_36 = arith.constant dense<0.000000e+00> : vector<16x16xf32>
    %64 = tpu.matmul %51, %63, %cst_36 {dimension_numbers = #tpu.dot_dimension_numbers<[1], [0], [0], [1], [0, 0, 1, 1], [], []>} : vector<16x16xbf16>, vector<16x16xbf16>, vector<16x16xf32> -> vector<16x16xf32>
    %65 = arith.truncf %64 : vector<16x16xf32> to vector<16x16xbf16>
    %c32 = arith.constant 32 : index
    %c0_37 = arith.constant 0 : index
    %66 = vector.load %arg19[%c32, %c0_37] : memref<144x16xbf16, #tpu.memory_space<vmem>>, vector<16x16xbf16>
    tpu.vector_store %arg19[%c32, %c0_37], %65 {strides = array<i32>} : memref<144x16xbf16, #tpu.memory_space<vmem>>, vector<16x16xbf16>,
    %c3 = arith.constant 3 : index
    %c0_38 = arith.constant 0 : index
    %c0_39 = arith.constant 0 : index
    %67 = vector.load %arg6[%c3, %c0_38, %c0_39] : memref<9x16x16xbf16, #tpu.memory_space<vmem>>, vector<1x16x16xbf16>
    %68 = vector.shape_cast %67 : vector<1x16x16xbf16> to vector<16x16xbf16>
    %cst_40 = arith.constant dense<0.000000e+00> : vector<16x16xf32>
    %69 = tpu.matmul %51, %68, %cst_40 {dimension_numbers = #tpu.dot_dimension_numbers<[1], [0], [0], [1], [0, 0, 1, 1], [], []>} : vector<16x16xbf16>, vector<16x16xbf16>, vector<16x16xf32> -> vector<16x16xf32>
    %70 = arith.truncf %69 : vector<16x16xf32> to vector<16x16xbf16>
    %c48 = arith.constant 48 : index
    %c0_41 = arith.constant 0 : index
    %71 = vector.load %arg19[%c48, %c0_41] : memref<144x16xbf16, #tpu.memory_space<vmem>>, vector<16x16xbf16>
    tpu.vector_store %arg19[%c48, %c0_41], %70 {strides = array<i32>} : memref<144x16xbf16, #tpu.memory_space<vmem>>, vector<16x16xbf16>,
    %c4 = arith.constant 4 : index
    %c0_42 = arith.constant 0 : index
    %c0_43 = arith.constant 0 : index
    %72 = vector.load %arg6[%c4, %c0_42, %c0_43] : memref<9x16x16xbf16, #tpu.memory_space<vmem>>, vector<1x16x16xbf16>
    %73 = vector.shape_cast %72 : vector<1x16x16xbf16> to vector<16x16xbf16>
    %cst_44 = arith.constant dense<0.000000e+00> : vector<16x16xf32>
    %74 = tpu.matmul %51, %73, %cst_44 {dimension_numbers = #tpu.dot_dimension_numbers<[1], [0], [0], [1], [0, 0, 1, 1], [], []>} : vector<16x16xbf16>, vector<16x16xbf16>, vector<16x16xf32> -> vector<16x16xf32>
    %75 = arith.truncf %74 : vector<16x16xf32> to vector<16x16xbf16>
    %c64 = arith.constant 64 : index
    %c0_45 = arith.constant 0 : index
    %76 = vector.load %arg19[%c64, %c0_45] : memref<144x16xbf16, #tpu.memory_space<vmem>>, vector<16x16xbf16>
    tpu.vector_store %arg19[%c64, %c0_45], %75 {strides = array<i32>} : memref<144x16xbf16, #tpu.memory_space<vmem>>, vector<16x16xbf16>,
    %c5 = arith.constant 5 : index
    %c0_46 = arith.constant 0 : index
    %c0_47 = arith.constant 0 : index
    %77 = vector.load %arg6[%c5, %c0_46, %c0_47] : memref<9x16x16xbf16, #tpu.memory_space<vmem>>, vector<1x16x16xbf16>
    %78 = vector.shape_cast %77 : vector<1x16x16xbf16> to vector<16x16xbf16>
    %cst_48 = arith.constant dense<0.000000e+00> : vector<16x16xf32>
    %79 = tpu.matmul %51, %78, %cst_48 {dimension_numbers = #tpu.dot_dimension_numbers<[1], [0], [0], [1], [0, 0, 1, 1], [], []>} : vector<16x16xbf16>, vector<16x16xbf16>, vector<16x16xf32> -> vector<16x16xf32>
    %80 = arith.truncf %79 : vector<16x16xf32> to vector<16x16xbf16>
    %c80 = arith.constant 80 : index
    %c0_49 = arith.constant 0 : index
    %81 = vector.load %arg19[%c80, %c0_49] : memref<144x16xbf16, #tpu.memory_space<vmem>>, vector<16x16xbf16>
    tpu.vector_store %arg19[%c80, %c0_49], %80 {strides = array<i32>} : memref<144x16xbf16, #tpu.memory_space<vmem>>, vector<16x16xbf16>,
    %c6 = arith.constant 6 : index
    %c0_50 = arith.constant 0 : index
    %c0_51 = arith.constant 0 : index
    %82 = vector.load %arg6[%c6, %c0_50, %c0_51] : memref<9x16x16xbf16, #tpu.memory_space<vmem>>, vector<1x16x16xbf16>
    %83 = vector.shape_cast %82 : vector<1x16x16xbf16> to vector<16x16xbf16>
    %cst_52 = arith.constant dense<0.000000e+00> : vector<16x16xf32>
    %84 = tpu.matmul %51, %83, %cst_52 {dimension_numbers = #tpu.dot_dimension_numbers<[1], [0], [0], [1], [0, 0, 1, 1], [], []>} : vector<16x16xbf16>, vector<16x16xbf16>, vector<16x16xf32> -> vector<16x16xf32>
    %85 = arith.truncf %84 : vector<16x16xf32> to vector<16x16xbf16>
    %c96 = arith.constant 96 : index
    %c0_53 = arith.constant 0 : index
    %86 = vector.load %arg19[%c96, %c0_53] : memref<144x16xbf16, #tpu.memory_space<vmem>>, vector<16x16xbf16>
    tpu.vector_store %arg19[%c96, %c0_53], %85 {strides = array<i32>} : memref<144x16xbf16, #tpu.memory_space<vmem>>, vector<16x16xbf16>,
    %c7 = arith.constant 7 : index
    %c0_54 = arith.constant 0 : index
    %c0_55 = arith.constant 0 : index
    %87 = vector.load %arg6[%c7, %c0_54, %c0_55] : memref<9x16x16xbf16, #tpu.memory_space<vmem>>, vector<1x16x16xbf16>
    %88 = vector.shape_cast %87 : vector<1x16x16xbf16> to vector<16x16xbf16>
    %cst_56 = arith.constant dense<0.000000e+00> : vector<16x16xf32>
    %89 = tpu.matmul %51, %88, %cst_56 {dimension_numbers = #tpu.dot_dimension_numbers<[1], [0], [0], [1], [0, 0, 1, 1], [], []>} : vector<16x16xbf16>, vector<16x16xbf16>, vector<16x16xf32> -> vector<16x16xf32>
    %90 = arith.truncf %89 : vector<16x16xf32> to vector<16x16xbf16>
    %c112 = arith.constant 112 : index
    %c0_57 = arith.constant 0 : index
    %91 = vector.load %arg19[%c112, %c0_57] : memref<144x16xbf16, #tpu.memory_space<vmem>>, vector<16x16xbf16>
    tpu.vector_store %arg19[%c112, %c0_57], %90 {strides = array<i32>} : memref<144x16xbf16, #tpu.memory_space<vmem>>, vector<16x16xbf16>,
    %c8 = arith.constant 8 : index
    %c0_58 = arith.constant 0 : index
    %c0_59 = arith.constant 0 : index
    %92 = vector.load %arg6[%c8, %c0_58, %c0_59] : memref<9x16x16xbf16, #tpu.memory_space<vmem>>, vector<1x16x16xbf16>
    %93 = vector.shape_cast %92 : vector<1x16x16xbf16> to vector<16x16xbf16>
    %cst_60 = arith.constant dense<0.000000e+00> : vector<16x16xf32>
    %94 = tpu.matmul %51, %93, %cst_60 {dimension_numbers = #tpu.dot_dimension_numbers<[1], [0], [0], [1], [0, 0, 1, 1], [], []>} : vector<16x16xbf16>, vector<16x16xbf16>, vector<16x16xf32> -> vector<16x16xf32>
    %95 = arith.truncf %94 : vector<16x16xf32> to vector<16x16xbf16>
    %c128 = arith.constant 128 : index
    %c0_61 = arith.constant 0 : index
    %96 = vector.load %arg19[%c128, %c0_61] : memref<144x16xbf16, #tpu.memory_space<vmem>>, vector<16x16xbf16>
    tpu.vector_store %arg19[%c128, %c0_61], %95 {strides = array<i32>} : memref<144x16xbf16, #tpu.memory_space<vmem>>, vector<16x16xbf16>,
    %c0_62 = arith.constant 0 : index
    %c0_63 = arith.constant 0 : index
    %97 = vector.load %arg8[%c0_62, %c0_63] : memref<64x16xf32, #tpu.memory_space<vmem>>, vector<64x16xf32>
    %c0_64 = arith.constant 0 : index
    %c0_65 = arith.constant 0 : index
    %98 = vector.load %arg7[%c0_64, %c0_65] : memref<64x144xbf16, #tpu.memory_space<vmem>>, vector<64x144xbf16>
    %c0_66 = arith.constant 0 : index
    %c0_67 = arith.constant 0 : index
    %99 = vector.load %arg19[%c0_66, %c0_67] : memref<144x16xbf16, #tpu.memory_space<vmem>>, vector<144x16xbf16>
    %cst_68 = arith.constant dense<0.000000e+00> : vector<64x16xf32>
    %100 = tpu.matmul %98, %99, %cst_68 {dimension_numbers = #tpu.dot_dimension_numbers<[1], [0], [0], [1], [0, 0, 1, 1], [], []>} : vector<64x144xbf16>, vector<144x16xbf16>, vector<64x16xf32> -> vector<64x16xf32>
    %101 = arith.addf %97, %100 : vector<64x16xf32>
    %c0_69 = arith.constant 0 : index
    %c0_70 = arith.constant 0 : index
    %c0_71 = arith.constant 0 : index
    %102 = vector.load %arg2[%c0_69, %c0_70, %c0_71] : memref<1x64x16xf32, #tpu.memory_space<vmem>>, vector<1x64x16xf32>
    %103 = vector.shape_cast %102 : vector<1x64x16xf32> to vector<64x16xf32>
    %104 = arith.truncf %101 : vector<64x16xf32> to vector<64x16xbf16>
    %c0_72 = arith.constant 0 : index
    %c0_73 = arith.constant 0 : index
    %105 = vector.load %arg9[%c0_72, %c0_73] : memref<16x16xbf16, #tpu.memory_space<vmem>>, vector<16x16xbf16>
    %cst_74 = arith.constant dense<0.000000e+00> : vector<64x16xf32>
    %106 = tpu.matmul %104, %105, %cst_74 {dimension_numbers = #tpu.dot_dimension_numbers<[1], [0], [0], [1], [0, 0, 1, 1], [], []>} : vector<64x16xbf16>, vector<16x16xbf16>, vector<64x16xf32> -> vector<64x16xf32>
    %107 = arith.truncf %103 : vector<64x16xf32> to vector<64x16xbf16>
    %c0_75 = arith.constant 0 : index
    %c0_76 = arith.constant 0 : index
    %108 = vector.load %arg10[%c0_75, %c0_76] : memref<16x16xbf16, #tpu.memory_space<vmem>>, vector<16x16xbf16>
    %cst_77 = arith.constant dense<0.000000e+00> : vector<64x16xf32>
    %109 = tpu.matmul %107, %108, %cst_77 {dimension_numbers = #tpu.dot_dimension_numbers<[1], [0], [0], [1], [0, 0, 1, 1], [], []>} : vector<64x16xbf16>, vector<16x16xbf16>, vector<64x16xf32> -> vector<64x16xf32>
    %110 = arith.addf %106, %109 : vector<64x16xf32>
    %c2_78 = arith.constant 2 : index
    %c0_79 = arith.constant 0 : index
    %111 = vector.load %arg17[%c2_78, %c0_79] : memref<14x16xf32, #tpu.memory_space<vmem>>, vector<1x16xf32>
    %112 = vector.broadcast %111 : vector<1x16xf32> to vector<64x16xf32>
    %113 = arith.addf %110, %112 : vector<64x16xf32>
    %cst_80 = arith.constant 5.000000e-01 : f32
    %114 = vector.broadcast %cst_80 : f32 to vector<64x16xf32>
    %115 = arith.mulf %114, %113 : vector<64x16xf32>
    %cst_81 = arith.constant 4.471500e-02 : f32
    %116 = vector.broadcast %cst_81 : f32 to vector<64x16xf32>
    %117 = arith.mulf %116, %113 : vector<64x16xf32>
    %118 = arith.mulf %117, %113 : vector<64x16xf32>
    %119 = arith.mulf %118, %113 : vector<64x16xf32>
    %120 = arith.addf %113, %119 : vector<64x16xf32>
    %cst_82 = arith.constant 0.797884583 : f32
    %121 = vector.broadcast %cst_82 : f32 to vector<64x16xf32>
    %122 = arith.mulf %121, %120 : vector<64x16xf32>
    %123 = math.tanh %122 : vector<64x16xf32>
    %cst_83 = arith.constant 1.000000e+00 : f32
    %124 = vector.broadcast %cst_83 : f32 to vector<64x16xf32>
    %125 = arith.addf %124, %123 : vector<64x16xf32>
    %126 = arith.mulf %115, %125 : vector<64x16xf32>
    %127 = arith.truncf %126 : vector<64x16xf32> to vector<64x16xbf16>
    %c0_84 = arith.constant 0 : index
    %c0_85 = arith.constant 0 : index
    %128 = vector.load %arg11[%c0_84, %c0_85] : memref<16x16xbf16, #tpu.memory_space<vmem>>, vector<16x16xbf16>
    %cst_86 = arith.constant dense<0.000000e+00> : vector<64x16xf32>
    %129 = tpu.matmul %127, %128, %cst_86 {dimension_numbers = #tpu.dot_dimension_numbers<[1], [0], [0], [1], [0, 0, 1, 1], [], []>} : vector<64x16xbf16>, vector<16x16xbf16>, vector<64x16xf32> -> vector<64x16xf32>
    %c3_87 = arith.constant 3 : index
    %c0_88 = arith.constant 0 : index
    %130 = vector.load %arg17[%c3_87, %c0_88] : memref<14x16xf32, #tpu.memory_space<vmem>>, vector<1x16xf32>
    %131 = vector.broadcast %130 : vector<1x16xf32> to vector<64x16xf32>
    %132 = arith.addf %129, %131 : vector<64x16xf32>
    %c4_89 = arith.constant 4 : index
    %c0_90 = arith.constant 0 : index
    %133 = vector.load %arg17[%c4_89, %c0_90] : memref<14x16xf32, #tpu.memory_space<vmem>>, vector<1x16xf32>
    %c5_91 = arith.constant 5 : index
    %c0_92 = arith.constant 0 : index
    %134 = vector.load %arg17[%c5_91, %c0_92] : memref<14x16xf32, #tpu.memory_space<vmem>>, vector<1x16xf32>
    %cst_93 = arith.constant dense<0.000000e+00> : vector<64xf32>
    %135 = vector.multi_reduction <add>, %132, %cst_93 [1] : vector<64x16xf32> to vector<64xf32>
    %136 = vector.shape_cast %135 : vector<64xf32> to vector<64x1xf32>
    %cst_94 = arith.constant 1.600000e+01 : f32
    %137 = vector.broadcast %cst_94 : f32 to vector<64x1xf32>
    %138 = arith.divf %136, %137 : vector<64x1xf32>
    %139 = vector.broadcast %138 : vector<64x1xf32> to vector<64x16xf32>
    %140 = arith.subf %132, %139 : vector<64x16xf32>
    %141 = arith.mulf %140, %140 : vector<64x16xf32>
    %cst_95 = arith.constant dense<0.000000e+00> : vector<64xf32>
    %142 = vector.multi_reduction <add>, %141, %cst_95 [1] : vector<64x16xf32> to vector<64xf32>
    %143 = vector.shape_cast %142 : vector<64xf32> to vector<64x1xf32>
    %cst_96 = arith.constant 1.600000e+01 : f32
    %144 = vector.broadcast %cst_96 : f32 to vector<64x1xf32>
    %145 = arith.divf %143, %144 : vector<64x1xf32>
    %146 = vector.broadcast %138 : vector<64x1xf32> to vector<64x16xf32>
    %147 = arith.subf %132, %146 : vector<64x16xf32>
    %cst_97 = arith.constant 9.99999974E-6 : f32
    %148 = vector.broadcast %cst_97 : f32 to vector<64x1xf32>
    %149 = arith.addf %145, %148 : vector<64x1xf32>
    %150 = math.rsqrt %149 : vector<64x1xf32>
    %151 = vector.broadcast %150 : vector<64x1xf32> to vector<64x16xf32>
    %152 = arith.mulf %147, %151 : vector<64x16xf32>
    %153 = vector.broadcast %133 : vector<1x16xf32> to vector<64x16xf32>
    %154 = arith.mulf %152, %153 : vector<64x16xf32>
    %155 = vector.broadcast %134 : vector<1x16xf32> to vector<64x16xf32>
    %156 = arith.addf %154, %155 : vector<64x16xf32>
    %157 = arith.truncf %156 : vector<64x16xf32> to vector<64x16xbf16>
    %c0_98 = arith.constant 0 : index
    %c0_99 = arith.constant 0 : index
    %158 = vector.load %arg12[%c0_98, %c0_99] : memref<16x48xbf16, #tpu.memory_space<vmem>>, vector<16x48xbf16>
    %cst_100 = arith.constant dense<0.000000e+00> : vector<64x48xf32>
    %159 = tpu.matmul %157, %158, %cst_100 {dimension_numbers = #tpu.dot_dimension_numbers<[1], [0], [0], [1], [0, 0, 1, 1], [], []>} : vector<64x16xbf16>, vector<16x48xbf16>, vector<64x48xf32> -> vector<64x48xf32>
    %160 = vector.extract_strided_slice %159 {offsets = [0, 0], sizes = [64, 16], strides = [1, 1]} : vector<64x48xf32> to vector<64x16xf32>
    %c6_101 = arith.constant 6 : index
    %c0_102 = arith.constant 0 : index
    %161 = vector.load %arg17[%c6_101, %c0_102] : memref<14x16xf32, #tpu.memory_space<vmem>>, vector<1x16xf32>
    %162 = vector.broadcast %161 : vector<1x16xf32> to vector<64x16xf32>
    %163 = arith.addf %160, %162 : vector<64x16xf32>
    %164 = vector.extract_strided_slice %159 {offsets = [0, 16], sizes = [64, 16], strides = [1, 1]} : vector<64x48xf32> to vector<64x16xf32>
    %c7_103 = arith.constant 7 : index
    %c0_104 = arith.constant 0 : index
    %165 = vector.load %arg17[%c7_103, %c0_104] : memref<14x16xf32, #tpu.memory_space<vmem>>, vector<1x16xf32>
    %166 = vector.broadcast %165 : vector<1x16xf32> to vector<64x16xf32>
    %167 = arith.addf %164, %166 : vector<64x16xf32>
    %168 = vector.extract_strided_slice %159 {offsets = [0, 32], sizes = [64, 16], strides = [1, 1]} : vector<64x48xf32> to vector<64x16xf32>
    %c8_105 = arith.constant 8 : index
    %c0_106 = arith.constant 0 : index
    %169 = vector.load %arg17[%c8_105, %c0_106] : memref<14x16xf32, #tpu.memory_space<vmem>>, vector<1x16xf32>
    %170 = vector.broadcast %169 : vector<1x16xf32> to vector<64x16xf32>
    %171 = arith.addf %168, %170 : vector<64x16xf32>
    %172 = arith.truncf %163 : vector<64x16xf32> to vector<64x16xbf16>
    %173 = arith.extf %172 : vector<64x16xbf16> to vector<64x16xf32>
    %174 = arith.mulf %173, %173 : vector<64x16xf32>
    %cst_107 = arith.constant dense<0.000000e+00> : vector<64xf32>
    %175 = vector.multi_reduction <add>, %174, %cst_107 [1] : vector<64x16xf32> to vector<64xf32>
    %176 = vector.shape_cast %175 : vector<64xf32> to vector<64x1xf32>
    %cst_108 = arith.constant 5.000000e-01 : f32
    %177 = vector.broadcast %cst_108 : f32 to vector<64x1xf32>
    %178 = arith.mulf %177, %176 : vector<64x1xf32>
    %c0_109 = arith.constant 0 : index
    %c0_110 = arith.constant 0 : index
    %179 = vector.load %arg13[%c0_109, %c0_110] : memref<16x8xbf16, #tpu.memory_space<vmem>>, vector<16x8xbf16>
    %cst_111 = arith.constant dense<0.000000e+00> : vector<64x8xf32>
    %180 = tpu.matmul %172, %179, %cst_111 {dimension_numbers = #tpu.dot_dimension_numbers<[1], [0], [0], [1], [0, 0, 1, 1], [], []>} : vector<64x16xbf16>, vector<16x8xbf16>, vector<64x8xf32> -> vector<64x8xf32>
    %181 = vector.broadcast %178 : vector<64x1xf32> to vector<64x8xf32>
    %182 = arith.subf %180, %181 : vector<64x8xf32>
    %183 = math.exp %182 : vector<64x8xf32>
    %cst_112 = arith.constant 0.353553385 : f32
    %184 = vector.broadcast %cst_112 : f32 to vector<64x8xf32>
    %185 = arith.mulf %183, %184 : vector<64x8xf32>
    %186 = arith.truncf %167 : vector<64x16xf32> to vector<64x16xbf16>
    %187 = arith.extf %186 : vector<64x16xbf16> to vector<64x16xf32>
    %188 = arith.mulf %187, %187 : vector<64x16xf32>
    %cst_113 = arith.constant dense<0.000000e+00> : vector<64xf32>
    %189 = vector.multi_reduction <add>, %188, %cst_113 [1] : vector<64x16xf32> to vector<64xf32>
    %190 = vector.shape_cast %189 : vector<64xf32> to vector<64x1xf32>
    %cst_114 = arith.constant 5.000000e-01 : f32
    %191 = vector.broadcast %cst_114 : f32 to vector<64x1xf32>
    %192 = arith.mulf %191, %190 : vector<64x1xf32>
    %c0_115 = arith.constant 0 : index
    %c0_116 = arith.constant 0 : index
    %193 = vector.load %arg13[%c0_115, %c0_116] : memref<16x8xbf16, #tpu.memory_space<vmem>>, vector<16x8xbf16>
    %cst_117 = arith.constant dense<0.000000e+00> : vector<64x8xf32>
    %194 = tpu.matmul %186, %193, %cst_117 {dimension_numbers = #tpu.dot_dimension_numbers<[1], [0], [0], [1], [0, 0, 1, 1], [], []>} : vector<64x16xbf16>, vector<16x8xbf16>, vector<64x8xf32> -> vector<64x8xf32>
    %195 = vector.broadcast %192 : vector<64x1xf32> to vector<64x8xf32>
    %196 = arith.subf %194, %195 : vector<64x8xf32>
    %197 = math.exp %196 : vector<64x8xf32>
    %cst_118 = arith.constant 0.353553385 : f32
    %198 = vector.broadcast %cst_118 : f32 to vector<64x8xf32>
    %199 = arith.mulf %197, %198 : vector<64x8xf32>
    %cst_119 = arith.constant dense<0.000000e+00> : vector<8xf32>
    %200 = vector.multi_reduction <add>, %185, %cst_119 [0] : vector<64x8xf32> to vector<8xf32>
    %201 = vector.shape_cast %200 : vector<8xf32> to vector<1x8xf32>
    %202 = vector.broadcast %201 : vector<1x8xf32> to vector<64x8xf32>
    %203 = arith.mulf %199, %202 : vector<64x8xf32>
    %cst_120 = arith.constant dense<0.000000e+00> : vector<64xf32>
    %204 = vector.multi_reduction <add>, %203, %cst_120 [1] : vector<64x8xf32> to vector<64xf32>
    %205 = vector.shape_cast %204 : vector<64xf32> to vector<64x1xf32>
    %cst_121 = arith.constant 9.99999993E-9 : f32
    %206 = vector.broadcast %cst_121 : f32 to vector<64x1xf32>
    %207 = arith.addf %205, %206 : vector<64x1xf32>
    %208 = arith.truncf %171 : vector<64x16xf32> to vector<64x16xbf16>
    %209 = arith.truncf %185 : vector<64x8xf32> to vector<64x8xbf16>
    %cst_122 = arith.constant dense<0.000000e+00> : vector<16x8xf32>
    %210 = tpu.matmul %208, %209, %cst_122 {dimension_numbers = #tpu.dot_dimension_numbers<[0], [0], [1], [1], [0, 1, 1, 1], [], []>} : vector<64x16xbf16>, vector<64x8xbf16>, vector<16x8xf32> -> vector<16x8xf32>
    %211 = arith.truncf %199 : vector<64x8xf32> to vector<64x8xbf16>
    %212 = arith.truncf %210 : vector<16x8xf32> to vector<16x8xbf16>
    %cst_123 = arith.constant dense<0.000000e+00> : vector<64x16xf32>
    %213 = tpu.matmul %211, %212, %cst_123 {dimension_numbers = #tpu.dot_dimension_numbers<[1], [1], [0], [0], [0, 0, 1, 0], [], []>} : vector<64x8xbf16>, vector<16x8xbf16>, vector<64x16xf32> -> vector<64x16xf32>
    %214 = vector.broadcast %207 : vector<64x1xf32> to vector<64x16xf32>
    %215 = arith.divf %213, %214 : vector<64x16xf32>
    %216 = arith.addf %132, %171 : vector<64x16xf32>
    %217 = arith.truncf %215 : vector<64x16xf32> to vector<64x16xbf16>
    %c0_124 = arith.constant 0 : index
    %c0_125 = arith.constant 0 : index
    %218 = vector.load %arg14[%c0_124, %c0_125] : memref<16x16xbf16, #tpu.memory_space<vmem>>, vector<16x16xbf16>
    %cst_126 = arith.constant dense<0.000000e+00> : vector<64x16xf32>
    %219 = tpu.matmul %217, %218, %cst_126 {dimension_numbers = #tpu.dot_dimension_numbers<[1], [0], [0], [1], [0, 0, 1, 1], [], []>} : vector<64x16xbf16>, vector<16x16xbf16>, vector<64x16xf32> -> vector<64x16xf32>
    %220 = arith.addf %216, %219 : vector<64x16xf32>
    %c9 = arith.constant 9 : index
    %c0_127 = arith.constant 0 : index
    %221 = vector.load %arg17[%c9, %c0_127] : memref<14x16xf32, #tpu.memory_space<vmem>>, vector<1x16xf32>
    %222 = vector.broadcast %221 : vector<1x16xf32> to vector<64x16xf32>
    %223 = arith.addf %220, %222 : vector<64x16xf32>
    %c10 = arith.constant 10 : index
    %c0_128 = arith.constant 0 : index
    %224 = vector.load %arg17[%c10, %c0_128] : memref<14x16xf32, #tpu.memory_space<vmem>>, vector<1x16xf32>
    %c11 = arith.constant 11 : index
    %c0_129 = arith.constant 0 : index
    %225 = vector.load %arg17[%c11, %c0_129] : memref<14x16xf32, #tpu.memory_space<vmem>>, vector<1x16xf32>
    %cst_130 = arith.constant dense<0.000000e+00> : vector<64xf32>
    %226 = vector.multi_reduction <add>, %223, %cst_130 [1] : vector<64x16xf32> to vector<64xf32>
    %227 = vector.shape_cast %226 : vector<64xf32> to vector<64x1xf32>
    %cst_131 = arith.constant 1.600000e+01 : f32
    %228 = vector.broadcast %cst_131 : f32 to vector<64x1xf32>
    %229 = arith.divf %227, %228 : vector<64x1xf32>
    %230 = vector.broadcast %229 : vector<64x1xf32> to vector<64x16xf32>
    %231 = arith.subf %223, %230 : vector<64x16xf32>
    %232 = arith.mulf %231, %231 : vector<64x16xf32>
    %cst_132 = arith.constant dense<0.000000e+00> : vector<64xf32>
    %233 = vector.multi_reduction <add>, %232, %cst_132 [1] : vector<64x16xf32> to vector<64xf32>
    %234 = vector.shape_cast %233 : vector<64xf32> to vector<64x1xf32>
    %cst_133 = arith.constant 1.600000e+01 : f32
    %235 = vector.broadcast %cst_133 : f32 to vector<64x1xf32>
    %236 = arith.divf %234, %235 : vector<64x1xf32>
    %237 = vector.broadcast %229 : vector<64x1xf32> to vector<64x16xf32>
    %238 = arith.subf %223, %237 : vector<64x16xf32>
    %cst_134 = arith.constant 9.99999974E-6 : f32
    %239 = vector.broadcast %cst_134 : f32 to vector<64x1xf32>
    %240 = arith.addf %236, %239 : vector<64x1xf32>
    %241 = math.rsqrt %240 : vector<64x1xf32>
    %242 = vector.broadcast %241 : vector<64x1xf32> to vector<64x16xf32>
    %243 = arith.mulf %238, %242 : vector<64x16xf32>
    %244 = vector.broadcast %224 : vector<1x16xf32> to vector<64x16xf32>
    %245 = arith.mulf %243, %244 : vector<64x16xf32>
    %246 = vector.broadcast %225 : vector<1x16xf32> to vector<64x16xf32>
    %247 = arith.addf %245, %246 : vector<64x16xf32>
    %248 = arith.truncf %247 : vector<64x16xf32> to vector<64x16xbf16>
    %c0_135 = arith.constant 0 : index
    %c0_136 = arith.constant 0 : index
    %249 = vector.load %arg15[%c0_135, %c0_136] : memref<16x16xbf16, #tpu.memory_space<vmem>>, vector<16x16xbf16>
    %cst_137 = arith.constant dense<0.000000e+00> : vector<64x16xf32>
    %250 = tpu.matmul %248, %249, %cst_137 {dimension_numbers = #tpu.dot_dimension_numbers<[1], [0], [0], [1], [0, 0, 1, 1], [], []>} : vector<64x16xbf16>, vector<16x16xbf16>, vector<64x16xf32> -> vector<64x16xf32>
    %c12 = arith.constant 12 : index
    %c0_138 = arith.constant 0 : index
    %251 = vector.load %arg17[%c12, %c0_138] : memref<14x16xf32, #tpu.memory_space<vmem>>, vector<1x16xf32>
    %252 = vector.broadcast %251 : vector<1x16xf32> to vector<64x16xf32>
    %253 = arith.addf %250, %252 : vector<64x16xf32>
    %cst_139 = arith.constant 5.000000e-01 : f32
    %254 = vector.broadcast %cst_139 : f32 to vector<64x16xf32>
    %255 = arith.mulf %254, %253 : vector<64x16xf32>
    %cst_140 = arith.constant 4.471500e-02 : f32
    %256 = vector.broadcast %cst_140 : f32 to vector<64x16xf32>
    %257 = arith.mulf %256, %253 : vector<64x16xf32>
    %258 = arith.mulf %257, %253 : vector<64x16xf32>
    %259 = arith.mulf %258, %253 : vector<64x16xf32>
    %260 = arith.addf %253, %259 : vector<64x16xf32>
    %cst_141 = arith.constant 0.797884583 : f32
    %261 = vector.broadcast %cst_141 : f32 to vector<64x16xf32>
    %262 = arith.mulf %261, %260 : vector<64x16xf32>
    %263 = math.tanh %262 : vector<64x16xf32>
    %cst_142 = arith.constant 1.000000e+00 : f32
    %264 = vector.broadcast %cst_142 : f32 to vector<64x16xf32>
    %265 = arith.addf %264, %263 : vector<64x16xf32>
    %266 = arith.mulf %255, %265 : vector<64x16xf32>
    %267 = arith.truncf %266 : vector<64x16xf32> to vector<64x16xbf16>
    %c0_143 = arith.constant 0 : index
    %c0_144 = arith.constant 0 : index
    %268 = vector.load %arg16[%c0_143, %c0_144] : memref<16x16xbf16, #tpu.memory_space<vmem>>, vector<16x16xbf16>
    %cst_145 = arith.constant dense<0.000000e+00> : vector<64x16xf32>
    %269 = tpu.matmul %267, %268, %cst_145 {dimension_numbers = #tpu.dot_dimension_numbers<[1], [0], [0], [1], [0, 0, 1, 1], [], []>} : vector<64x16xbf16>, vector<16x16xbf16>, vector<64x16xf32> -> vector<64x16xf32>
    %c13 = arith.constant 13 : index
    %c0_146 = arith.constant 0 : index
    %270 = vector.load %arg17[%c13, %c0_146] : memref<14x16xf32, #tpu.memory_space<vmem>>, vector<1x16xf32>
    %271 = vector.broadcast %270 : vector<1x16xf32> to vector<64x16xf32>
    %272 = arith.addf %269, %271 : vector<64x16xf32>
    %273 = arith.addf %223, %272 : vector<64x16xf32>
    %c0_147 = arith.constant 0 : index
    %c0_148 = arith.constant 0 : index
    %c0_149 = arith.constant 0 : index
    %274 = vector.load %arg18[%c0_147, %c0_148, %c0_149] : memref<1x64x16xf32, #tpu.memory_space<vmem>>, vector<1x64x16xf32>
    %275 = vector.shape_cast %274 : vector<1x64x16xf32> to vector<64x16xf32>
    %276 = vector.shape_cast %273 : vector<64x16xf32> to vector<1x64x16xf32>
    tpu.vector_store %arg18[%c0_147, %c0_148, %c0_149], %276 {strides = array<i32>} : memref<1x64x16xf32, #tpu.memory_space<vmem>>, vector<1x64x16xf32>,
    return
  }
  func.func @transform_0(%arg0: i32) -> (i32, i32, i32) {
    %c0_i32 = arith.constant 0 : i32
    %c0_i32_0 = arith.constant 0 : i32
    %c0_i32_1 = arith.constant 0 : i32
    return %arg0, %c0_i32, %c0_i32_0 : i32, i32, i32
  }
  func.func @transform_1(%arg0: i32) -> (i32, i32, i32) {
    %c0_i32 = arith.constant 0 : i32
    %c0_i32_0 = arith.constant 0 : i32
    %c0_i32_1 = arith.constant 0 : i32
    return %arg0, %c0_i32, %c0_i32_0 : i32, i32, i32
  }
  func.func @transform_2(%arg0: i32) -> (i32, i32) {
    %c0_i32 = arith.constant 0 : i32
    %c0_i32_0 = arith.constant 0 : i32
    %c0_i32_1 = arith.constant 0 : i32
    return %c0_i32, %c0_i32_0 : i32, i32
  }
  func.func @transform_3(%arg0: i32) -> (i32, i32) {
    %c0_i32 = arith.constant 0 : i32
    %c0_i32_0 = arith.constant 0 : i32
    %c0_i32_1 = arith.constant 0 : i32
    return %c0_i32, %c0_i32_0 : i32, i32
  }
  func.func @transform_4(%arg0: i32) -> (i32, i32) {
    %c0_i32 = arith.constant 0 : i32
    %c0_i32_0 = arith.constant 0 : i32
    %c0_i32_1 = arith.constant 0 : i32
    return %c0_i32, %c0_i32_0 : i32, i32
  }
  func.func @transform_5(%arg0: i32) -> (i32, i32, i32) {
    %c0_i32 = arith.constant 0 : i32
    %c0_i32_0 = arith.constant 0 : i32
    %c0_i32_1 = arith.constant 0 : i32
    %c0_i32_2 = arith.constant 0 : i32
    return %c0_i32, %c0_i32_0, %c0_i32_1 : i32, i32, i32
  }
  func.func @transform_6(%arg0: i32) -> (i32, i32) {
    %c0_i32 = arith.constant 0 : i32
    %c0_i32_0 = arith.constant 0 : i32
    %c0_i32_1 = arith.constant 0 : i32
    return %c0_i32, %c0_i32_0 : i32, i32
  }
  func.func @transform_7(%arg0: i32) -> (i32, i32) {
    %c0_i32 = arith.constant 0 : i32
    %c0_i32_0 = arith.constant 0 : i32
    %c0_i32_1 = arith.constant 0 : i32
    return %c0_i32, %c0_i32_0 : i32, i32
  }
  func.func @transform_8(%arg0: i32) -> (i32, i32) {
    %c0_i32 = arith.constant 0 : i32
    %c0_i32_0 = arith.constant 0 : i32
    %c0_i32_1 = arith.constant 0 : i32
    return %c0_i32, %c0_i32_0 : i32, i32
  }
  func.func @transform_9(%arg0: i32) -> (i32, i32) {
    %c0_i32 = arith.constant 0 : i32
    %c0_i32_0 = arith.constant 0 : i32
    %c0_i32_1 = arith.constant 0 : i32
    return %c0_i32, %c0_i32_0 : i32, i32
  }
  func.func @transform_10(%arg0: i32) -> (i32, i32) {
    %c0_i32 = arith.constant 0 : i32
    %c0_i32_0 = arith.constant 0 : i32
    %c0_i32_1 = arith.constant 0 : i32
    return %c0_i32, %c0_i32_0 : i32, i32
  }
  func.func @transform_11(%arg0: i32) -> (i32, i32) {
    %c0_i32 = arith.constant 0 : i32
    %c0_i32_0 = arith.constant 0 : i32
    %c0_i32_1 = arith.constant 0 : i32
    return %c0_i32, %c0_i32_0 : i32, i32
  }
  func.func @transform_12(%arg0: i32) -> (i32, i32) {
    %c0_i32 = arith.constant 0 : i32
    %c0_i32_0 = arith.constant 0 : i32
    %c0_i32_1 = arith.constant 0 : i32
    return %c0_i32, %c0_i32_0 : i32, i32
  }
  func.func @transform_13(%arg0: i32) -> (i32, i32) {
    %c0_i32 = arith.constant 0 : i32
    %c0_i32_0 = arith.constant 0 : i32
    %c0_i32_1 = arith.constant 0 : i32
    return %c0_i32, %c0_i32_0 : i32, i32
  }
  func.func @transform_14(%arg0: i32) -> (i32, i32) {
    %c0_i32 = arith.constant 0 : i32
    %c0_i32_0 = arith.constant 0 : i32
    %c0_i32_1 = arith.constant 0 : i32
    return %c0_i32, %c0_i32_0 : i32, i32
  }
  func.func @transform_15(%arg0: i32) -> (i32, i32) {
    %c0_i32 = arith.constant 0 : i32
    %c0_i32_0 = arith.constant 0 : i32
    %c0_i32_1 = arith.constant 0 : i32
    return %c0_i32, %c0_i32_0 : i32, i32
  }
  func.func @transform_16(%arg0: i32) -> (i32, i32) {
    %c0_i32 = arith.constant 0 : i32
    %c0_i32_0 = arith.constant 0 : i32
    %c0_i32_1 = arith.constant 0 : i32
    return %c0_i32, %c0_i32_0 : i32, i32
  }
  func.func @transform_17(%arg0: i32) -> (i32, i32, i32) {
    %c0_i32 = arith.constant 0 : i32
    %c0_i32_0 = arith.constant 0 : i32
    %c0_i32_1 = arith.constant 0 : i32
    return %arg0, %c0_i32, %c0_i32_0 : i32, i32, i32
  }
}

</mosaic_0001>

<llo_original>
// kernel: tpu_custom_call.1
$region0: #{tpu_custom_call.1}
  #allocation0 [shape = 'u32[]', space=smem, size = 0x4, offset = 0x4, fixed_abs, tag = 'smem constant byte address 0x4 - core index']
  #allocation1 [shape = 'u32[144,128]{1,0:T(1,128)}', space=vmem, size = 0x12000, scoped, tag = 'internal scratch']
  #allocation2 [shape = 'bf16[144,16]{1,0:T(8,128)(2,1)}', space=vmem, size = 0x9000, scoped, tag = 'scratch operand']
  %s0 = inlined_call_operand.vmem [shape: f32[2,16,32], index: 0, kind: input, shape index: {}]
  %s1 = inlined_call_operand.vmem [shape: f32[2,64,16], index: 1, kind: input, shape index: {}]
  %s2 = inlined_call_operand.hbm [shape: f32[2,32], index: 2, kind: input, shape index: {}]
  %s3 = inlined_call_operand.vmem [shape: bf16[32,16], index: 3, kind: input, shape index: {}]
  %s4 = inlined_call_operand.vmem [shape: bf16[16,16], index: 4, kind: input, shape index: {}]
  %s5 = inlined_call_operand.vmem [shape: bf16[9,16,16], index: 5, kind: input, shape index: {}]
  %s6 = inlined_call_operand.vmem [shape: bf16[64,144], index: 6, kind: input, shape index: {}]
  %s7 = inlined_call_operand.vmem [shape: f32[64,16], index: 7, kind: input, shape index: {}]
  %s8 = inlined_call_operand.vmem [shape: bf16[16,16], index: 8, kind: input, shape index: {}]
  %s9 = inlined_call_operand.vmem [shape: bf16[16,16], index: 9, kind: input, shape index: {}]
  %s10 = inlined_call_operand.vmem [shape: bf16[16,16], index: 10, kind: input, shape index: {}]
  %s11 = inlined_call_operand.vmem [shape: bf16[16,48], index: 11, kind: input, shape index: {}]
  %s12 = inlined_call_operand.vmem [shape: bf16[16,8], index: 12, kind: input, shape index: {}]
  %s13 = inlined_call_operand.vmem [shape: bf16[16,16], index: 13, kind: input, shape index: {}]
  %s14 = inlined_call_operand.vmem [shape: bf16[16,16], index: 14, kind: input, shape index: {}]
  %s15 = inlined_call_operand.hbm [shape: bf16[16,16], index: 15, kind: input, shape index: {}]
  %s16 = inlined_call_operand.vmem [shape: f32[14,16], index: 16, kind: input, shape index: {}]
  %s17 = inlined_call_operand.vmem [shape: f32[2,64,16], index: 17, kind: output, shape index: {}]
  %s18 = sld [smem:[#allocation0]]
  $region109: #{tpu_custom_call.1} parent=0
    _
  %s20 = ssub.s32 1, %s18
  %s21 = scalar_select 0, %s20, %s18
  $region1: #{tpu_custom_call.1} parent=0
    #allocation3 [shape = 'u8[1024]{0}', space=vmem, size = 0x400, scoped, tag = 'input window, operand 2, single buffered']
    #allocation4 [shape = 's32[2]{0}', space=sflag, size = 0x8, scoped, tag = 'scoped memory for tpu_custom_call.1']
    #allocation5 [shape = 'u8[4096]{0}', space=vmem, size = 0x1000, scoped, tag = 'input window, operand 15, single buffered']
    #allocation6 [shape = 's32[1]{0}', space=sflag, size = 0x4, scoped, tag = 'scoped memory for tpu_custom_call.1']
    %22 = vsyncpa [#allocation4], 0
    %23 = vsyncpa [#allocation6], 0
    loop: start=0, step=1, limit=4
    $region2: #{tpu_custom_call.1} parent=1 // loop_pre_header
      _
    $region3: #{tpu_custom_call.1} parent=1 // loop_header
      %s25 = sphi 0, %s29
      %p26 = scmp.ge.s32.totalorder %s25, 4
      %s35 = sphi 0, %s37
      %s38 = sphi 0, %s35
      %s39 = sphi 0, %s38
      %s55 = sphi 0, %s39
      %s61 = sphi 0, %s63
      %s64 = sphi 0, %s61
      %s65 = sphi 0, %s64
      %s81 = sphi 0, %s65
      %s85 = sphi 0, %s85
      %s87 = sphi 0, %s85
      %s88 = sphi 0, %s87
      %s102 = sphi 0, %s88
      %s106 = sphi 0, %s106
      %s108 = sphi 0, %s106
      %s109 = sphi 0, %s108
      %s123 = sphi 0, %s109
      %s127 = sphi 0, %s127
      %s129 = sphi 0, %s127
      %s130 = sphi 0, %s129
      %s144 = sphi 0, %s130
      %s148 = sphi 0, %s148
      %s150 = sphi 0, %s148
      %s151 = sphi 0, %s150
      %s165 = sphi 0, %s151
      %s169 = sphi 0, %s169
      %s171 = sphi 0, %s169
      %s172 = sphi 0, %s171
      %s186 = sphi 0, %s172
      %s190 = sphi 0, %s190
      %s192 = sphi 0, %s190
      %s193 = sphi 0, %s192
      %s207 = sphi 0, %s193
      %s211 = sphi 0, %s211
      %s213 = sphi 0, %s211
      %s214 = sphi 0, %s213
      %s228 = sphi 0, %s214
      %s232 = sphi 0, %s232
      %s234 = sphi 0, %s232
      %s235 = sphi 0, %s234
      %s249 = sphi 0, %s235
      %s253 = sphi 0, %s253
      %s255 = sphi 0, %s253
      %s256 = sphi 0, %s255
      %s270 = sphi 0, %s256
      %s274 = sphi 0, %s274
      %s276 = sphi 0, %s274
      %s277 = sphi 0, %s276
      %s291 = sphi 0, %s277
      %s295 = sphi 0, %s295
      %s297 = sphi 0, %s295
      %s298 = sphi 0, %s297
      %s312 = sphi 0, %s298
      %s316 = sphi 0, %s316
      %s318 = sphi 0, %s316
      %s319 = sphi 0, %s318
      %s333 = sphi 0, %s319
      %s337 = sphi 0, %s337
      %s339 = sphi 0, %s337
      %s340 = sphi 0, %s339
      %s354 = sphi 0, %s340
      %s358 = sphi 0, %s358
      %s360 = sphi 0, %s358
      %s361 = sphi 0, %s360
      %s375 = sphi 0, %s361
      %s379 = sphi 0, %s379
      %s381 = sphi 0, %s379
      %s382 = sphi 0, %s381
      %s396 = sphi 0, %s382
      %s402 = sphi 0, %s404
      %s405 = sphi 0, %s402
      %s406 = sphi 0, %s405
      %s422 = sphi 0, %s406
    $region4: #{tpu_custom_call.1} parent=1 // loop_header_branch
      %28 = sbr.rel (%p26) target = $region8
    $region5: #{tpu_custom_call.1} parent=1 // loop_body
      %s30 = ssub.s32 %s25, 1
      %s31 = ssub.s32 %s25, 2
      %s32 = sadd.s32 %s25, 1
      %s33 = ssub.s32 %s25, %s32
      %p34 = scmp.eq.s32.totalorder %s33, 0
      %s36 = sadd.s32 %s35, 1
      %s37 = scalar_select %p34, %s35, %s36
      %p40 = pneg %p34
      %p41 = scmp.eq.s32.totalorder %s25, 1
      %p42 = por %p40, %p41
      %p43 = scmp.ne.s32.totalorder %s35, %s38
      %p44 = scmp.eq.s32.totalorder %s25, 0
      %p45 = por %p43, %p44
      %p46 = scmp.ne.s32.totalorder %s35, %s38
      %p47 = scmp.eq.s32.totalorder %s30, 1
      %p48 = por %p46, %p47
      %p49 = scmp.ne.s32.totalorder %s38, %s39
      %p50 = scmp.eq.s32.totalorder %s30, 0
      %p51 = por %p49, %p50
      %p52 = scmp.ne.s32.totalorder %s38, %s39
      %p53 = scmp.eq.s32.totalorder %s31, 1
      %p54 = por %p52, %p53
      %p56 = scmp.ne.s32.totalorder %s39, %s55
      %p57 = scmp.eq.s32.totalorder %s31, 0
      %p58 = por %p56, %p57
      %s59 = ssub.s32 %s25, %s32
      %p60 = scmp.eq.s32.totalorder %s59, 0
      %s62 = sadd.s32 %s61, 1
      %s63 = scalar_select %p60, %s61, %s62
      %p66 = pneg %p60
      %p67 = scmp.eq.s32.totalorder %s25, 1
      %p68 = por %p66, %p67
      %p69 = scmp.ne.s32.totalorder %s61, %s64
      %p70 = scmp.eq.s32.totalorder %s25, 0
      %p71 = por %p69, %p70
      %p72 = scmp.ne.s32.totalorder %s61, %s64
      %p73 = scmp.eq.s32.totalorder %s30, 1
      %p74 = por %p72, %p73
      %p75 = scmp.ne.s32.totalorder %s64, %s65
      %p76 = scmp.eq.s32.totalorder %s30, 0
      %p77 = por %p75, %p76
      %p78 = scmp.ne.s32.totalorder %s64, %s65
      %p79 = scmp.eq.s32.totalorder %s31, 1
      %p80 = por %p78, %p79
      %p82 = scmp.ne.s32.totalorder %s65, %s81
      %p83 = scmp.eq.s32.totalorder %s31, 0
      %p84 = por %p82, %p83
      %s86 = sadd.s32 %s85, 1
      %p89 = scmp.eq.s32.totalorder %s25, 1
      %p90 = scmp.ne.s32.totalorder %s85, %s87
      %p91 = scmp.eq.s32.totalorder %s25, 0
      %p92 = por %p90, %p91
      %p93 = scmp.ne.s32.totalorder %s85, %s87
      %p94 = scmp.eq.s32.totalorder %s30, 1
      %p95 = por %p93, %p94
      %p96 = scmp.ne.s32.totalorder %s87, %s88
      %p97 = scmp.eq.s32.totalorder %s30, 0
      %p98 = por %p96, %p97
      %p99 = scmp.ne.s32.totalorder %s87, %s88
      %p100 = scmp.eq.s32.totalorder %s31, 1
      %p101 = por %p99, %p100
      %p103 = scmp.ne.s32.totalorder %s88, %s102
      %p104 = scmp.eq.s32.totalorder %s31, 0
      %p105 = por %p103, %p104
      %s107 = sadd.s32 %s106, 1
      %p110 = scmp.eq.s32.totalorder %s25, 1
      %p111 = scmp.ne.s32.totalorder %s106, %s108
      %p112 = scmp.eq.s32.totalorder %s25, 0
      %p113 = por %p111, %p112
      %p114 = scmp.ne.s32.totalorder %s106, %s108
      %p115 = scmp.eq.s32.totalorder %s30, 1
      %p116 = por %p114, %p115
      %p117 = scmp.ne.s32.totalorder %s108, %s109
      %p118 = scmp.eq.s32.totalorder %s30, 0
      %p119 = por %p117, %p118
      %p120 = scmp.ne.s32.totalorder %s108, %s109
      %p121 = scmp.eq.s32.totalorder %s31, 1
      %p122 = por %p120, %p121
      %p124 = scmp.ne.s32.totalorder %s109, %s123
      %p125 = scmp.eq.s32.totalorder %s31, 0
      %p126 = por %p124, %p125
      %s128 = sadd.s32 %s127, 1
      %p131 = scmp.eq.s32.totalorder %s25, 1
      %p132 = scmp.ne.s32.totalorder %s127, %s129
      %p133 = scmp.eq.s32.totalorder %s25, 0
      %p134 = por %p132, %p133
      %p135 = scmp.ne.s32.totalorder %s127, %s129
      %p136 = scmp.eq.s32.totalorder %s30, 1
      %p137 = por %p135, %p136
      %p138 = scmp.ne.s32.totalorder %s129, %s130
      %p139 = scmp.eq.s32.totalorder %s30, 0
      %p140 = por %p138, %p139
      %p141 = scmp.ne.s32.totalorder %s129, %s130
      %p142 = scmp.eq.s32.totalorder %s31, 1
      %p143 = por %p141, %p142
      %p145 = scmp.ne.s32.totalorder %s130, %s144
      %p146 = scmp.eq.s32.totalorder %s31, 0
      %p147 = por %p145, %p146
      %s149 = sadd.s32 %s148, 1
      %p152 = scmp.eq.s32.totalorder %s25, 1
      %p153 = scmp.ne.s32.totalorder %s148, %s150
      %p154 = scmp.eq.s32.totalorder %s25, 0
      %p155 = por %p153, %p154
      %p156 = scmp.ne.s32.totalorder %s148, %s150
      %p157 = scmp.eq.s32.totalorder %s30, 1
      %p158 = por %p156, %p157
      %p159 = scmp.ne.s32.totalorder %s150, %s151
      %p160 = scmp.eq.s32.totalorder %s30, 0
      %p161 = por %p159, %p160
      %p162 = scmp.ne.s32.totalorder %s150, %s151
      %p163 = scmp.eq.s32.totalorder %s31, 1
      %p164 = por %p162, %p163
      %p166 = scmp.ne.s32.totalorder %s151, %s165
      %p167 = scmp.eq.s32.totalorder %s31, 0
      %p168 = por %p166, %p167
      %s170 = sadd.s32 %s169, 1
      %p173 = scmp.eq.s32.totalorder %s25, 1
      %p174 = scmp.ne.s32.totalorder %s169, %s171
      %p175 = scmp.eq.s32.totalorder %s25, 0
      %p176 = por %p174, %p175
      %p177 = scmp.ne.s32.totalorder %s169, %s171
      %p178 = scmp.eq.s32.totalorder %s30, 1
      %p179 = por %p177, %p178
      %p180 = scmp.ne.s32.totalorder %s171, %s172
      %p181 = scmp.eq.s32.totalorder %s30, 0
      %p182 = por %p180, %p181
      %p183 = scmp.ne.s32.totalorder %s171, %s172
      %p184 = scmp.eq.s32.totalorder %s31, 1
      %p185 = por %p183, %p184
      %p187 = scmp.ne.s32.totalorder %s172, %s186
      %p188 = scmp.eq.s32.totalorder %s31, 0
      %p189 = por %p187, %p188
      %s191 = sadd.s32 %s190, 1
      %p194 = scmp.eq.s32.totalorder %s25, 1
      %p195 = scmp.ne.s32.totalorder %s190, %s192
      %p196 = scmp.eq.s32.totalorder %s25, 0
      %p197 = por %p195, %p196
      %p198 = scmp.ne.s32.totalorder %s190, %s192
      %p199 = scmp.eq.s32.totalorder %s30, 1
      %p200 = por %p198, %p199
      %p201 = scmp.ne.s32.totalorder %s192, %s193
      %p202 = scmp.eq.s32.totalorder %s30, 0
      %p203 = por %p201, %p202
      %p204 = scmp.ne.s32.totalorder %s192, %s193
      %p205 = scmp.eq.s32.totalorder %s31, 1
      %p206 = por %p204, %p205
      %p208 = scmp.ne.s32.totalorder %s193, %s207
      %p209 = scmp.eq.s32.totalorder %s31, 0
      %p210 = por %p208, %p209
      %s212 = sadd.s32 %s211, 1
      %p215 = scmp.eq.s32.totalorder %s25, 1
      %p216 = scmp.ne.s32.totalorder %s211, %s213
      %p217 = scmp.eq.s32.totalorder %s25, 0
      %p218 = por %p216, %p217
      %p219 = scmp.ne.s32.totalorder %s211, %s213
      %p220 = scmp.eq.s32.totalorder %s30, 1
      %p221 = por %p219, %p220
      %p222 = scmp.ne.s32.totalorder %s213, %s214
      %p223 = scmp.eq.s32.totalorder %s30, 0
      %p224 = por %p222, %p223
      %p225 = scmp.ne.s32.totalorder %s213, %s214
      %p226 = scmp.eq.s32.totalorder %s31, 1
      %p227 = por %p225, %p226
      %p229 = scmp.ne.s32.totalorder %s214, %s228
      %p230 = scmp.eq.s32.totalorder %s31, 0
      %p231 = por %p229, %p230
      %s233 = sadd.s32 %s232, 1
      %p236 = scmp.eq.s32.totalorder %s25, 1
      %p237 = scmp.ne.s32.totalorder %s232, %s234
      %p238 = scmp.eq.s32.totalorder %s25, 0
      %p239 = por %p237, %p238
      %p240 = scmp.ne.s32.totalorder %s232, %s234
      %p241 = scmp.eq.s32.totalorder %s30, 1
      %p242 = por %p240, %p241
      %p243 = scmp.ne.s32.totalorder %s234, %s235
      %p244 = scmp.eq.s32.totalorder %s30, 0
      %p245 = por %p243, %p244
      %p246 = scmp.ne.s32.totalorder %s234, %s235
      %p247 = scmp.eq.s32.totalorder %s31, 1
      %p248 = por %p246, %p247
      %p250 = scmp.ne.s32.totalorder %s235, %s249
      %p251 = scmp.eq.s32.totalorder %s31, 0
      %p252 = por %p250, %p251
      %s254 = sadd.s32 %s253, 1
      %p257 = scmp.eq.s32.totalorder %s25, 1
      %p258 = scmp.ne.s32.totalorder %s253, %s255
      %p259 = scmp.eq.s32.totalorder %s25, 0
      %p260 = por %p258, %p259
      %p261 = scmp.ne.s32.totalorder %s253, %s255
      %p262 = scmp.eq.s32.totalorder %s30, 1
      %p263 = por %p261, %p262
      %p264 = scmp.ne.s32.totalorder %s255, %s256
      %p265 = scmp.eq.s32.totalorder %s30, 0
      %p266 = por %p264, %p265
      %p267 = scmp.ne.s32.totalorder %s255, %s256
      %p268 = scmp.eq.s32.totalorder %s31, 1
      %p269 = por %p267, %p268
      %p271 = scmp.ne.s32.totalorder %s256, %s270
      %p272 = scmp.eq.s32.totalorder %s31, 0
      %p273 = por %p271, %p272
      %s275 = sadd.s32 %s274, 1
      %p278 = scmp.eq.s32.totalorder %s25, 1
      %p279 = scmp.ne.s32.totalorder %s274, %s276
      %p280 = scmp.eq.s32.totalorder %s25, 0
      %p281 = por %p279, %p280
      %p282 = scmp.ne.s32.totalorder %s274, %s276
      %p283 = scmp.eq.s32.totalorder %s30, 1
      %p284 = por %p282, %p283
      %p285 = scmp.ne.s32.totalorder %s276, %s277
      %p286 = scmp.eq.s32.totalorder %s30, 0
      %p287 = por %p285, %p286
      %p288 = scmp.ne.s32.totalorder %s276, %s277
      %p289 = scmp.eq.s32.totalorder %s31, 1
      %p290 = por %p288, %p289
      %p292 = scmp.ne.s32.totalorder %s277, %s291
      %p293 = scmp.eq.s32.totalorder %s31, 0
      %p294 = por %p292, %p293
      %s296 = sadd.s32 %s295, 1
      %p299 = scmp.eq.s32.totalorder %s25, 1
      %p300 = scmp.ne.s32.totalorder %s295, %s297
      %p301 = scmp.eq.s32.totalorder %s25, 0
      %p302 = por %p300, %p301
      %p303 = scmp.ne.s32.totalorder %s295, %s297
      %p304 = scmp.eq.s32.totalorder %s30, 1
      %p305 = por %p303, %p304
      %p306 = scmp.ne.s32.totalorder %s297, %s298
      %p307 = scmp.eq.s32.totalorder %s30, 0
      %p308 = por %p306, %p307
      %p309 = scmp.ne.s32.totalorder %s297, %s298
      %p310 = scmp.eq.s32.totalorder %s31, 1
      %p311 = por %p309, %p310
      %p313 = scmp.ne.s32.totalorder %s298, %s312
      %p314 = scmp.eq.s32.totalorder %s31, 0
      %p315 = por %p313, %p314
      %s317 = sadd.s32 %s316, 1
      %p320 = scmp.eq.s32.totalorder %s25, 1
      %p321 = scmp.ne.s32.totalorder %s316, %s318
      %p322 = scmp.eq.s32.totalorder %s25, 0
      %p323 = por %p321, %p322
      %p324 = scmp.ne.s32.totalorder %s316, %s318
      %p325 = scmp.eq.s32.totalorder %s30, 1
      %p326 = por %p324, %p325
      %p327 = scmp.ne.s32.totalorder %s318, %s319
      %p328 = scmp.eq.s32.totalorder %s30, 0
      %p329 = por %p327, %p328
      %p330 = scmp.ne.s32.totalorder %s318, %s319
      %p331 = scmp.eq.s32.totalorder %s31, 1
      %p332 = por %p330, %p331
      %p334 = scmp.ne.s32.totalorder %s319, %s333
      %p335 = scmp.eq.s32.totalorder %s31, 0
      %p336 = por %p334, %p335
      %s338 = sadd.s32 %s337, 1
      %p341 = scmp.eq.s32.totalorder %s25, 1
      %p342 = scmp.ne.s32.totalorder %s337, %s339
      %p343 = scmp.eq.s32.totalorder %s25, 0
      %p344 = por %p342, %p343
      %p345 = scmp.ne.s32.totalorder %s337, %s339
      %p346 = scmp.eq.s32.totalorder %s30, 1
      %p347 = por %p345, %p346
      %p348 = scmp.ne.s32.totalorder %s339, %s340
      %p349 = scmp.eq.s32.totalorder %s30, 0
      %p350 = por %p348, %p349
      %p351 = scmp.ne.s32.totalorder %s339, %s340
      %p352 = scmp.eq.s32.totalorder %s31, 1
      %p353 = por %p351, %p352
      %p355 = scmp.ne.s32.totalorder %s340, %s354
      %p356 = scmp.eq.s32.totalorder %s31, 0
      %p357 = por %p355, %p356
      %s359 = sadd.s32 %s358, 1
      %p362 = scmp.eq.s32.totalorder %s25, 1
      %p363 = scmp.ne.s32.totalorder %s358, %s360
      %p364 = scmp.eq.s32.totalorder %s25, 0
      %p365 = por %p363, %p364
      %p366 = scmp.ne.s32.totalorder %s358, %s360
      %p367 = scmp.eq.s32.totalorder %s30, 1
      %p368 = por %p366, %p367
      %p369 = scmp.ne.s32.totalorder %s360, %s361
      %p370 = scmp.eq.s32.totalorder %s30, 0
      %p371 = por %p369, %p370
      %p372 = scmp.ne.s32.totalorder %s360, %s361
      %p373 = scmp.eq.s32.totalorder %s31, 1
      %p374 = por %p372, %p373
      %p376 = scmp.ne.s32.totalorder %s361, %s375
      %p377 = scmp.eq.s32.totalorder %s31, 0
      %p378 = por %p376, %p377
      %s380 = sadd.s32 %s379, 1
      %p383 = scmp.eq.s32.totalorder %s25, 1
      %p384 = scmp.ne.s32.totalorder %s379, %s381
      %p385 = scmp.eq.s32.totalorder %s25, 0
      %p386 = por %p384, %p385
      %p387 = scmp.ne.s32.totalorder %s379, %s381
      %p388 = scmp.eq.s32.totalorder %s30, 1
      %p389 = por %p387, %p388
      %p390 = scmp.ne.s32.totalorder %s381, %s382
      %p391 = scmp.eq.s32.totalorder %s30, 0
      %p392 = por %p390, %p391
      %p393 = scmp.ne.s32.totalorder %s381, %s382
      %p394 = scmp.eq.s32.totalorder %s31, 1
      %p395 = por %p393, %p394
      %p397 = scmp.ne.s32.totalorder %s382, %s396
      %p398 = scmp.eq.s32.totalorder %s31, 0
      %p399 = por %p397, %p398
      %s400 = ssub.s32 %s25, %s32
      %p401 = scmp.eq.s32.totalorder %s400, 0
      %s403 = sadd.s32 %s402, 1
      %s404 = scalar_select %p401, %s402, %s403
      %p407 = pneg %p401
      %p408 = scmp.eq.s32.totalorder %s25, 1
      %p409 = por %p407, %p408
      %p410 = scmp.ne.s32.totalorder %s402, %s405
      %p411 = scmp.eq.s32.totalorder %s25, 0
      %p412 = por %p410, %p411
      %p413 = scmp.ne.s32.totalorder %s402, %s405
      %p414 = scmp.eq.s32.totalorder %s30, 1
      %p415 = por %p413, %p414
      %p416 = scmp.ne.s32.totalorder %s405, %s406
      %p417 = scmp.eq.s32.totalorder %s30, 0
      %p418 = por %p416, %p417
      %p419 = scmp.ne.s32.totalorder %s405, %s406
      %p420 = scmp.eq.s32.totalorder %s31, 1
      %p421 = por %p419, %p420
      %p423 = scmp.ne.s32.totalorder %s406, %s422
      %p424 = scmp.eq.s32.totalorder %s31, 0
      %p425 = por %p423, %p424
      %p426 = scmp.le.s32.totalorder 1, %s25
      %p427 = scmp.lt.s32.totalorder %s25, 3
      %p428 = pnand %p426, %p427
      %p429 = pneg %p428
      // Predicated region
      $region9: #{tpu_custom_call.1} parent=5 // pred_check
        _
      $region10: #{tpu_custom_call.1} parent=5 // pred_check_branch
        %431 = sbr.rel (%p428) target = $region12
      $region11: #{tpu_custom_call.1} parent=5 // pred_region
        %s432 = ssub.s32 %s25, 1
        // Predicated region
        $region13: #{tpu_custom_call.1} parent=11 // pred_check
          %p433 = pneg %p98
        $region14: #{tpu_custom_call.1} parent=11 // pred_check_branch
          %435 = sbr.rel (%p433) target = $region16
        $region15: #{tpu_custom_call.1} parent=11 // pred_region
          %s437 = ssub.s32 32, 32
          %438 = vsyncadd [#allocation4], %s437
          %s440 = sshll.u32 [#allocation3], 4
          %s441 = int_to_ptr.vmem [resolvable:$true] %s440
          %443 = dma.hbm_to_vmem [thread:$0]  %s2, 32, %s441, [#allocation4]
        $region16: #{tpu_custom_call.1} parent=11 // pred_fallthru
          _
        // Predicated region
        $region17: #{tpu_custom_call.1} parent=11 // pred_check
          %p444 = pneg %p119
        $region18: #{tpu_custom_call.1} parent=11 // pred_check_branch
          %446 = sbr.rel (%p444) target = $region20
        $region19: #{tpu_custom_call.1} parent=11 // pred_region
          _
        $region20: #{tpu_custom_call.1} parent=11 // pred_fallthru
          _
        // Predicated region
        $region21: #{tpu_custom_call.1} parent=11 // pred_check
          %p447 = pneg %p140
        $region22: #{tpu_custom_call.1} parent=11 // pred_check_branch
          %449 = sbr.rel (%p447) target = $region24
        $region23: #{tpu_custom_call.1} parent=11 // pred_region
          _
        $region24: #{tpu_custom_call.1} parent=11 // pred_fallthru
          _
        // Predicated region
        $region25: #{tpu_custom_call.1} parent=11 // pred_check
          %p450 = pneg %p161
        $region26: #{tpu_custom_call.1} parent=11 // pred_check_branch
          %452 = sbr.rel (%p450) target = $region28
        $region27: #{tpu_custom_call.1} parent=11 // pred_region
          _
        $region28: #{tpu_custom_call.1} parent=11 // pred_fallthru
          _
        // Predicated region
        $region29: #{tpu_custom_call.1} parent=11 // pred_check
          %p453 = pneg %p182
        $region30: #{tpu_custom_call.1} parent=11 // pred_check_branch
          %455 = sbr.rel (%p453) target = $region32
        $region31: #{tpu_custom_call.1} parent=11 // pred_region
          _
        $region32: #{tpu_custom_call.1} parent=11 // pred_fallthru
          _
        // Predicated region
        $region33: #{tpu_custom_call.1} parent=11 // pred_check
          %p456 = pneg %p203
        $region34: #{tpu_custom_call.1} parent=11 // pred_check_branch
          %458 = sbr.rel (%p456) target = $region36
        $region35: #{tpu_custom_call.1} parent=11 // pred_region
          _
        $region36: #{tpu_custom_call.1} parent=11 // pred_fallthru
          _
        // Predicated region
        $region37: #{tpu_custom_call.1} parent=11 // pred_check
          %p459 = pneg %p224
        $region38: #{tpu_custom_call.1} parent=11 // pred_check_branch
          %461 = sbr.rel (%p459) target = $region40
        $region39: #{tpu_custom_call.1} parent=11 // pred_region
          _
        $region40: #{tpu_custom_call.1} parent=11 // pred_fallthru
          _
        // Predicated region
        $region41: #{tpu_custom_call.1} parent=11 // pred_check
          %p462 = pneg %p245
        $region42: #{tpu_custom_call.1} parent=11 // pred_check_branch
          %464 = sbr.rel (%p462) target = $region44
        $region43: #{tpu_custom_call.1} parent=11 // pred_region
          _
        $region44: #{tpu_custom_call.1} parent=11 // pred_fallthru
          _
        // Predicated region
        $region45: #{tpu_custom_call.1} parent=11 // pred_check
          %p465 = pneg %p266
        $region46: #{tpu_custom_call.1} parent=11 // pred_check_branch
          %467 = sbr.rel (%p465) target = $region48
        $region47: #{tpu_custom_call.1} parent=11 // pred_region
          _
        $region48: #{tpu_custom_call.1} parent=11 // pred_fallthru
          _
        // Predicated region
        $region49: #{tpu_custom_call.1} parent=11 // pred_check
          %p468 = pneg %p287
        $region50: #{tpu_custom_call.1} parent=11 // pred_check_branch
          %470 = sbr.rel (%p468) target = $region52
        $region51: #{tpu_custom_call.1} parent=11 // pred_region
          _
        $region52: #{tpu_custom_call.1} parent=11 // pred_fallthru
          _
        // Predicated region
        $region53: #{tpu_custom_call.1} parent=11 // pred_check
          %p471 = pneg %p308
        $region54: #{tpu_custom_call.1} parent=11 // pred_check_branch
          %473 = sbr.rel (%p471) target = $region56
        $region55: #{tpu_custom_call.1} parent=11 // pred_region
          _
        $region56: #{tpu_custom_call.1} parent=11 // pred_fallthru
          _
        // Predicated region
        $region57: #{tpu_custom_call.1} parent=11 // pred_check
          %p474 = pneg %p329
        $region58: #{tpu_custom_call.1} parent=11 // pred_check_branch
          %476 = sbr.rel (%p474) target = $region60
        $region59: #{tpu_custom_call.1} parent=11 // pred_region
          _
        $region60: #{tpu_custom_call.1} parent=11 // pred_fallthru
          _
        // Predicated region
        $region61: #{tpu_custom_call.1} parent=11 // pred_check
          %p477 = pneg %p350
        $region62: #{tpu_custom_call.1} parent=11 // pred_check_branch
          %479 = sbr.rel (%p477) target = $region64
        $region63: #{tpu_custom_call.1} parent=11 // pred_region
          _
        $region64: #{tpu_custom_call.1} parent=11 // pred_fallthru
          _
        // Predicated region
        $region65: #{tpu_custom_call.1} parent=11 // pred_check
          %p480 = pneg %p371
        $region66: #{tpu_custom_call.1} parent=11 // pred_check_branch
          %482 = sbr.rel (%p480) target = $region68
        $region67: #{tpu_custom_call.1} parent=11 // pred_region
          %s484 = ssub.s32 128, 128
          %485 = vsyncadd [#allocation6], %s484
          %s486 = sshll.u32 [#allocation5], 4
          %s487 = int_to_ptr.vmem [resolvable:$true] %s486
          %492 = dma.hbm_to_vmem [thread:$0]  %s15, 128, %s487, [#allocation6], 64, 64, 4
        $region68: #{tpu_custom_call.1} parent=11 // pred_fallthru
          _
        // Predicated region
        $region69: #{tpu_custom_call.1} parent=11 // pred_check
          %p493 = pneg %p392
        $region70: #{tpu_custom_call.1} parent=11 // pred_check_branch
          %495 = sbr.rel (%p493) target = $region72
        $region71: #{tpu_custom_call.1} parent=11 // pred_region
          _
        $region72: #{tpu_custom_call.1} parent=11 // pred_fallthru
          _
      $region12: #{tpu_custom_call.1} parent=5 // pred_fallthru
        _
      %p496 = scmp.lt.s32.totalorder %s25, 2
      // Predicated region
      $region73: #{tpu_custom_call.1} parent=5 // pred_check
        %p497 = pneg %p496
      $region74: #{tpu_custom_call.1} parent=5 // pred_check_branch
        %499 = sbr.rel (%p497) target = $region76
      $region75: #{tpu_custom_call.1} parent=5 // pred_region
        // Predicated region
        $region77: #{tpu_custom_call.1} parent=75 // pred_check
          %p500 = pneg %p45
        $region78: #{tpu_custom_call.1} parent=75 // pred_check_branch
          %502 = sbr.rel (%p500) target = $region80
        $region79: #{tpu_custom_call.1} parent=75 // pred_region
          %p503 = scmp.lt.s32.totalorder %s25, 1
          %s504 = scalar_select %p503, %s25, 1
          %s505 = smul.addr %s504, 2
          %s506 = smul.addr %s505, 8
          %s507 = scalar_lea.vmem %s0, %s506
        $region80: #{tpu_custom_call.1} parent=75 // pred_fallthru
          _
        // Predicated region
        $region81: #{tpu_custom_call.1} parent=75 // pred_check
          %p508 = pneg %p71
        $region82: #{tpu_custom_call.1} parent=75 // pred_check_branch
          %510 = sbr.rel (%p508) target = $region84
        $region83: #{tpu_custom_call.1} parent=75 // pred_region
          %p511 = scmp.lt.s32.totalorder %s25, 1
          %s512 = scalar_select %p511, %s25, 1
          %s513 = smul.addr %s512, 8
          %s514 = smul.addr %s513, 8
          %s515 = scalar_lea.vmem %s1, %s514
        $region84: #{tpu_custom_call.1} parent=75 // pred_fallthru
          _
      $region76: #{tpu_custom_call.1} parent=5 // pred_fallthru
        _
      %p516 = scmp.le.s32.totalorder 1, %s25
      %p517 = scmp.lt.s32.totalorder %s25, 3
      %p518 = pnand %p516, %p517
      %p519 = pneg %p518
      // Predicated region
      $region85: #{tpu_custom_call.1} parent=5 // pred_check
        _
      $region86: #{tpu_custom_call.1} parent=5 // pred_check_branch
        %521 = sbr.rel (%p518) target = $region88
      $region87: #{tpu_custom_call.1} parent=5 // pred_region
        %s522 = ssub.s32 %s25, 1
        // Predicated region
        $region89: #{tpu_custom_call.1} parent=87 // pred_check
          %p523 = pneg %p98
        $region90: #{tpu_custom_call.1} parent=87 // pred_check_branch
          %525 = sbr.rel (%p523) target = $region92
        $region91: #{tpu_custom_call.1} parent=87 // pred_region
          %526 = dma.done [#allocation4], 32
        $region92: #{tpu_custom_call.1} parent=87 // pred_fallthru
          _
        // Predicated region
        $region93: #{tpu_custom_call.1} parent=87 // pred_check
          %p527 = pneg %p371
        $region94: #{tpu_custom_call.1} parent=87 // pred_check_branch
          %529 = sbr.rel (%p527) target = $region96
        $region95: #{tpu_custom_call.1} parent=87 // pred_region
          %530 = dma.done [#allocation6], 128
        $region96: #{tpu_custom_call.1} parent=87 // pred_fallthru
          _
        %p531 = scmp.lt.s32.totalorder %s30, 1
        %s532 = scalar_select %p531, %s30, 1
        %s533 = smul.addr %s532, 2
        %s534 = smul.addr %s533, 8
        %s535 = scalar_lea.vmem %s0, %s534
        %p536 = pneg %p51
        %p537 = pneg %p48
        %p538 = scmp.lt.s32.totalorder %s30, 1
        %s539 = scalar_select %p538, %s30, 1
        %s540 = smul.addr %s539, 8
        %s541 = smul.addr %s540, 8
        %s542 = scalar_lea.vmem %s1, %s541
        %p543 = pneg %p77
        %p544 = pneg %p74
        %p545 = pneg %p98
        %p546 = pneg %p95
        %p547 = pneg %p119
        %p548 = pneg %p116
        %p549 = pneg %p140
        %p550 = pneg %p137
        %p551 = pneg %p161
        %p552 = pneg %p158
        %p553 = pneg %p182
        %p554 = pneg %p179
        %p555 = pneg %p203
        %p556 = pneg %p200
        %p557 = pneg %p224
        %p558 = pneg %p221
        %p559 = pneg %p245
        %p560 = pneg %p242
        %p561 = pneg %p266
        %p562 = pneg %p263
        %p563 = pneg %p287
        %p564 = pneg %p284
        %p565 = pneg %p308
        %p566 = pneg %p305
        %p567 = pneg %p329
        %p568 = pneg %p326
        %p569 = pneg %p350
        %p570 = pneg %p347
        %p571 = pneg %p371
        %p572 = pneg %p368
        %p573 = pneg %p392
        %p574 = pneg %p389
        %p575 = pneg %p418
        %p576 = pneg %p415
        %p577 = scmp.lt.s32.totalorder %s30, 1
        %s578 = scalar_select %p577, %s30, 1
        %s579 = smul.addr %s578, 8
        %s580 = smul.addr %s579, 8
        %s581 = scalar_lea.vmem %s17, %s580
        %p582 = scmp.lt.s32.totalorder %s30, 1
        %s583 = scalar_select %p582, %s30, 1
        %s584 = smul.addr %s583, 2
        %s585 = smul.addr %s584, 8
        %s586 = scalar_lea.vmem %s0, %s585
        %p587 = scmp.lt.s32.totalorder %s30, 1
        %s588 = scalar_select %p587, %s30, 1
        %s589 = smul.addr %s588, 8
        %s590 = smul.addr %s589, 8
        %s591 = scalar_lea.vmem %s1, %s590
        %p592 = scmp.lt.s32.totalorder %s30, 1
        %s593 = scalar_select %p592, %s30, 1
        %s594 = smul.addr %s593, 8
        %s595 = smul.addr %s594, 8
        %s596 = scalar_lea.vmem %s17, %s595
        %v598 = vld [vmem:[%s586] sm:$0xff]
        %v599 = vld [vmem:[%s586 + $0x8] sm:$0xff]
        %v600 = vld [vmem:[#allocation3] sm:$0x1]
        %v601 = vld [vmem:[#allocation3 + $0x1] sm:$0x1]
        %vm602 = vcmask 261120
        %v603 = vsel %vm602, %v598, 0.0
        %604 = vadd.xlane.f32.xlu0 %v603
        %v605 = vpop.xlane.xlu0 %604
        %v606 = vsel %vm602, %v599, 0.0
        %607 = vadd.xlane.f32.xlu0 %v606
        %v608 = vpop.xlane.xlu0 %607
        %v609 = vrcp.pop 32.0
        %v610 = vmul.f32 %v605, %v609
        %v611 = vmul.f32 %v608, %v609
        %v612 = vsub.f32 %v598, %v610
        %v613 = vsub.f32 %v599, %v611
        %v614 = vmul.f32 %v612, %v612
        %v615 = vmul.f32 %v613, %v613
        %v616 = vsel %vm602, %v614, 0.0
        %617 = vadd.xlane.f32.xlu0 %v616
        %v618 = vpop.xlane.xlu0 %617
        %v619 = vsel %vm602, %v615, 0.0
        %620 = vadd.xlane.f32.xlu0 %v619
        %v621 = vpop.xlane.xlu0 %620
        %v622 = vmul.f32 %v618, %v609
        %v623 = vmul.f32 %v621, %v609
        %v624 = vadd.f32 %v622, 1e-05
        %v625 = vadd.f32 %v623, 1e-05
        %v626 = vrsqrt.pop %v624
        %v627 = vrsqrt.pop %v625
        %v628 = vmul.f32 %v612, %v626
        %v629 = vmul.f32 %v613, %v627
        %v630 = vlaneseq
        %v631 = vshrl.u32 %v630, 7
        %v632 = vsub.s32 0, %v631
        %v633 = vrot.slane %v600, %v632
        %v634 = vmul.f32 %v628, %v633
        %v635 = vmul.f32 %v629, %v633
        %v636 = vlaneseq
        %v637 = vshrl.u32 %v636, 7
        %v638 = vsub.s32 0, %v637
        %v639 = vrot.slane %v601, %v638
        %v640 = vadd.f32 %v634, %v639
        %v641 = vadd.f32 %v635, %v639
        %v642 = vpack.c.bf16 %v641, %v640
        %v643 = vld [vmem:[%s3] sm:$0xf]
        %v644 = vld [vmem:[%s3 + $0x4] sm:$0xf]
        %v645 = vld [vmem:[%s3 + $0x8] sm:$0xf]
        %v646 = vld [vmem:[%s3 + $0xc] sm:$0xf]
        %v647 = vld [vmem:[%s16] sm:$0x1]
        %v648 = vlaneseq
        %v649 = vshrl.u32 %v648, 7
        %v650 = vsub.s32 0, %v649
        %v651 = vrot.slane %v647, %v650
        %v656 = vunpack.c.l.b16 %v643
        %v657 = vunpack.c.l.b16 %v644
        %v658 = vunpack.c.l.b16 %v645
        %v659 = vunpack.c.l.b16 %v646
        %v660 = vpack.c.b16 %v657, %v656
        %v661 = vpack.c.b16 %v659, %v658
        %v665 = vsel %vm602, %v642, 0
        %667 = vmatprep.subr.bf16.mxu0 0
        %668 = vmatpush1.bf16.msra.mxu0 0
        %669 = vmatprep.subr.bf16.mxu0 0
        %670 = vmatpush1.bf16.msra.mxu0 0
        %671 = vmatprep.subr.bf16.mxu0 0
        %672 = vmatpush1.bf16.msra.mxu0 0
        %673 = vmatprep.subr.bf16.mxu0 0
        %674 = vmatpush1.bf16.msra.mxu0 0
        %675 = vmatprep.subr.bf16.mxu0 0
        %676 = vmatpush1.bf16.msra.mxu0 0
        %677 = vmatprep.subr.bf16.mxu0 0
        %678 = vmatpush1.bf16.msra.mxu0 0
        %679 = vmatprep.subr.bf16.mxu0 0
        %680 = vmatpush1.bf16.msra.mxu0 %v661
        %681 = vmatprep.subr.bf16.mxu0 0
        %682 = vmatpush1.bf16.msra.mxu0 %v660
        %683 = vmatprep.subr.bf16.mxu0 0
        %684 = vmatpush2.bf16.msra.mxu0 0
        %685 = vmatprep.subr.bf16.mxu0 0
        %686 = vmatpush2.bf16.msra.mxu0 0
        %687 = vmatprep.subr.bf16.mxu0 0
        %688 = vmatpush2.bf16.msra.mxu0 0
        %689 = vmatprep.subr.bf16.mxu0 0
        %690 = vmatpush2.bf16.msra.mxu0 0
        %691 = vmatprep.subr.bf16.mxu0 0
        %692 = vmatpush2.bf16.msra.mxu0 0
        %693 = vmatprep.subr.bf16.mxu0 0
        %694 = vmatpush2.bf16.msra.mxu0 0
        %695 = vmatprep.subr.bf16.mxu0 0
        %696 = vmatpush2.bf16.msra.mxu0 0
        %697 = vmatprep.subr.bf16.mxu0 0
        %698 = vmatpush2.bf16.msra.mxu0 0
        %699 = vmatprep.mubr.bf16.mxu0 0
        %700 = vmatmul.mubr.bf16.gmra.mxu0 %v665
        %v701 = vpop.f32.mrf.mxu0
        %v702 = vadd.f32 %v651, %v701
        %v703 = vpop.f32.mrf.mxu0
        %v704 = vpop.f32.mrf.mxu0
        %v705 = vadd.f32 %v651, %v704
        %v706 = vpop.f32.mrf.mxu0
        %707 = vdwg.mxu0
        %v708 = vmul.f32 %v702, 0.5
        %v709 = vmul.f32 %v705, 0.5
        %v710 = vmul.f32 %v702, 0.044715
        %v711 = vmul.f32 %v705, 0.044715
        %v712 = vmul.f32 %v710, %v702
        %v713 = vmul.f32 %v711, %v705
        %v714 = vmul.f32 %v712, %v702
        %v715 = vmul.f32 %v713, %v705
        %v716 = vadd.f32 %v702, %v714
        %v717 = vadd.f32 %v705, %v715
        %v718 = vmul.f32 %v716, 0.7978846
        %v719 = vmul.f32 %v717, 0.7978846
        %v720 = vtanh.pop %v718
        %v721 = vtanh.pop %v719
        %v722 = vadd.f32 %v720, 1.0
        %v723 = vadd.f32 %v721, 1.0
        %v724 = vmul.f32 %v708, %v722
        %v725 = vmul.f32 %v709, %v723
        %v726 = vpack.c.bf16 %v725, %v724
        %v727 = vld [vmem:[%s4] sm:$0xf]
        %v728 = vld [vmem:[%s4 + $0x4] sm:$0xf]
        %v729 = vld [vmem:[%s16 + $0x1] sm:$0x1]
        %v730 = vlaneseq
        %v731 = vshrl.u32 %v730, 7
        %v732 = vsub.s32 0, %v731
        %v733 = vrot.slane %v729, %v732
        %v736 = vunpack.c.l.b16 %v727
        %v737 = vunpack.c.l.b16 %v728
        %v738 = vpack.c.b16 %v737, %v736
        %vm740 = vcmask 130048
        %v742 = vsel %vm740, %v726, 0
        %744 = vmatprep.subr.bf16.mxu0 0
        %745 = vmatpush1.bf16.msra.mxu0 0
        %746 = vmatprep.subr.bf16.mxu0 0
        %747 = vmatpush1.bf16.msra.mxu0 0
        %748 = vmatprep.subr.bf16.mxu0 0
        %749 = vmatpush1.bf16.msra.mxu0 0
        %750 = vmatprep.subr.bf16.mxu0 0
        %751 = vmatpush1.bf16.msra.mxu0 0
        %752 = vmatprep.subr.bf16.mxu0 0
        %753 = vmatpush1.bf16.msra.mxu0 0
        %754 = vmatprep.subr.bf16.mxu0 0
        %755 = vmatpush1.bf16.msra.mxu0 0
        %756 = vmatprep.subr.bf16.mxu0 0
        %757 = vmatpush1.bf16.msra.mxu0 0
        %758 = vmatprep.subr.bf16.mxu0 0
        %759 = vmatpush1.bf16.msra.mxu0 %v738
        %760 = vmatprep.subr.bf16.mxu0 0
        %761 = vmatpush2.bf16.msra.mxu0 0
        %762 = vmatprep.subr.bf16.mxu0 0
        %763 = vmatpush2.bf16.msra.mxu0 0
        %764 = vmatprep.subr.bf16.mxu0 0
        %765 = vmatpush2.bf16.msra.mxu0 0
        %766 = vmatprep.subr.bf16.mxu0 0
        %767 = vmatpush2.bf16.msra.mxu0 0
        %768 = vmatprep.subr.bf16.mxu0 0
        %769 = vmatpush2.bf16.msra.mxu0 0
        %770 = vmatprep.subr.bf16.mxu0 0
        %771 = vmatpush2.bf16.msra.mxu0 0
        %772 = vmatprep.subr.bf16.mxu0 0
        %773 = vmatpush2.bf16.msra.mxu0 0
        %774 = vmatprep.subr.bf16.mxu0 0
        %775 = vmatpush2.bf16.msra.mxu0 0
        %776 = vmatprep.mubr.bf16.mxu0 0
        %777 = vmatmul.mubr.bf16.gmra.mxu0 %v742
        %v778 = vpop.f32.mrf.mxu0
        %v779 = vadd.f32 %v733, %v778
        %v780 = vpop.f32.mrf.mxu0
        %v781 = vpop.f32.mrf.mxu0
        %v782 = vadd.f32 %v733, %v781
        %v783 = vpop.f32.mrf.mxu0
        %784 = vdwg.mxu0
        %v785 = vpack.c.bf16 %v782, %v779
        %v786 = vld [vmem:[%s5] sm:$0xf]
        %v787 = vld [vmem:[%s5 + $0x4] sm:$0xf]
        %v790 = vunpack.c.l.b16 %v786
        %v791 = vunpack.c.l.b16 %v787
        %v792 = vpack.c.b16 %v791, %v790
        %v795 = vsel %vm740, %v785, 0
        %797 = vmatprep.subr.bf16.mxu0 0
        %798 = vmatpush1.bf16.msra.mxu0 0
        %799 = vmatprep.subr.bf16.mxu0 0
        %800 = vmatpush1.bf16.msra.mxu0 0
        %801 = vmatprep.subr.bf16.mxu0 0
        %802 = vmatpush1.bf16.msra.mxu0 0
        %803 = vmatprep.subr.bf16.mxu0 0
        %804 = vmatpush1.bf16.msra.mxu0 0
        %805 = vmatprep.subr.bf16.mxu0 0
        %806 = vmatpush1.bf16.msra.mxu0 0
        %807 = vmatprep.subr.bf16.mxu0 0
        %808 = vmatpush1.bf16.msra.mxu0 0
        %809 = vmatprep.subr.bf16.mxu0 0
        %810 = vmatpush1.bf16.msra.mxu0 0
        %811 = vmatprep.subr.bf16.mxu0 0
        %812 = vmatpush1.bf16.msra.mxu0 %v792
        %813 = vmatprep.subr.bf16.mxu0 0
        %814 = vmatpush2.bf16.msra.mxu0 0
        %815 = vmatprep.subr.bf16.mxu0 0
        %816 = vmatpush2.bf16.msra.mxu0 0
        %817 = vmatprep.subr.bf16.mxu0 0
        %818 = vmatpush2.bf16.msra.mxu0 0
        %819 = vmatprep.subr.bf16.mxu0 0
        %820 = vmatpush2.bf16.msra.mxu0 0
        %821 = vmatprep.subr.bf16.mxu0 0
        %822 = vmatpush2.bf16.msra.mxu0 0
        %823 = vmatprep.subr.bf16.mxu0 0
        %824 = vmatpush2.bf16.msra.mxu0 0
        %825 = vmatprep.subr.bf16.mxu0 0
        %826 = vmatpush2.bf16.msra.mxu0 0
        %827 = vmatprep.subr.bf16.mxu0 0
        %828 = vmatpush2.bf16.msra.mxu0 0
        %829 = vmatprep.mubr.bf16.mxu0 0
        %830 = vmatmul.mubr.bf16.gmra.mxu0 %v795
        %v831 = vpop.f32.mrf.mxu0
        %v832 = vadd.f32 0.0, %v831
        %v833 = vpop.f32.mrf.mxu0
        %v834 = vpop.f32.mrf.mxu0
        %v835 = vadd.f32 0.0, %v834
        %v836 = vpop.f32.mrf.mxu0
        %837 = vdwg.mxu0
        %v838 = vpack.c.bf16 %v835, %v832
        %v840 = vunpack.c.l.b16 %v838
        %v841 = vunpack.c.h.b16 %v838
        %v842 = vpack.c.b16 %v840, %v840
        %v843 = vpack.c.b16 %v841, %v841
        %vm846 = vcmask 125952
        %847 = vst.msk [vmem:[#allocation2] sm:$0xf] %vm846, %v842
        %848 = vst.msk [vmem:[#allocation2 + $0x4] sm:$0xf] %vm846, %v843
        %s849 = scalar_lea.vmem %s5, 8
        %v850 = vld [vmem:[%s849] sm:$0xf]
        %v851 = vld [vmem:[%s849 + $0x4] sm:$0xf]
        %v854 = vunpack.c.l.b16 %v850
        %v855 = vunpack.c.l.b16 %v851
        %v856 = vpack.c.b16 %v855, %v854
        %858 = vmatprep.subr.bf16.mxu0 0
        %859 = vmatpush1.bf16.msra.mxu0 0
        %860 = vmatprep.subr.bf16.mxu0 0
        %861 = vmatpush1.bf16.msra.mxu0 0
        %862 = vmatprep.subr.bf16.mxu0 0
        %863 = vmatpush1.bf16.msra.mxu0 0
        %864 = vmatprep.subr.bf16.mxu0 0
        %865 = vmatpush1.bf16.msra.mxu0 0
        %866 = vmatprep.subr.bf16.mxu0 0
        %867 = vmatpush1.bf16.msra.mxu0 0
        %868 = vmatprep.subr.bf16.mxu0 0
        %869 = vmatpush1.bf16.msra.mxu0 0
        %870 = vmatprep.subr.bf16.mxu0 0
        %871 = vmatpush1.bf16.msra.mxu0 0
        %872 = vmatprep.subr.bf16.mxu0 0
        %873 = vmatpush1.bf16.msra.mxu0 %v856
        %874 = vmatprep.subr.bf16.mxu0 0
        %875 = vmatpush2.bf16.msra.mxu0 0
        %876 = vmatprep.subr.bf16.mxu0 0
        %877 = vmatpush2.bf16.msra.mxu0 0
        %878 = vmatprep.subr.bf16.mxu0 0
        %879 = vmatpush2.bf16.msra.mxu0 0
        %880 = vmatprep.subr.bf16.mxu0 0
        %881 = vmatpush2.bf16.msra.mxu0 0
        %882 = vmatprep.subr.bf16.mxu0 0
        %883 = vmatpush2.bf16.msra.mxu0 0
        %884 = vmatprep.subr.bf16.mxu0 0
        %885 = vmatpush2.bf16.msra.mxu0 0
        %886 = vmatprep.subr.bf16.mxu0 0
        %887 = vmatpush2.bf16.msra.mxu0 0
        %888 = vmatprep.subr.bf16.mxu0 0
        %889 = vmatpush2.bf16.msra.mxu0 0
        %890 = vmatprep.mubr.bf16.mxu0 0
        %891 = vmatmul.mubr.bf16.gmra.mxu0 %v795
        %v892 = vpop.f32.mrf.mxu0
        %v893 = vadd.f32 0.0, %v892
        %v894 = vpop.f32.mrf.mxu0
        %v895 = vpop.f32.mrf.mxu0
        %v896 = vadd.f32 0.0, %v895
        %v897 = vpop.f32.mrf.mxu0
        %898 = vdwg.mxu0
        %v899 = vpack.c.bf16 %v896, %v893
        %v901 = vunpack.c.l.b16 %v899
        %v902 = vunpack.c.h.b16 %v899
        %v903 = vpack.c.b16 %v901, %v901
        %v904 = vpack.c.b16 %v902, %v902
        %907 = vst.msk [vmem:[#allocation2 + $0x8] sm:$0xf] %vm846, %v903
        %908 = vst.msk [vmem:[#allocation2 + $0xc] sm:$0xf] %vm846, %v904
        %s909 = scalar_lea.vmem %s5, 16
        %v910 = vld [vmem:[%s909] sm:$0xf]
        %v911 = vld [vmem:[%s909 + $0x4] sm:$0xf]
        %v914 = vunpack.c.l.b16 %v910
        %v915 = vunpack.c.l.b16 %v911
        %v916 = vpack.c.b16 %v915, %v914
        %918 = vmatprep.subr.bf16.mxu0 0
        %919 = vmatpush1.bf16.msra.mxu0 0
        %920 = vmatprep.subr.bf16.mxu0 0
        %921 = vmatpush1.bf16.msra.mxu0 0
        %922 = vmatprep.subr.bf16.mxu0 0
        %923 = vmatpush1.bf16.msra.mxu0 0
        %924 = vmatprep.subr.bf16.mxu0 0
        %925 = vmatpush1.bf16.msra.mxu0 0
        %926 = vmatprep.subr.bf16.mxu0 0
        %927 = vmatpush1.bf16.msra.mxu0 0
        %928 = vmatprep.subr.bf16.mxu0 0
        %929 = vmatpush1.bf16.msra.mxu0 0
        %930 = vmatprep.subr.bf16.mxu0 0
        %931 = vmatpush1.bf16.msra.mxu0 0
        %932 = vmatprep.subr.bf16.mxu0 0
        %933 = vmatpush1.bf16.msra.mxu0 %v916
        %934 = vmatprep.subr.bf16.mxu0 0
        %935 = vmatpush2.bf16.msra.mxu0 0
        %936 = vmatprep.subr.bf16.mxu0 0
        %937 = vmatpush2.bf16.msra.mxu0 0
        %938 = vmatprep.subr.bf16.mxu0 0
        %939 = vmatpush2.bf16.msra.mxu0 0
        %940 = vmatprep.subr.bf16.mxu0 0
        %941 = vmatpush2.bf16.msra.mxu0 0
        %942 = vmatprep.subr.bf16.mxu0 0
        %943 = vmatpush2.bf16.msra.mxu0 0
        %944 = vmatprep.subr.bf16.mxu0 0
        %945 = vmatpush2.bf16.msra.mxu0 0
        %946 = vmatprep.subr.bf16.mxu0 0
        %947 = vmatpush2.bf16.msra.mxu0 0
        %948 = vmatprep.subr.bf16.mxu0 0
        %949 = vmatpush2.bf16.msra.mxu0 0
        %950 = vmatprep.mubr.bf16.mxu0 0
        %951 = vmatmul.mubr.bf16.gmra.mxu0 %v795
        %v952 = vpop.f32.mrf.mxu0
        %v953 = vadd.f32 0.0, %v952
        %v954 = vpop.f32.mrf.mxu0
        %v955 = vpop.f32.mrf.mxu0
        %v956 = vadd.f32 0.0, %v955
        %v957 = vpop.f32.mrf.mxu0
        %958 = vdwg.mxu0
        %v959 = vpack.c.bf16 %v956, %v953
        %v961 = vunpack.c.l.b16 %v959
        %v962 = vunpack.c.h.b16 %v959
        %v963 = vpack.c.b16 %v961, %v961
        %v964 = vpack.c.b16 %v962, %v962
        %967 = vst.msk [vmem:[#allocation2 + $0x10] sm:$0xf] %vm846, %v963
        %968 = vst.msk [vmem:[#allocation2 + $0x14] sm:$0xf] %vm846, %v964
        %s969 = scalar_lea.vmem %s5, 24
        %v970 = vld [vmem:[%s969] sm:$0xf]
        %v971 = vld [vmem:[%s969 + $0x4] sm:$0xf]
        %v974 = vunpack.c.l.b16 %v970
        %v975 = vunpack.c.l.b16 %v971
        %v976 = vpack.c.b16 %v975, %v974
        %978 = vmatprep.subr.bf16.mxu0 0
        %979 = vmatpush1.bf16.msra.mxu0 0
        %980 = vmatprep.subr.bf16.mxu0 0
        %981 = vmatpush1.bf16.msra.mxu0 0
        %982 = vmatprep.subr.bf16.mxu0 0
        %983 = vmatpush1.bf16.msra.mxu0 0
        %984 = vmatprep.subr.bf16.mxu0 0
        %985 = vmatpush1.bf16.msra.mxu0 0
        %986 = vmatprep.subr.bf16.mxu0 0
        %987 = vmatpush1.bf16.msra.mxu0 0
        %988 = vmatprep.subr.bf16.mxu0 0
        %989 = vmatpush1.bf16.msra.mxu0 0
        %990 = vmatprep.subr.bf16.mxu0 0
        %991 = vmatpush1.bf16.msra.mxu0 0
        %992 = vmatprep.subr.bf16.mxu0 0
        %993 = vmatpush1.bf16.msra.mxu0 %v976
        %994 = vmatprep.subr.bf16.mxu0 0
        %995 = vmatpush2.bf16.msra.mxu0 0
        %996 = vmatprep.subr.bf16.mxu0 0
        %997 = vmatpush2.bf16.msra.mxu0 0
        %998 = vmatprep.subr.bf16.mxu0 0
        %999 = vmatpush2.bf16.msra.mxu0 0
        %1000 = vmatprep.subr.bf16.mxu0 0
        %1001 = vmatpush2.bf16.msra.mxu0 0
        %1002 = vmatprep.subr.bf16.mxu0 0
        %1003 = vmatpush2.bf16.msra.mxu0 0
        %1004 = vmatprep.subr.bf16.mxu0 0
        %1005 = vmatpush2.bf16.msra.mxu0 0
        %1006 = vmatprep.subr.bf16.mxu0 0
        %1007 = vmatpush2.bf16.msra.mxu0 0
        %1008 = vmatprep.subr.bf16.mxu0 0
        %1009 = vmatpush2.bf16.msra.mxu0 0
        %1010 = vmatprep.mubr.bf16.mxu0 0
        %1011 = vmatmul.mubr.bf16.gmra.mxu0 %v795
        %v1012 = vpop.f32.mrf.mxu0
        %v1013 = vadd.f32 0.0, %v1012
        %v1014 = vpop.f32.mrf.mxu0
        %v1015 = vpop.f32.mrf.mxu0
        %v1016 = vadd.f32 0.0, %v1015
        %v1017 = vpop.f32.mrf.mxu0
        %1018 = vdwg.mxu0
        %v1019 = vpack.c.bf16 %v1016, %v1013
        %v1021 = vunpack.c.l.b16 %v1019
        %v1022 = vunpack.c.h.b16 %v1019
        %v1023 = vpack.c.b16 %v1021, %v1021
        %v1024 = vpack.c.b16 %v1022, %v1022
        %1027 = vst.msk [vmem:[#allocation2 + $0x18] sm:$0xf] %vm846, %v1023
        %1028 = vst.msk [vmem:[#allocation2 + $0x1c] sm:$0xf] %vm846, %v1024
        %s1029 = scalar_lea.vmem %s5, 32
        %v1030 = vld [vmem:[%s1029] sm:$0xf]
        %v1031 = vld [vmem:[%s1029 + $0x4] sm:$0xf]
        %v1034 = vunpack.c.l.b16 %v1030
        %v1035 = vunpack.c.l.b16 %v1031
        %v1036 = vpack.c.b16 %v1035, %v1034
        %1038 = vmatprep.subr.bf16.mxu0 0
        %1039 = vmatpush1.bf16.msra.mxu0 0
        %1040 = vmatprep.subr.bf16.mxu0 0
        %1041 = vmatpush1.bf16.msra.mxu0 0
        %1042 = vmatprep.subr.bf16.mxu0 0
        %1043 = vmatpush1.bf16.msra.mxu0 0
        %1044 = vmatprep.subr.bf16.mxu0 0
        %1045 = vmatpush1.bf16.msra.mxu0 0
        %1046 = vmatprep.subr.bf16.mxu0 0
        %1047 = vmatpush1.bf16.msra.mxu0 0
        %1048 = vmatprep.subr.bf16.mxu0 0
        %1049 = vmatpush1.bf16.msra.mxu0 0
        %1050 = vmatprep.subr.bf16.mxu0 0
        %1051 = vmatpush1.bf16.msra.mxu0 0
        %1052 = vmatprep.subr.bf16.mxu0 0
        %1053 = vmatpush1.bf16.msra.mxu0 %v1036
        %1054 = vmatprep.subr.bf16.mxu0 0
        %1055 = vmatpush2.bf16.msra.mxu0 0
        %1056 = vmatprep.subr.bf16.mxu0 0
        %1057 = vmatpush2.bf16.msra.mxu0 0
        %1058 = vmatprep.subr.bf16.mxu0 0
        %1059 = vmatpush2.bf16.msra.mxu0 0
        %1060 = vmatprep.subr.bf16.mxu0 0
        %1061 = vmatpush2.bf16.msra.mxu0 0
        %1062 = vmatprep.subr.bf16.mxu0 0
        %1063 = vmatpush2.bf16.msra.mxu0 0
        %1064 = vmatprep.subr.bf16.mxu0 0
        %1065 = vmatpush2.bf16.msra.mxu0 0
        %1066 = vmatprep.subr.bf16.mxu0 0
        %1067 = vmatpush2.bf16.msra.mxu0 0
        %1068 = vmatprep.subr.bf16.mxu0 0
        %1069 = vmatpush2.bf16.msra.mxu0 0
        %1070 = vmatprep.mubr.bf16.mxu0 0
        %1071 = vmatmul.mubr.bf16.gmra.mxu0 %v795
        %v1072 = vpop.f32.mrf.mxu0
        %v1073 = vadd.f32 0.0, %v1072
        %v1074 = vpop.f32.mrf.mxu0
        %v1075 = vpop.f32.mrf.mxu0
        %v1076 = vadd.f32 0.0, %v1075
        %v1077 = vpop.f32.mrf.mxu0
        %1078 = vdwg.mxu0
        %v1079 = vpack.c.bf16 %v1076, %v1073
        %v1081 = vunpack.c.l.b16 %v1079
        %v1082 = vunpack.c.h.b16 %v1079
        %v1083 = vpack.c.b16 %v1081, %v1081
        %v1084 = vpack.c.b16 %v1082, %v1082
        %1087 = vst.msk [vmem:[#allocation2 + $0x20] sm:$0xf] %vm846, %v1083
        %1088 = vst.msk [vmem:[#allocation2 + $0x24] sm:$0xf] %vm846, %v1084
        %s1089 = scalar_lea.vmem %s5, 40
        %v1090 = vld [vmem:[%s1089] sm:$0xf]
        %v1091 = vld [vmem:[%s1089 + $0x4] sm:$0xf]
        %v1094 = vunpack.c.l.b16 %v1090
        %v1095 = vunpack.c.l.b16 %v1091
        %v1096 = vpack.c.b16 %v1095, %v1094
        %1098 = vmatprep.subr.bf16.mxu0 0
        %1099 = vmatpush1.bf16.msra.mxu0 0
        %1100 = vmatprep.subr.bf16.mxu0 0
        %1101 = vmatpush1.bf16.msra.mxu0 0
        %1102 = vmatprep.subr.bf16.mxu0 0
        %1103 = vmatpush1.bf16.msra.mxu0 0
        %1104 = vmatprep.subr.bf16.mxu0 0
        %1105 = vmatpush1.bf16.msra.mxu0 0
        %1106 = vmatprep.subr.bf16.mxu0 0
        %1107 = vmatpush1.bf16.msra.mxu0 0
        %1108 = vmatprep.subr.bf16.mxu0 0
        %1109 = vmatpush1.bf16.msra.mxu0 0
        %1110 = vmatprep.subr.bf16.mxu0 0
        %1111 = vmatpush1.bf16.msra.mxu0 0
        %1112 = vmatprep.subr.bf16.mxu0 0
        %1113 = vmatpush1.bf16.msra.mxu0 %v1096
        %1114 = vmatprep.subr.bf16.mxu0 0
        %1115 = vmatpush2.bf16.msra.mxu0 0
        %1116 = vmatprep.subr.bf16.mxu0 0
        %1117 = vmatpush2.bf16.msra.mxu0 0
        %1118 = vmatprep.subr.bf16.mxu0 0
        %1119 = vmatpush2.bf16.msra.mxu0 0
        %1120 = vmatprep.subr.bf16.mxu0 0
        %1121 = vmatpush2.bf16.msra.mxu0 0
        %1122 = vmatprep.subr.bf16.mxu0 0
        %1123 = vmatpush2.bf16.msra.mxu0 0
        %1124 = vmatprep.subr.bf16.mxu0 0
        %1125 = vmatpush2.bf16.msra.mxu0 0
        %1126 = vmatprep.subr.bf16.mxu0 0
        %1127 = vmatpush2.bf16.msra.mxu0 0
        %1128 = vmatprep.subr.bf16.mxu0 0
        %1129 = vmatpush2.bf16.msra.mxu0 0
        %1130 = vmatprep.mubr.bf16.mxu0 0
        %1131 = vmatmul.mubr.bf16.gmra.mxu0 %v795
        %v1132 = vpop.f32.mrf.mxu0
        %v1133 = vadd.f32 0.0, %v1132
        %v1134 = vpop.f32.mrf.mxu0
        %v1135 = vpop.f32.mrf.mxu0
        %v1136 = vadd.f32 0.0, %v1135
        %v1137 = vpop.f32.mrf.mxu0
        %1138 = vdwg.mxu0
        %v1139 = vpack.c.bf16 %v1136, %v1133
        %v1141 = vunpack.c.l.b16 %v1139
        %v1142 = vunpack.c.h.b16 %v1139
        %v1143 = vpack.c.b16 %v1141, %v1141
        %v1144 = vpack.c.b16 %v1142, %v1142
        %1147 = vst.msk [vmem:[#allocation2 + $0x28] sm:$0xf] %vm846, %v1143
        %1148 = vst.msk [vmem:[#allocation2 + $0x2c] sm:$0xf] %vm846, %v1144
        %s1149 = scalar_lea.vmem %s5, 48
        %v1150 = vld [vmem:[%s1149] sm:$0xf]
        %v1151 = vld [vmem:[%s1149 + $0x4] sm:$0xf]
        %v1154 = vunpack.c.l.b16 %v1150
        %v1155 = vunpack.c.l.b16 %v1151
        %v1156 = vpack.c.b16 %v1155, %v1154
        %1158 = vmatprep.subr.bf16.mxu0 0
        %1159 = vmatpush1.bf16.msra.mxu0 0
        %1160 = vmatprep.subr.bf16.mxu0 0
        %1161 = vmatpush1.bf16.msra.mxu0 0
        %1162 = vmatprep.subr.bf16.mxu0 0
        %1163 = vmatpush1.bf16.msra.mxu0 0
        %1164 = vmatprep.subr.bf16.mxu0 0
        %1165 = vmatpush1.bf16.msra.mxu0 0
        %1166 = vmatprep.subr.bf16.mxu0 0
        %1167 = vmatpush1.bf16.msra.mxu0 0
        %1168 = vmatprep.subr.bf16.mxu0 0
        %1169 = vmatpush1.bf16.msra.mxu0 0
        %1170 = vmatprep.subr.bf16.mxu0 0
        %1171 = vmatpush1.bf16.msra.mxu0 0
        %1172 = vmatprep.subr.bf16.mxu0 0
        %1173 = vmatpush1.bf16.msra.mxu0 %v1156
        %1174 = vmatprep.subr.bf16.mxu0 0
        %1175 = vmatpush2.bf16.msra.mxu0 0
        %1176 = vmatprep.subr.bf16.mxu0 0
        %1177 = vmatpush2.bf16.msra.mxu0 0
        %1178 = vmatprep.subr.bf16.mxu0 0
        %1179 = vmatpush2.bf16.msra.mxu0 0
        %1180 = vmatprep.subr.bf16.mxu0 0
        %1181 = vmatpush2.bf16.msra.mxu0 0
        %1182 = vmatprep.subr.bf16.mxu0 0
        %1183 = vmatpush2.bf16.msra.mxu0 0
        %1184 = vmatprep.subr.bf16.mxu0 0
        %1185 = vmatpush2.bf16.msra.mxu0 0
        %1186 = vmatprep.subr.bf16.mxu0 0
        %1187 = vmatpush2.bf16.msra.mxu0 0
        %1188 = vmatprep.subr.bf16.mxu0 0
        %1189 = vmatpush2.bf16.msra.mxu0 0
        %1190 = vmatprep.mubr.bf16.mxu0 0
        %1191 = vmatmul.mubr.bf16.gmra.mxu0 %v795
        %v1192 = vpop.f32.mrf.mxu0
        %v1193 = vadd.f32 0.0, %v1192
        %v1194 = vpop.f32.mrf.mxu0
        %v1195 = vpop.f32.mrf.mxu0
        %v1196 = vadd.f32 0.0, %v1195
        %v1197 = vpop.f32.mrf.mxu0
        %1198 = vdwg.mxu0
        %v1199 = vpack.c.bf16 %v1196, %v1193
        %v1201 = vunpack.c.l.b16 %v1199
        %v1202 = vunpack.c.h.b16 %v1199
        %v1203 = vpack.c.b16 %v1201, %v1201
        %v1204 = vpack.c.b16 %v1202, %v1202
        %1207 = vst.msk [vmem:[#allocation2 + $0x30] sm:$0xf] %vm846, %v1203
        %1208 = vst.msk [vmem:[#allocation2 + $0x34] sm:$0xf] %vm846, %v1204
        %s1209 = scalar_lea.vmem %s5, 56
        %v1210 = vld [vmem:[%s1209] sm:$0xf]
        %v1211 = vld [vmem:[%s1209 + $0x4] sm:$0xf]
        %v1214 = vunpack.c.l.b16 %v1210
        %v1215 = vunpack.c.l.b16 %v1211
        %v1216 = vpack.c.b16 %v1215, %v1214
        %1218 = vmatprep.subr.bf16.mxu0 0
        %1219 = vmatpush1.bf16.msra.mxu0 0
        %1220 = vmatprep.subr.bf16.mxu0 0
        %1221 = vmatpush1.bf16.msra.mxu0 0
        %1222 = vmatprep.subr.bf16.mxu0 0
        %1223 = vmatpush1.bf16.msra.mxu0 0
        %1224 = vmatprep.subr.bf16.mxu0 0
        %1225 = vmatpush1.bf16.msra.mxu0 0
        %1226 = vmatprep.subr.bf16.mxu0 0
        %1227 = vmatpush1.bf16.msra.mxu0 0
        %1228 = vmatprep.subr.bf16.mxu0 0
        %1229 = vmatpush1.bf16.msra.mxu0 0
        %1230 = vmatprep.subr.bf16.mxu0 0
        %1231 = vmatpush1.bf16.msra.mxu0 0
        %1232 = vmatprep.subr.bf16.mxu0 0
        %1233 = vmatpush1.bf16.msra.mxu0 %v1216
        %1234 = vmatprep.subr.bf16.mxu0 0
        %1235 = vmatpush2.bf16.msra.mxu0 0
        %1236 = vmatprep.subr.bf16.mxu0 0
        %1237 = vmatpush2.bf16.msra.mxu0 0
        %1238 = vmatprep.subr.bf16.mxu0 0
        %1239 = vmatpush2.bf16.msra.mxu0 0
        %1240 = vmatprep.subr.bf16.mxu0 0
        %1241 = vmatpush2.bf16.msra.mxu0 0
        %1242 = vmatprep.subr.bf16.mxu0 0
        %1243 = vmatpush2.bf16.msra.mxu0 0
        %1244 = vmatprep.subr.bf16.mxu0 0
        %1245 = vmatpush2.bf16.msra.mxu0 0
        %1246 = vmatprep.subr.bf16.mxu0 0
        %1247 = vmatpush2.bf16.msra.mxu0 0
        %1248 = vmatprep.subr.bf16.mxu0 0
        %1249 = vmatpush2.bf16.msra.mxu0 0
        %1250 = vmatprep.mubr.bf16.mxu0 0
        %1251 = vmatmul.mubr.bf16.gmra.mxu0 %v795
        %v1252 = vpop.f32.mrf.mxu0
        %v1253 = vadd.f32 0.0, %v1252
        %v1254 = vpop.f32.mrf.mxu0
        %v1255 = vpop.f32.mrf.mxu0
        %v1256 = vadd.f32 0.0, %v1255
        %v1257 = vpop.f32.mrf.mxu0
        %1258 = vdwg.mxu0
        %v1259 = vpack.c.bf16 %v1256, %v1253
        %v1261 = vunpack.c.l.b16 %v1259
        %v1262 = vunpack.c.h.b16 %v1259
        %v1263 = vpack.c.b16 %v1261, %v1261
        %v1264 = vpack.c.b16 %v1262, %v1262
        %1267 = vst.msk [vmem:[#allocation2 + $0x38] sm:$0xf] %vm846, %v1263
        %1268 = vst.msk [vmem:[#allocation2 + $0x3c] sm:$0xf] %vm846, %v1264
        %s1269 = scalar_lea.vmem %s5, 64
        %v1270 = vld [vmem:[%s1269] sm:$0xf]
        %v1271 = vld [vmem:[%s1269 + $0x4] sm:$0xf]
        %v1274 = vunpack.c.l.b16 %v1270
        %v1275 = vunpack.c.l.b16 %v1271
        %v1276 = vpack.c.b16 %v1275, %v1274
        %1278 = vmatprep.subr.bf16.mxu0 0
        %1279 = vmatpush1.bf16.msra.mxu0 0
        %1280 = vmatprep.subr.bf16.mxu0 0
        %1281 = vmatpush1.bf16.msra.mxu0 0
        %1282 = vmatprep.subr.bf16.mxu0 0
        %1283 = vmatpush1.bf16.msra.mxu0 0
        %1284 = vmatprep.subr.bf16.mxu0 0
        %1285 = vmatpush1.bf16.msra.mxu0 0
        %1286 = vmatprep.subr.bf16.mxu0 0
        %1287 = vmatpush1.bf16.msra.mxu0 0
        %1288 = vmatprep.subr.bf16.mxu0 0
        %1289 = vmatpush1.bf16.msra.mxu0 0
        %1290 = vmatprep.subr.bf16.mxu0 0
        %1291 = vmatpush1.bf16.msra.mxu0 0
        %1292 = vmatprep.subr.bf16.mxu0 0
        %1293 = vmatpush1.bf16.msra.mxu0 %v1276
        %1294 = vmatprep.subr.bf16.mxu0 0
        %1295 = vmatpush2.bf16.msra.mxu0 0
        %1296 = vmatprep.subr.bf16.mxu0 0
        %1297 = vmatpush2.bf16.msra.mxu0 0
        %1298 = vmatprep.subr.bf16.mxu0 0
        %1299 = vmatpush2.bf16.msra.mxu0 0
        %1300 = vmatprep.subr.bf16.mxu0 0
        %1301 = vmatpush2.bf16.msra.mxu0 0
        %1302 = vmatprep.subr.bf16.mxu0 0
        %1303 = vmatpush2.bf16.msra.mxu0 0
        %1304 = vmatprep.subr.bf16.mxu0 0
        %1305 = vmatpush2.bf16.msra.mxu0 0
        %1306 = vmatprep.subr.bf16.mxu0 0
        %1307 = vmatpush2.bf16.msra.mxu0 0
        %1308 = vmatprep.subr.bf16.mxu0 0
        %1309 = vmatpush2.bf16.msra.mxu0 0
        %1310 = vmatprep.mubr.bf16.mxu0 0
        %1311 = vmatmul.mubr.bf16.gmra.mxu0 %v795
        %v1312 = vpop.f32.mrf.mxu0
        %v1313 = vadd.f32 0.0, %v1312
        %v1314 = vpop.f32.mrf.mxu0
        %v1315 = vpop.f32.mrf.mxu0
        %v1316 = vadd.f32 0.0, %v1315
        %v1317 = vpop.f32.mrf.mxu0
        %1318 = vdwg.mxu0
        %v1319 = vpack.c.bf16 %v1316, %v1313
        %v1321 = vunpack.c.l.b16 %v1319
        %v1322 = vunpack.c.h.b16 %v1319
        %v1323 = vpack.c.b16 %v1321, %v1321
        %v1324 = vpack.c.b16 %v1322, %v1322
        %1327 = vst.msk [vmem:[#allocation2 + $0x40] sm:$0xf] %vm846, %v1323
        %1328 = vst.msk [vmem:[#allocation2 + $0x44] sm:$0xf] %vm846, %v1324
        %v1329 = vld [vmem:[%s7] sm:$0xff]
        %v1330 = vld [vmem:[%s7 + $0x8] sm:$0xff]
        %v1331 = vld [vmem:[%s7 + $0x10] sm:$0xff]
        %v1332 = vld [vmem:[%s7 + $0x18] sm:$0xff]
        %v1333 = vld [vmem:[%s7 + $0x20] sm:$0xff]
        %v1334 = vld [vmem:[%s7 + $0x28] sm:$0xff]
        %v1335 = vld [vmem:[%s7 + $0x30] sm:$0xff]
        %v1336 = vld [vmem:[%s7 + $0x38] sm:$0xff]
        %v1337 = vld [vmem:[%s6] sm:$0xff]
        %v1338 = vld [vmem:[%s6 + $0x8] sm:$0xff]
        %v1339 = vld [vmem:[%s6 + $0x10] sm:$0xff]
        %v1340 = vld [vmem:[%s6 + $0x18] sm:$0xff]
        %v1341 = vld [vmem:[%s6 + $0x20] sm:$0xff]
        %v1342 = vld [vmem:[%s6 + $0x28] sm:$0xff]
        %v1343 = vld [vmem:[%s6 + $0x30] sm:$0xff]
        %v1344 = vld [vmem:[%s6 + $0x38] sm:$0xff]
        %v1345 = vld [vmem:[#allocation2] sm:$0xf]
        %v1346 = vld [vmem:[#allocation2 + $0x4] sm:$0xf]
        %v1347 = vld [vmem:[#allocation2 + $0x8] sm:$0xf]
        %v1348 = vld [vmem:[#allocation2 + $0xc] sm:$0xf]
        %v1349 = vld [vmem:[#allocation2 + $0x10] sm:$0xf]
        %v1350 = vld [vmem:[#allocation2 + $0x14] sm:$0xf]
        %v1351 = vld [vmem:[#allocation2 + $0x18] sm:$0xf]
        %v1352 = vld [vmem:[#allocation2 + $0x1c] sm:$0xf]
        %v1353 = vld [vmem:[#allocation2 + $0x20] sm:$0xf]
        %v1354 = vld [vmem:[#allocation2 + $0x24] sm:$0xf]
        %v1355 = vld [vmem:[#allocation2 + $0x28] sm:$0xf]
        %v1356 = vld [vmem:[#allocation2 + $0x2c] sm:$0xf]
        %v1357 = vld [vmem:[#allocation2 + $0x30] sm:$0xf]
        %v1358 = vld [vmem:[#allocation2 + $0x34] sm:$0xf]
        %v1359 = vld [vmem:[#allocation2 + $0x38] sm:$0xf]
        %v1360 = vld [vmem:[#allocation2 + $0x3c] sm:$0xf]
        %v1361 = vld [vmem:[#allocation2 + $0x40] sm:$0xf]
        %v1362 = vld [vmem:[#allocation2 + $0x44] sm:$0xf]
        %v1371 = vunpack.c.l.b16 %v1337
        %v1372 = vunpack.c.h.b16 %v1337
        %v1373 = vunpack.c.l.b16 %v1338
        %v1374 = vunpack.c.h.b16 %v1338
        %v1375 = vunpack.c.l.b16 %v1339
        %v1376 = vunpack.c.h.b16 %v1339
        %v1377 = vunpack.c.l.b16 %v1340
        %v1378 = vunpack.c.h.b16 %v1340
        %v1379 = vunpack.c.l.b16 %v1341
        %v1380 = vunpack.c.h.b16 %v1341
        %v1381 = vunpack.c.l.b16 %v1342
        %v1382 = vunpack.c.h.b16 %v1342
        %v1383 = vunpack.c.l.b16 %v1343
        %v1384 = vunpack.c.h.b16 %v1343
        %v1385 = vunpack.c.l.b16 %v1344
        %v1386 = vunpack.c.h.b16 %v1344
        %v1387 = vpack.c.b16 %v1373, %v1371
        %v1388 = vpack.c.b16 %v1374, %v1372
        %v1389 = vpack.c.b16 %v1377, %v1375
        %v1390 = vpack.c.b16 %v1378, %v1376
        %v1391 = vpack.c.b16 %v1381, %v1379
        %v1392 = vpack.c.b16 %v1382, %v1380
        %v1393 = vpack.c.b16 %v1385, %v1383
        %v1394 = vpack.c.b16 %v1386, %v1384
        %v1417 = vunpack.c.l.b16 %v1345
        %v1418 = vunpack.c.l.b16 %v1346
        %v1419 = vunpack.c.l.b16 %v1347
        %v1420 = vunpack.c.l.b16 %v1348
        %v1421 = vunpack.c.l.b16 %v1349
        %v1422 = vunpack.c.l.b16 %v1350
        %v1423 = vunpack.c.l.b16 %v1351
        %v1424 = vunpack.c.l.b16 %v1352
        %v1425 = vunpack.c.l.b16 %v1353
        %v1426 = vunpack.c.l.b16 %v1354
        %v1427 = vunpack.c.l.b16 %v1355
        %v1428 = vunpack.c.l.b16 %v1356
        %v1429 = vunpack.c.l.b16 %v1357
        %v1430 = vunpack.c.l.b16 %v1358
        %v1431 = vunpack.c.l.b16 %v1359
        %v1432 = vunpack.c.l.b16 %v1360
        %v1433 = vunpack.c.l.b16 %v1361
        %v1434 = vunpack.c.l.b16 %v1362
        %v1435 = vpack.c.b16 %v1418, %v1417
        %v1436 = vpack.c.b16 %v1420, %v1419
        %v1437 = vpack.c.b16 %v1422, %v1421
        %v1438 = vpack.c.b16 %v1424, %v1423
        %v1439 = vpack.c.b16 %v1426, %v1425
        %v1440 = vpack.c.b16 %v1428, %v1427
        %v1441 = vpack.c.b16 %v1430, %v1429
        %v1442 = vpack.c.b16 %v1432, %v1431
        %v1443 = vpack.c.b16 %v1434, %v1433
        %v1454 = vsel %vm740, %v1388, 0
        %v1457 = vsel %vm740, %v1390, 0
        %v1460 = vsel %vm740, %v1392, 0
        %v1463 = vsel %vm740, %v1394, 0
        %1465 = vmatprep.subr.bf16.mxu0 0
        %1466 = vmatpush1.bf16.msra.mxu0 %v1442
        %1467 = vmatprep.subr.bf16.mxu0 0
        %1468 = vmatpush1.bf16.msra.mxu0 %v1441
        %1469 = vmatprep.subr.bf16.mxu0 0
        %1470 = vmatpush1.bf16.msra.mxu0 %v1440
        %1471 = vmatprep.subr.bf16.mxu0 0
        %1472 = vmatpush1.bf16.msra.mxu0 %v1439
        %1473 = vmatprep.subr.bf16.mxu0 0
        %1474 = vmatpush1.bf16.msra.mxu0 %v1438
        %1475 = vmatprep.subr.bf16.mxu0 0
        %1476 = vmatpush1.bf16.msra.mxu0 %v1437
        %1477 = vmatprep.subr.bf16.mxu0 0
        %1478 = vmatpush1.bf16.msra.mxu0 %v1436
        %1479 = vmatprep.subr.bf16.mxu0 0
        %1480 = vmatpush1.bf16.msra.mxu0 %v1435
        %1481 = vmatprep.subr.bf16.mxu0 0
        %1482 = vmatpush2.bf16.msra.mxu0 0
        %1483 = vmatprep.subr.bf16.mxu0 0
        %1484 = vmatpush2.bf16.msra.mxu0 0
        %1485 = vmatprep.subr.bf16.mxu0 0
        %1486 = vmatpush2.bf16.msra.mxu0 0
        %1487 = vmatprep.subr.bf16.mxu0 0
        %1488 = vmatpush2.bf16.msra.mxu0 0
        %1489 = vmatprep.subr.bf16.mxu0 0
        %1490 = vmatpush2.bf16.msra.mxu0 0
        %1491 = vmatprep.subr.bf16.mxu0 0
        %1492 = vmatpush2.bf16.msra.mxu0 0
        %1493 = vmatprep.subr.bf16.mxu0 0
        %1494 = vmatpush2.bf16.msra.mxu0 0
        %1495 = vmatprep.subr.bf16.mxu0 0
        %1496 = vmatpush2.bf16.msra.mxu0 %v1443
        %1497 = vmatprep.mubr.bf16.mxu0 %v1454
        %1498 = vmatmul.mubr.bf16.gmra.mxu0 %v1387
        %v1499 = vpop.f32.mrf.mxu0
        %v1500 = vadd.f32 0.0, %v1499
        %v1501 = vpop.f32.mrf.mxu0
        %v1502 = vpop.f32.mrf.mxu0
        %v1503 = vadd.f32 0.0, %v1502
        %v1504 = vpop.f32.mrf.mxu0
        %1505 = vmatprep.mubr.bf16.mxu0 %v1457
        %1506 = vmatmul.mubr.bf16.gmra.mxu0 %v1389
        %v1507 = vpop.f32.mrf.mxu0
        %v1508 = vadd.f32 0.0, %v1507
        %v1509 = vpop.f32.mrf.mxu0
        %v1510 = vpop.f32.mrf.mxu0
        %v1511 = vadd.f32 0.0, %v1510
        %v1512 = vpop.f32.mrf.mxu0
        %1513 = vmatprep.mubr.bf16.mxu0 %v1460
        %1514 = vmatmul.mubr.bf16.gmra.mxu0 %v1391
        %v1515 = vpop.f32.mrf.mxu0
        %v1516 = vadd.f32 0.0, %v1515
        %v1517 = vpop.f32.mrf.mxu0
        %v1518 = vpop.f32.mrf.mxu0
        %v1519 = vadd.f32 0.0, %v1518
        %v1520 = vpop.f32.mrf.mxu0
        %1521 = vmatprep.mubr.bf16.mxu0 %v1463
        %1522 = vmatmul.mubr.bf16.gmra.mxu0 %v1393
        %v1523 = vpop.f32.mrf.mxu0
        %v1524 = vadd.f32 0.0, %v1523
        %v1525 = vpop.f32.mrf.mxu0
        %v1526 = vpop.f32.mrf.mxu0
        %v1527 = vadd.f32 0.0, %v1526
        %v1528 = vpop.f32.mrf.mxu0
        %1529 = vdwg.mxu0
        %v1530 = vadd.f32 %v1329, %v1500
        %v1531 = vadd.f32 %v1330, %v1503
        %v1532 = vadd.f32 %v1331, %v1508
        %v1533 = vadd.f32 %v1332, %v1511
        %v1534 = vadd.f32 %v1333, %v1516
        %v1535 = vadd.f32 %v1334, %v1519
        %v1536 = vadd.f32 %v1335, %v1524
        %v1537 = vadd.f32 %v1336, %v1527
        %v1538 = vld [vmem:[%s591] sm:$0xff]
        %v1539 = vld [vmem:[%s591 + $0x8] sm:$0xff]
        %v1540 = vld [vmem:[%s591 + $0x10] sm:$0xff]
        %v1541 = vld [vmem:[%s591 + $0x18] sm:$0xff]
        %v1542 = vld [vmem:[%s591 + $0x20] sm:$0xff]
        %v1543 = vld [vmem:[%s591 + $0x28] sm:$0xff]
        %v1544 = vld [vmem:[%s591 + $0x30] sm:$0xff]
        %v1545 = vld [vmem:[%s591 + $0x38] sm:$0xff]
        %v1546 = vpack.c.bf16 %v1531, %v1530
        %v1547 = vpack.c.bf16 %v1533, %v1532
        %v1548 = vpack.c.bf16 %v1535, %v1534
        %v1549 = vpack.c.bf16 %v1537, %v1536
        %v1550 = vld [vmem:[%s8] sm:$0xf]
        %v1551 = vld [vmem:[%s8 + $0x4] sm:$0xf]
        %v1552 = vpack.c.bf16 %v1539, %v1538
        %v1553 = vpack.c.bf16 %v1541, %v1540
        %v1554 = vpack.c.bf16 %v1543, %v1542
        %v1555 = vpack.c.bf16 %v1545, %v1544
        %v1556 = vld [vmem:[%s9] sm:$0xf]
        %v1557 = vld [vmem:[%s9 + $0x4] sm:$0xf]
        %v1560 = vunpack.c.l.b16 %v1556
        %v1561 = vunpack.c.l.b16 %v1557
        %v1562 = vpack.c.b16 %v1561, %v1560
        %v1565 = vsel %vm740, %v1552, 0
        %v1568 = vsel %vm740, %v1553, 0
        %v1571 = vsel %vm740, %v1554, 0
        %v1574 = vsel %vm740, %v1555, 0
        %1576 = vmatprep.subr.bf16.mxu0 0
        %1577 = vmatpush1.bf16.msra.mxu0 0
        %1578 = vmatprep.subr.bf16.mxu0 0
        %1579 = vmatpush1.bf16.msra.mxu0 0
        %1580 = vmatprep.subr.bf16.mxu0 0
        %1581 = vmatpush1.bf16.msra.mxu0 0
        %1582 = vmatprep.subr.bf16.mxu0 0
        %1583 = vmatpush1.bf16.msra.mxu0 0
        %1584 = vmatprep.subr.bf16.mxu0 0
        %1585 = vmatpush1.bf16.msra.mxu0 0
        %1586 = vmatprep.subr.bf16.mxu0 0
        %1587 = vmatpush1.bf16.msra.mxu0 0
        %1588 = vmatprep.subr.bf16.mxu0 0
        %1589 = vmatpush1.bf16.msra.mxu0 0
        %1590 = vmatprep.subr.bf16.mxu0 0
        %1591 = vmatpush1.bf16.msra.mxu0 %v1562
        %1592 = vmatprep.subr.bf16.mxu0 0
        %1593 = vmatpush2.bf16.msra.mxu0 0
        %1594 = vmatprep.subr.bf16.mxu0 0
        %1595 = vmatpush2.bf16.msra.mxu0 0
        %1596 = vmatprep.subr.bf16.mxu0 0
        %1597 = vmatpush2.bf16.msra.mxu0 0
        %1598 = vmatprep.subr.bf16.mxu0 0
        %1599 = vmatpush2.bf16.msra.mxu0 0
        %1600 = vmatprep.subr.bf16.mxu0 0
        %1601 = vmatpush2.bf16.msra.mxu0 0
        %1602 = vmatprep.subr.bf16.mxu0 0
        %1603 = vmatpush2.bf16.msra.mxu0 0
        %1604 = vmatprep.subr.bf16.mxu0 0
        %1605 = vmatpush2.bf16.msra.mxu0 0
        %1606 = vmatprep.subr.bf16.mxu0 0
        %1607 = vmatpush2.bf16.msra.mxu0 0
        %1608 = vmatprep.mubr.bf16.mxu0 0
        %1609 = vmatmul.mubr.bf16.gmra.mxu0 %v1565
        %v1610 = vpop.f32.mrf.mxu0
        %v1611 = vadd.f32 0.0, %v1610
        %v1612 = vpop.f32.mrf.mxu0
        %v1613 = vpop.f32.mrf.mxu0
        %v1614 = vadd.f32 0.0, %v1613
        %v1615 = vpop.f32.mrf.mxu0
        %1616 = vmatprep.mubr.bf16.mxu0 0
        %1617 = vmatmul.mubr.bf16.gmra.mxu0 %v1568
        %v1618 = vpop.f32.mrf.mxu0
        %v1619 = vadd.f32 0.0, %v1618
        %v1620 = vpop.f32.mrf.mxu0
        %v1621 = vpop.f32.mrf.mxu0
        %v1622 = vadd.f32 0.0, %v1621
        %v1623 = vpop.f32.mrf.mxu0
        %1624 = vmatprep.mubr.bf16.mxu0 0
        %1625 = vmatmul.mubr.bf16.gmra.mxu0 %v1571
        %v1626 = vpop.f32.mrf.mxu0
        %v1627 = vadd.f32 0.0, %v1626
        %v1628 = vpop.f32.mrf.mxu0
        %v1629 = vpop.f32.mrf.mxu0
        %v1630 = vadd.f32 0.0, %v1629
        %v1631 = vpop.f32.mrf.mxu0
        %1632 = vmatprep.mubr.bf16.mxu0 0
        %1633 = vmatmul.mubr.bf16.gmra.mxu0 %v1574
        %v1634 = vpop.f32.mrf.mxu0
        %v1635 = vadd.f32 0.0, %v1634
        %v1636 = vpop.f32.mrf.mxu0
        %v1637 = vpop.f32.mrf.mxu0
        %v1638 = vadd.f32 0.0, %v1637
        %v1639 = vpop.f32.mrf.mxu0
        %1640 = vdwg.mxu0
        %v1643 = vunpack.c.l.b16 %v1550
        %v1644 = vunpack.c.l.b16 %v1551
        %v1645 = vpack.c.b16 %v1644, %v1643
        %v1648 = vsel %vm740, %v1546, 0
        %v1651 = vsel %vm740, %v1547, 0
        %v1654 = vsel %vm740, %v1548, 0
        %v1657 = vsel %vm740, %v1549, 0
        %1659 = vmatprep.subr.bf16.mxu0 0
        %1660 = vmatpush1.bf16.msra.mxu0 0
        %1661 = vmatprep.subr.bf16.mxu0 0
        %1662 = vmatpush1.bf16.msra.mxu0 0
        %1663 = vmatprep.subr.bf16.mxu0 0
        %1664 = vmatpush1.bf16.msra.mxu0 0
        %1665 = vmatprep.subr.bf16.mxu0 0
        %1666 = vmatpush1.bf16.msra.mxu0 0
        %1667 = vmatprep.subr.bf16.mxu0 0
        %1668 = vmatpush1.bf16.msra.mxu0 0
        %1669 = vmatprep.subr.bf16.mxu0 0
        %1670 = vmatpush1.bf16.msra.mxu0 0
        %1671 = vmatprep.subr.bf16.mxu0 0
        %1672 = vmatpush1.bf16.msra.mxu0 0
        %1673 = vmatprep.subr.bf16.mxu0 0
        %1674 = vmatpush1.bf16.msra.mxu0 %v1645
        %1675 = vmatprep.subr.bf16.mxu0 0
        %1676 = vmatpush2.bf16.msra.mxu0 0
        %1677 = vmatprep.subr.bf16.mxu0 0
        %1678 = vmatpush2.bf16.msra.mxu0 0
        %1679 = vmatprep.subr.bf16.mxu0 0
        %1680 = vmatpush2.bf16.msra.mxu0 0
        %1681 = vmatprep.subr.bf16.mxu0 0
        %1682 = vmatpush2.bf16.msra.mxu0 0
        %1683 = vmatprep.subr.bf16.mxu0 0
        %1684 = vmatpush2.bf16.msra.mxu0 0
        %1685 = vmatprep.subr.bf16.mxu0 0
        %1686 = vmatpush2.bf16.msra.mxu0 0
        %1687 = vmatprep.subr.bf16.mxu0 0
        %1688 = vmatpush2.bf16.msra.mxu0 0
        %1689 = vmatprep.subr.bf16.mxu0 0
        %1690 = vmatpush2.bf16.msra.mxu0 0
        %1691 = vmatprep.mubr.bf16.mxu0 0
        %1692 = vmatmul.mubr.bf16.gmra.mxu0 %v1648
        %v1693 = vpop.f32.mrf.mxu0
        %v1694 = vadd.f32 %v1611, %v1693
        %v1695 = vpop.f32.mrf.mxu0
        %v1696 = vpop.f32.mrf.mxu0
        %v1697 = vadd.f32 %v1614, %v1696
        %v1698 = vpop.f32.mrf.mxu0
        %1699 = vmatprep.mubr.bf16.mxu0 0
        %1700 = vmatmul.mubr.bf16.gmra.mxu0 %v1651
        %v1701 = vpop.f32.mrf.mxu0
        %v1702 = vadd.f32 %v1619, %v1701
        %v1703 = vpop.f32.mrf.mxu0
        %v1704 = vpop.f32.mrf.mxu0
        %v1705 = vadd.f32 %v1622, %v1704
        %v1706 = vpop.f32.mrf.mxu0
        %1707 = vmatprep.mubr.bf16.mxu0 0
        %1708 = vmatmul.mubr.bf16.gmra.mxu0 %v1654
        %v1709 = vpop.f32.mrf.mxu0
        %v1710 = vadd.f32 %v1627, %v1709
        %v1711 = vpop.f32.mrf.mxu0
        %v1712 = vpop.f32.mrf.mxu0
        %v1713 = vadd.f32 %v1630, %v1712
        %v1714 = vpop.f32.mrf.mxu0
        %1715 = vmatprep.mubr.bf16.mxu0 0
        %1716 = vmatmul.mubr.bf16.gmra.mxu0 %v1657
        %v1717 = vpop.f32.mrf.mxu0
        %v1718 = vadd.f32 %v1635, %v1717
        %v1719 = vpop.f32.mrf.mxu0
        %v1720 = vpop.f32.mrf.mxu0
        %v1721 = vadd.f32 %v1638, %v1720
        %v1722 = vpop.f32.mrf.mxu0
        %1723 = vdwg.mxu0
        %v1724 = vld [vmem:[%s16 + $0x2] sm:$0x1]
        %v1725 = vlaneseq
        %v1726 = vshrl.u32 %v1725, 7
        %v1727 = vsub.s32 0, %v1726
        %v1728 = vrot.slane %v1724, %v1727
        %v1729 = vadd.f32 %v1694, %v1728
        %v1730 = vadd.f32 %v1697, %v1728
        %v1731 = vadd.f32 %v1702, %v1728
        %v1732 = vadd.f32 %v1705, %v1728
        %v1733 = vadd.f32 %v1710, %v1728
        %v1734 = vadd.f32 %v1713, %v1728
        %v1735 = vadd.f32 %v1718, %v1728
        %v1736 = vadd.f32 %v1721, %v1728
        %v1737 = vmul.f32 %v1729, 0.5
        %v1738 = vmul.f32 %v1730, 0.5
        %v1739 = vmul.f32 %v1731, 0.5
        %v1740 = vmul.f32 %v1732, 0.5
        %v1741 = vmul.f32 %v1733, 0.5
        %v1742 = vmul.f32 %v1734, 0.5
        %v1743 = vmul.f32 %v1735, 0.5
        %v1744 = vmul.f32 %v1736, 0.5
        %v1745 = vmul.f32 %v1729, 0.044715
        %v1746 = vmul.f32 %v1730, 0.044715
        %v1747 = vmul.f32 %v1731, 0.044715
        %v1748 = vmul.f32 %v1732, 0.044715
        %v1749 = vmul.f32 %v1733, 0.044715
        %v1750 = vmul.f32 %v1734, 0.044715
        %v1751 = vmul.f32 %v1735, 0.044715
        %v1752 = vmul.f32 %v1736, 0.044715
        %v1753 = vmul.f32 %v1745, %v1729
        %v1754 = vmul.f32 %v1746, %v1730
        %v1755 = vmul.f32 %v1747, %v1731
        %v1756 = vmul.f32 %v1748, %v1732
        %v1757 = vmul.f32 %v1749, %v1733
        %v1758 = vmul.f32 %v1750, %v1734
        %v1759 = vmul.f32 %v1751, %v1735
        %v1760 = vmul.f32 %v1752, %v1736
        %v1761 = vmul.f32 %v1753, %v1729
        %v1762 = vmul.f32 %v1754, %v1730
        %v1763 = vmul.f32 %v1755, %v1731
        %v1764 = vmul.f32 %v1756, %v1732
        %v1765 = vmul.f32 %v1757, %v1733
        %v1766 = vmul.f32 %v1758, %v1734
        %v1767 = vmul.f32 %v1759, %v1735
        %v1768 = vmul.f32 %v1760, %v1736
        %v1769 = vadd.f32 %v1729, %v1761
        %v1770 = vadd.f32 %v1730, %v1762
        %v1771 = vadd.f32 %v1731, %v1763
        %v1772 = vadd.f32 %v1732, %v1764
        %v1773 = vadd.f32 %v1733, %v1765
        %v1774 = vadd.f32 %v1734, %v1766
        %v1775 = vadd.f32 %v1735, %v1767
        %v1776 = vadd.f32 %v1736, %v1768
        %v1777 = vmul.f32 %v1769, 0.7978846
        %v1778 = vmul.f32 %v1770, 0.7978846
        %v1779 = vmul.f32 %v1771, 0.7978846
        %v1780 = vmul.f32 %v1772, 0.7978846
        %v1781 = vmul.f32 %v1773, 0.7978846
        %v1782 = vmul.f32 %v1774, 0.7978846
        %v1783 = vmul.f32 %v1775, 0.7978846
        %v1784 = vmul.f32 %v1776, 0.7978846
        %v1785 = vtanh.pop %v1777
        %v1786 = vtanh.pop %v1778
        %v1787 = vtanh.pop %v1779
        %v1788 = vtanh.pop %v1780
        %v1789 = vtanh.pop %v1781
        %v1790 = vtanh.pop %v1782
        %v1791 = vtanh.pop %v1783
        %v1792 = vtanh.pop %v1784
        %v1793 = vadd.f32 %v1785, 1.0
        %v1794 = vadd.f32 %v1786, 1.0
        %v1795 = vadd.f32 %v1787, 1.0
        %v1796 = vadd.f32 %v1788, 1.0
        %v1797 = vadd.f32 %v1789, 1.0
        %v1798 = vadd.f32 %v1790, 1.0
        %v1799 = vadd.f32 %v1791, 1.0
        %v1800 = vadd.f32 %v1792, 1.0
        %v1801 = vmul.f32 %v1737, %v1793
        %v1802 = vmul.f32 %v1738, %v1794
        %v1803 = vmul.f32 %v1739, %v1795
        %v1804 = vmul.f32 %v1740, %v1796
        %v1805 = vmul.f32 %v1741, %v1797
        %v1806 = vmul.f32 %v1742, %v1798
        %v1807 = vmul.f32 %v1743, %v1799
        %v1808 = vmul.f32 %v1744, %v1800
        %v1809 = vpack.c.bf16 %v1802, %v1801
        %v1810 = vpack.c.bf16 %v1804, %v1803
        %v1811 = vpack.c.bf16 %v1806, %v1805
        %v1812 = vpack.c.bf16 %v1808, %v1807
        %v1813 = vld [vmem:[%s10] sm:$0xf]
        %v1814 = vld [vmem:[%s10 + $0x4] sm:$0xf]
        %v1815 = vld [vmem:[%s16 + $0x3] sm:$0x1]
        %v1816 = vlaneseq
        %v1817 = vshrl.u32 %v1816, 7
        %v1818 = vsub.s32 0, %v1817
        %v1819 = vrot.slane %v1815, %v1818
        %v1822 = vunpack.c.l.b16 %v1813
        %v1823 = vunpack.c.l.b16 %v1814
        %v1824 = vpack.c.b16 %v1823, %v1822
        %v1827 = vsel %vm740, %v1809, 0
        %v1830 = vsel %vm740, %v1810, 0
        %v1833 = vsel %vm740, %v1811, 0
        %v1836 = vsel %vm740, %v1812, 0
        %1838 = vmatprep.subr.bf16.mxu0 0
        %1839 = vmatpush1.bf16.msra.mxu0 0
        %1840 = vmatprep.subr.bf16.mxu0 0
        %1841 = vmatpush1.bf16.msra.mxu0 0
        %1842 = vmatprep.subr.bf16.mxu0 0
        %1843 = vmatpush1.bf16.msra.mxu0 0
        %1844 = vmatprep.subr.bf16.mxu0 0
        %1845 = vmatpush1.bf16.msra.mxu0 0
        %1846 = vmatprep.subr.bf16.mxu0 0
        %1847 = vmatpush1.bf16.msra.mxu0 0
        %1848 = vmatprep.subr.bf16.mxu0 0
        %1849 = vmatpush1.bf16.msra.mxu0 0
        %1850 = vmatprep.subr.bf16.mxu0 0
        %1851 = vmatpush1.bf16.msra.mxu0 0
        %1852 = vmatprep.subr.bf16.mxu0 0
        %1853 = vmatpush1.bf16.msra.mxu0 %v1824
        %1854 = vmatprep.subr.bf16.mxu0 0
        %1855 = vmatpush2.bf16.msra.mxu0 0
        %1856 = vmatprep.subr.bf16.mxu0 0
        %1857 = vmatpush2.bf16.msra.mxu0 0
        %1858 = vmatprep.subr.bf16.mxu0 0
        %1859 = vmatpush2.bf16.msra.mxu0 0
        %1860 = vmatprep.subr.bf16.mxu0 0
        %1861 = vmatpush2.bf16.msra.mxu0 0
        %1862 = vmatprep.subr.bf16.mxu0 0
        %1863 = vmatpush2.bf16.msra.mxu0 0
        %1864 = vmatprep.subr.bf16.mxu0 0
        %1865 = vmatpush2.bf16.msra.mxu0 0
        %1866 = vmatprep.subr.bf16.mxu0 0
        %1867 = vmatpush2.bf16.msra.mxu0 0
        %1868 = vmatprep.subr.bf16.mxu0 0
        %1869 = vmatpush2.bf16.msra.mxu0 0
        %1870 = vmatprep.mubr.bf16.mxu0 0
        %1871 = vmatmul.mubr.bf16.gmra.mxu0 %v1827
        %v1872 = vpop.f32.mrf.mxu0
        %v1873 = vadd.f32 %v1819, %v1872
        %v1874 = vpop.f32.mrf.mxu0
        %v1875 = vpop.f32.mrf.mxu0
        %v1876 = vadd.f32 %v1819, %v1875
        %v1877 = vpop.f32.mrf.mxu0
        %1878 = vmatprep.mubr.bf16.mxu0 0
        %1879 = vmatmul.mubr.bf16.gmra.mxu0 %v1830
        %v1880 = vpop.f32.mrf.mxu0
        %v1881 = vadd.f32 %v1819, %v1880
        %v1882 = vpop.f32.mrf.mxu0
        %v1883 = vpop.f32.mrf.mxu0
        %v1884 = vadd.f32 %v1819, %v1883
        %v1885 = vpop.f32.mrf.mxu0
        %1886 = vmatprep.mubr.bf16.mxu0 0
        %1887 = vmatmul.mubr.bf16.gmra.mxu0 %v1833
        %v1888 = vpop.f32.mrf.mxu0
        %v1889 = vadd.f32 %v1819, %v1888
        %v1890 = vpop.f32.mrf.mxu0
        %v1891 = vpop.f32.mrf.mxu0
        %v1892 = vadd.f32 %v1819, %v1891
        %v1893 = vpop.f32.mrf.mxu0
        %1894 = vmatprep.mubr.bf16.mxu0 0
        %1895 = vmatmul.mubr.bf16.gmra.mxu0 %v1836
        %v1896 = vpop.f32.mrf.mxu0
        %v1897 = vadd.f32 %v1819, %v1896
        %v1898 = vpop.f32.mrf.mxu0
        %v1899 = vpop.f32.mrf.mxu0
        %v1900 = vadd.f32 %v1819, %v1899
        %v1901 = vpop.f32.mrf.mxu0
        %1902 = vdwg.mxu0
        %v1903 = vld [vmem:[%s16 + $0x4] sm:$0x1]
        %v1904 = vld [vmem:[%s16 + $0x5] sm:$0x1]
        %v1905 = vsel %vm740, %v1873, 0.0
        %1906 = vadd.xlane.f32.xlu0 %v1905
        %v1907 = vpop.xlane.xlu0 %1906
        %v1908 = vsel %vm740, %v1876, 0.0
        %1909 = vadd.xlane.f32.xlu0 %v1908
        %v1910 = vpop.xlane.xlu0 %1909
        %v1911 = vsel %vm740, %v1881, 0.0
        %1912 = vadd.xlane.f32.xlu0 %v1911
        %v1913 = vpop.xlane.xlu0 %1912
        %v1914 = vsel %vm740, %v1884, 0.0
        %1915 = vadd.xlane.f32.xlu0 %v1914
        %v1916 = vpop.xlane.xlu0 %1915
        %v1917 = vsel %vm740, %v1889, 0.0
        %1918 = vadd.xlane.f32.xlu0 %v1917
        %v1919 = vpop.xlane.xlu0 %1918
        %v1920 = vsel %vm740, %v1892, 0.0
        %1921 = vadd.xlane.f32.xlu0 %v1920
        %v1922 = vpop.xlane.xlu0 %1921
        %v1923 = vsel %vm740, %v1897, 0.0
        %1924 = vadd.xlane.f32.xlu0 %v1923
        %v1925 = vpop.xlane.xlu0 %1924
        %v1926 = vsel %vm740, %v1900, 0.0
        %1927 = vadd.xlane.f32.xlu0 %v1926
        %v1928 = vpop.xlane.xlu0 %1927
        %v1929 = vrcp.pop 16.0
        %v1930 = vmul.f32 %v1907, %v1929
        %v1931 = vmul.f32 %v1910, %v1929
        %v1932 = vmul.f32 %v1913, %v1929
        %v1933 = vmul.f32 %v1916, %v1929
        %v1934 = vmul.f32 %v1919, %v1929
        %v1935 = vmul.f32 %v1922, %v1929
        %v1936 = vmul.f32 %v1925, %v1929
        %v1937 = vmul.f32 %v1928, %v1929
        %v1938 = vsub.f32 %v1873, %v1930
        %v1939 = vsub.f32 %v1876, %v1931
        %v1940 = vsub.f32 %v1881, %v1932
        %v1941 = vsub.f32 %v1884, %v1933
        %v1942 = vsub.f32 %v1889, %v1934
        %v1943 = vsub.f32 %v1892, %v1935
        %v1944 = vsub.f32 %v1897, %v1936
        %v1945 = vsub.f32 %v1900, %v1937
        %v1946 = vmul.f32 %v1938, %v1938
        %v1947 = vmul.f32 %v1939, %v1939
        %v1948 = vmul.f32 %v1940, %v1940
        %v1949 = vmul.f32 %v1941, %v1941
        %v1950 = vmul.f32 %v1942, %v1942
        %v1951 = vmul.f32 %v1943, %v1943
        %v1952 = vmul.f32 %v1944, %v1944
        %v1953 = vmul.f32 %v1945, %v1945
        %v1954 = vsel %vm740, %v1946, 0.0
        %1955 = vadd.xlane.f32.xlu0 %v1954
        %v1956 = vpop.xlane.xlu0 %1955
        %v1957 = vsel %vm740, %v1947, 0.0
        %1958 = vadd.xlane.f32.xlu0 %v1957
        %v1959 = vpop.xlane.xlu0 %1958
        %v1960 = vsel %vm740, %v1948, 0.0
        %1961 = vadd.xlane.f32.xlu0 %v1960
        %v1962 = vpop.xlane.xlu0 %1961
        %v1963 = vsel %vm740, %v1949, 0.0
        %1964 = vadd.xlane.f32.xlu0 %v1963
        %v1965 = vpop.xlane.xlu0 %1964
        %v1966 = vsel %vm740, %v1950, 0.0
        %1967 = vadd.xlane.f32.xlu0 %v1966
        %v1968 = vpop.xlane.xlu0 %1967
        %v1969 = vsel %vm740, %v1951, 0.0
        %1970 = vadd.xlane.f32.xlu0 %v1969
        %v1971 = vpop.xlane.xlu0 %1970
        %v1972 = vsel %vm740, %v1952, 0.0
        %1973 = vadd.xlane.f32.xlu0 %v1972
        %v1974 = vpop.xlane.xlu0 %1973
        %v1975 = vsel %vm740, %v1953, 0.0
        %1976 = vadd.xlane.f32.xlu0 %v1975
        %v1977 = vpop.xlane.xlu0 %1976
        %v1978 = vmul.f32 %v1956, %v1929
        %v1979 = vmul.f32 %v1959, %v1929
        %v1980 = vmul.f32 %v1962, %v1929
        %v1981 = vmul.f32 %v1965, %v1929
        %v1982 = vmul.f32 %v1968, %v1929
        %v1983 = vmul.f32 %v1971, %v1929
        %v1984 = vmul.f32 %v1974, %v1929
        %v1985 = vmul.f32 %v1977, %v1929
        %v1986 = vadd.f32 %v1978, 1e-05
        %v1987 = vadd.f32 %v1979, 1e-05
        %v1988 = vadd.f32 %v1980, 1e-05
        %v1989 = vadd.f32 %v1981, 1e-05
        %v1990 = vadd.f32 %v1982, 1e-05
        %v1991 = vadd.f32 %v1983, 1e-05
        %v1992 = vadd.f32 %v1984, 1e-05
        %v1993 = vadd.f32 %v1985, 1e-05
        %v1994 = vrsqrt.pop %v1986
        %v1995 = vrsqrt.pop %v1987
        %v1996 = vrsqrt.pop %v1988
        %v1997 = vrsqrt.pop %v1989
        %v1998 = vrsqrt.pop %v1990
        %v1999 = vrsqrt.pop %v1991
        %v2000 = vrsqrt.pop %v1992
        %v2001 = vrsqrt.pop %v1993
        %v2002 = vmul.f32 %v1938, %v1994
        %v2003 = vmul.f32 %v1939, %v1995
        %v2004 = vmul.f32 %v1940, %v1996
        %v2005 = vmul.f32 %v1941, %v1997
        %v2006 = vmul.f32 %v1942, %v1998
        %v2007 = vmul.f32 %v1943, %v1999
        %v2008 = vmul.f32 %v1944, %v2000
        %v2009 = vmul.f32 %v1945, %v2001
        %v2010 = vlaneseq
        %v2011 = vshrl.u32 %v2010, 7
        %v2012 = vsub.s32 0, %v2011
        %v2013 = vrot.slane %v1903, %v2012
        %v2014 = vmul.f32 %v2002, %v2013
        %v2015 = vmul.f32 %v2003, %v2013
        %v2016 = vmul.f32 %v2004, %v2013
        %v2017 = vmul.f32 %v2005, %v2013
        %v2018 = vmul.f32 %v2006, %v2013
        %v2019 = vmul.f32 %v2007, %v2013
        %v2020 = vmul.f32 %v2008, %v2013
        %v2021 = vmul.f32 %v2009, %v2013
        %v2022 = vlaneseq
        %v2023 = vshrl.u32 %v2022, 7
        %v2024 = vsub.s32 0, %v2023
        %v2025 = vrot.slane %v1904, %v2024
        %v2026 = vadd.f32 %v2014, %v2025
        %v2027 = vadd.f32 %v2015, %v2025
        %v2028 = vadd.f32 %v2016, %v2025
        %v2029 = vadd.f32 %v2017, %v2025
        %v2030 = vadd.f32 %v2018, %v2025
        %v2031 = vadd.f32 %v2019, %v2025
        %v2032 = vadd.f32 %v2020, %v2025
        %v2033 = vadd.f32 %v2021, %v2025
        %v2034 = vpack.c.bf16 %v2027, %v2026
        %v2035 = vpack.c.bf16 %v2029, %v2028
        %v2036 = vpack.c.bf16 %v2031, %v2030
        %v2037 = vpack.c.bf16 %v2033, %v2032
        %v2038 = vld [vmem:[%s11] sm:$0xf]
        %v2039 = vld [vmem:[%s11 + $0x4] sm:$0xf]
        %v2042 = vunpack.c.l.b16 %v2038
        %v2043 = vunpack.c.l.b16 %v2039
        %v2044 = vpack.c.b16 %v2043, %v2042
        %v2047 = vsel %vm740, %v2034, 0
        %v2050 = vsel %vm740, %v2035, 0
        %v2053 = vsel %vm740, %v2036, 0
        %v2056 = vsel %vm740, %v2037, 0
        %2058 = vmatprep.subr.bf16.mxu0 0
        %2059 = vmatpush1.bf16.msra.mxu0 0
        %2060 = vmatprep.subr.bf16.mxu0 0
        %2061 = vmatpush1.bf16.msra.mxu0 0
        %2062 = vmatprep.subr.bf16.mxu0 0
        %2063 = vmatpush1.bf16.msra.mxu0 0
        %2064 = vmatprep.subr.bf16.mxu0 0
        %2065 = vmatpush1.bf16.msra.mxu0 0
        %2066 = vmatprep.subr.bf16.mxu0 0
        %2067 = vmatpush1.bf16.msra.mxu0 0
        %2068 = vmatprep.subr.bf16.mxu0 0
        %2069 = vmatpush1.bf16.msra.mxu0 0
        %2070 = vmatprep.subr.bf16.mxu0 0
        %2071 = vmatpush1.bf16.msra.mxu0 0
        %2072 = vmatprep.subr.bf16.mxu0 0
        %2073 = vmatpush1.bf16.msra.mxu0 %v2044
        %2074 = vmatprep.subr.bf16.mxu0 0
        %2075 = vmatpush2.bf16.msra.mxu0 0
        %2076 = vmatprep.subr.bf16.mxu0 0
        %2077 = vmatpush2.bf16.msra.mxu0 0
        %2078 = vmatprep.subr.bf16.mxu0 0
        %2079 = vmatpush2.bf16.msra.mxu0 0
        %2080 = vmatprep.subr.bf16.mxu0 0
        %2081 = vmatpush2.bf16.msra.mxu0 0
        %2082 = vmatprep.subr.bf16.mxu0 0
        %2083 = vmatpush2.bf16.msra.mxu0 0
        %2084 = vmatprep.subr.bf16.mxu0 0
        %2085 = vmatpush2.bf16.msra.mxu0 0
        %2086 = vmatprep.subr.bf16.mxu0 0
        %2087 = vmatpush2.bf16.msra.mxu0 0
        %2088 = vmatprep.subr.bf16.mxu0 0
        %2089 = vmatpush2.bf16.msra.mxu0 0
        %2090 = vmatprep.mubr.bf16.mxu0 0
        %2091 = vmatmul.mubr.bf16.gmra.mxu0 %v2047
        %v2092 = vpop.f32.mrf.mxu0
        %v2093 = vadd.f32 0.0, %v2092
        %v2094 = vpop.f32.mrf.mxu0
        %v2095 = vpop.f32.mrf.mxu0
        %v2096 = vadd.f32 0.0, %v2095
        %v2097 = vpop.f32.mrf.mxu0
        %2098 = vmatprep.mubr.bf16.mxu0 0
        %2099 = vmatmul.mubr.bf16.gmra.mxu0 %v2050
        %v2100 = vpop.f32.mrf.mxu0
        %v2101 = vadd.f32 0.0, %v2100
        %v2102 = vpop.f32.mrf.mxu0
        %v2103 = vpop.f32.mrf.mxu0
        %v2104 = vadd.f32 0.0, %v2103
        %v2105 = vpop.f32.mrf.mxu0
        %2106 = vmatprep.mubr.bf16.mxu0 0
        %2107 = vmatmul.mubr.bf16.gmra.mxu0 %v2053
        %v2108 = vpop.f32.mrf.mxu0
        %v2109 = vadd.f32 0.0, %v2108
        %v2110 = vpop.f32.mrf.mxu0
        %v2111 = vpop.f32.mrf.mxu0
        %v2112 = vadd.f32 0.0, %v2111
        %v2113 = vpop.f32.mrf.mxu0
        %2114 = vmatprep.mubr.bf16.mxu0 0
        %2115 = vmatmul.mubr.bf16.gmra.mxu0 %v2056
        %v2116 = vpop.f32.mrf.mxu0
        %v2117 = vadd.f32 0.0, %v2116
        %v2118 = vpop.f32.mrf.mxu0
        %v2119 = vpop.f32.mrf.mxu0
        %v2120 = vadd.f32 0.0, %v2119
        %v2121 = vpop.f32.mrf.mxu0
        %2122 = vdwg.mxu0
        %v2123 = vld [vmem:[%s16 + $0x6] sm:$0x1]
        %v2124 = vlaneseq
        %v2125 = vshrl.u32 %v2124, 7
        %v2126 = vsub.s32 0, %v2125
        %v2127 = vrot.slane %v2123, %v2126
        %v2128 = vadd.f32 %v2093, %v2127
        %v2129 = vadd.f32 %v2096, %v2127
        %v2130 = vadd.f32 %v2101, %v2127
        %v2131 = vadd.f32 %v2104, %v2127
        %v2132 = vadd.f32 %v2109, %v2127
        %v2133 = vadd.f32 %v2112, %v2127
        %v2134 = vadd.f32 %v2117, %v2127
        %v2135 = vadd.f32 %v2120, %v2127
        %v2136 = vld [vmem:[%s16 + $0x7] sm:$0x1]
        %v2137 = vlaneseq
        %v2138 = vshrl.u32 %v2137, 7
        %v2139 = vsub.s32 0, %v2138
        %v2140 = vrot.slane %v2136, %v2139
        %2142 = vrot.lane.b32.xlu0 %v2140, 16
        %v2143 = vpop.permute.xlu0 %2142
        %v2145 = vadd.f32 %v2093, %v2143
        %v2146 = vadd.f32 %v2096, %v2143
        %v2147 = vadd.f32 %v2101, %v2143
        %v2148 = vadd.f32 %v2104, %v2143
        %v2149 = vadd.f32 %v2109, %v2143
        %v2150 = vadd.f32 %v2112, %v2143
        %v2151 = vadd.f32 %v2117, %v2143
        %v2152 = vadd.f32 %v2120, %v2143
        %v2153 = vld [vmem:[%s16 + $0x8] sm:$0x1]
        %v2154 = vlaneseq
        %v2155 = vshrl.u32 %v2154, 7
        %v2156 = vsub.s32 0, %v2155
        %v2157 = vrot.slane %v2153, %v2156
        %2159 = vrot.lane.b32.xlu0 %v2157, 32
        %v2160 = vpop.permute.xlu0 %2159
        %v2162 = vadd.f32 %v2093, %v2160
        %v2163 = vadd.f32 %v2096, %v2160
        %v2164 = vadd.f32 %v2101, %v2160
        %v2165 = vadd.f32 %v2104, %v2160
        %v2166 = vadd.f32 %v2109, %v2160
        %v2167 = vadd.f32 %v2112, %v2160
        %v2168 = vadd.f32 %v2117, %v2160
        %v2169 = vadd.f32 %v2120, %v2160
        %v2170 = vpack.c.bf16 %v2129, %v2128
        %v2171 = vpack.c.bf16 %v2131, %v2130
        %v2172 = vpack.c.bf16 %v2133, %v2132
        %v2173 = vpack.c.bf16 %v2135, %v2134
        %v2174 = vunpack.c.l.bf16 %v2170
        %v2175 = vunpack.c.h.bf16 %v2170
        %v2176 = vunpack.c.l.bf16 %v2171
        %v2177 = vunpack.c.h.bf16 %v2171
        %v2178 = vunpack.c.l.bf16 %v2172
        %v2179 = vunpack.c.h.bf16 %v2172
        %v2180 = vunpack.c.l.bf16 %v2173
        %v2181 = vunpack.c.h.bf16 %v2173
        %v2182 = vmul.f32 %v2174, %v2174
        %v2183 = vmul.f32 %v2175, %v2175
        %v2184 = vmul.f32 %v2176, %v2176
        %v2185 = vmul.f32 %v2177, %v2177
        %v2186 = vmul.f32 %v2178, %v2178
        %v2187 = vmul.f32 %v2179, %v2179
        %v2188 = vmul.f32 %v2180, %v2180
        %v2189 = vmul.f32 %v2181, %v2181
        %v2190 = vsel %vm740, %v2182, 0.0
        %2191 = vadd.xlane.f32.xlu0 %v2190
        %v2192 = vpop.xlane.xlu0 %2191
        %v2193 = vsel %vm740, %v2183, 0.0
        %2194 = vadd.xlane.f32.xlu0 %v2193
        %v2195 = vpop.xlane.xlu0 %2194
        %v2196 = vsel %vm740, %v2184, 0.0
        %2197 = vadd.xlane.f32.xlu0 %v2196
        %v2198 = vpop.xlane.xlu0 %2197
        %v2199 = vsel %vm740, %v2185, 0.0
        %2200 = vadd.xlane.f32.xlu0 %v2199
        %v2201 = vpop.xlane.xlu0 %2200
        %v2202 = vsel %vm740, %v2186, 0.0
        %2203 = vadd.xlane.f32.xlu0 %v2202
        %v2204 = vpop.xlane.xlu0 %2203
        %v2205 = vsel %vm740, %v2187, 0.0
        %2206 = vadd.xlane.f32.xlu0 %v2205
        %v2207 = vpop.xlane.xlu0 %2206
        %v2208 = vsel %vm740, %v2188, 0.0
        %2209 = vadd.xlane.f32.xlu0 %v2208
        %v2210 = vpop.xlane.xlu0 %2209
        %v2211 = vsel %vm740, %v2189, 0.0
        %2212 = vadd.xlane.f32.xlu0 %v2211
        %v2213 = vpop.xlane.xlu0 %2212
        %v2214 = vmul.f32 %v2192, 0.5
        %v2215 = vmul.f32 %v2195, 0.5
        %v2216 = vmul.f32 %v2198, 0.5
        %v2217 = vmul.f32 %v2201, 0.5
        %v2218 = vmul.f32 %v2204, 0.5
        %v2219 = vmul.f32 %v2207, 0.5
        %v2220 = vmul.f32 %v2210, 0.5
        %v2221 = vmul.f32 %v2213, 0.5
        %v2222 = vld [vmem:[%s12] sm:$0xf]
        %v2223 = vld [vmem:[%s12 + $0x4] sm:$0xf]
        %v2226 = vunpack.c.l.b16 %v2222
        %v2227 = vunpack.c.l.b16 %v2223
        %v2228 = vpack.c.b16 %v2227, %v2226
        %v2231 = vsel %vm740, %v2170, 0
        %v2234 = vsel %vm740, %v2171, 0
        %v2237 = vsel %vm740, %v2172, 0
        %v2240 = vsel %vm740, %v2173, 0
        %2242 = vmatprep.subr.bf16.mxu0 0
        %2243 = vmatpush1.bf16.msra.mxu0 0
        %2244 = vmatprep.subr.bf16.mxu0 0
        %2245 = vmatpush1.bf16.msra.mxu0 0
        %2246 = vmatprep.subr.bf16.mxu0 0
        %2247 = vmatpush1.bf16.msra.mxu0 0
        %2248 = vmatprep.subr.bf16.mxu0 0
        %2249 = vmatpush1.bf16.msra.mxu0 0
        %2250 = vmatprep.subr.bf16.mxu0 0
        %2251 = vmatpush1.bf16.msra.mxu0 0
        %2252 = vmatprep.subr.bf16.mxu0 0
        %2253 = vmatpush1.bf16.msra.mxu0 0
        %2254 = vmatprep.subr.bf16.mxu0 0
        %2255 = vmatpush1.bf16.msra.mxu0 0
        %2256 = vmatprep.subr.bf16.mxu0 0
        %2257 = vmatpush1.bf16.msra.mxu0 %v2228
        %2258 = vmatprep.subr.bf16.mxu0 0
        %2259 = vmatpush2.bf16.msra.mxu0 0
        %2260 = vmatprep.subr.bf16.mxu0 0
        %2261 = vmatpush2.bf16.msra.mxu0 0
        %2262 = vmatprep.subr.bf16.mxu0 0
        %2263 = vmatpush2.bf16.msra.mxu0 0
        %2264 = vmatprep.subr.bf16.mxu0 0
        %2265 = vmatpush2.bf16.msra.mxu0 0
        %2266 = vmatprep.subr.bf16.mxu0 0
        %2267 = vmatpush2.bf16.msra.mxu0 0
        %2268 = vmatprep.subr.bf16.mxu0 0
        %2269 = vmatpush2.bf16.msra.mxu0 0
        %2270 = vmatprep.subr.bf16.mxu0 0
        %2271 = vmatpush2.bf16.msra.mxu0 0
        %2272 = vmatprep.subr.bf16.mxu0 0
        %2273 = vmatpush2.bf16.msra.mxu0 0
        %2274 = vmatprep.mubr.bf16.mxu0 0
        %2275 = vmatmul.mubr.bf16.gmra.mxu0 %v2231
        %v2276 = vpop.f32.mrf.mxu0
        %v2277 = vadd.f32 0.0, %v2276
        %v2278 = vpop.f32.mrf.mxu0
        %v2279 = vpop.f32.mrf.mxu0
        %v2280 = vadd.f32 0.0, %v2279
        %v2281 = vpop.f32.mrf.mxu0
        %2282 = vmatprep.mubr.bf16.mxu0 0
        %2283 = vmatmul.mubr.bf16.gmra.mxu0 %v2234
        %v2284 = vpop.f32.mrf.mxu0
        %v2285 = vadd.f32 0.0, %v2284
        %v2286 = vpop.f32.mrf.mxu0
        %v2287 = vpop.f32.mrf.mxu0
        %v2288 = vadd.f32 0.0, %v2287
        %v2289 = vpop.f32.mrf.mxu0
        %2290 = vmatprep.mubr.bf16.mxu0 0
        %2291 = vmatmul.mubr.bf16.gmra.mxu0 %v2237
        %v2292 = vpop.f32.mrf.mxu0
        %v2293 = vadd.f32 0.0, %v2292
        %v2294 = vpop.f32.mrf.mxu0
        %v2295 = vpop.f32.mrf.mxu0
        %v2296 = vadd.f32 0.0, %v2295
        %v2297 = vpop.f32.mrf.mxu0
        %2298 = vmatprep.mubr.bf16.mxu0 0
        %2299 = vmatmul.mubr.bf16.gmra.mxu0 %v2240
        %v2300 = vpop.f32.mrf.mxu0
        %v2301 = vadd.f32 0.0, %v2300
        %v2302 = vpop.f32.mrf.mxu0
        %v2303 = vpop.f32.mrf.mxu0
        %v2304 = vadd.f32 0.0, %v2303
        %v2305 = vpop.f32.mrf.mxu0
        %2306 = vdwg.mxu0
        %v2307 = vsub.f32 %v2277, %v2214
        %v2308 = vsub.f32 %v2280, %v2215
        %v2309 = vsub.f32 %v2285, %v2216
        %v2310 = vsub.f32 %v2288, %v2217
        %v2311 = vsub.f32 %v2293, %v2218
        %v2312 = vsub.f32 %v2296, %v2219
        %v2313 = vsub.f32 %v2301, %v2220
        %v2314 = vsub.f32 %v2304, %v2221
        %v2315 = vmul.f32 %v2307, 1.442695
        %v2316 = vpow.pop %v2315
        %v2317 = vmul.f32 %v2308, 1.442695
        %v2318 = vpow.pop %v2317
        %v2319 = vmul.f32 %v2309, 1.442695
        %v2320 = vpow.pop %v2319
        %v2321 = vmul.f32 %v2310, 1.442695
        %v2322 = vpow.pop %v2321
        %v2323 = vmul.f32 %v2311, 1.442695
        %v2324 = vpow.pop %v2323
        %v2325 = vmul.f32 %v2312, 1.442695
        %v2326 = vpow.pop %v2325
        %v2327 = vmul.f32 %v2313, 1.442695
        %v2328 = vpow.pop %v2327
        %v2329 = vmul.f32 %v2314, 1.442695
        %v2330 = vpow.pop %v2329
        %v2331 = vmul.f32 %v2316, 0.35355338
        %v2332 = vmul.f32 %v2318, 0.35355338
        %v2333 = vmul.f32 %v2320, 0.35355338
        %v2334 = vmul.f32 %v2322, 0.35355338
        %v2335 = vmul.f32 %v2324, 0.35355338
        %v2336 = vmul.f32 %v2326, 0.35355338
        %v2337 = vmul.f32 %v2328, 0.35355338
        %v2338 = vmul.f32 %v2330, 0.35355338
        %v2339 = vpack.c.bf16 %v2146, %v2145
        %v2340 = vpack.c.bf16 %v2148, %v2147
        %v2341 = vpack.c.bf16 %v2150, %v2149
        %v2342 = vpack.c.bf16 %v2152, %v2151
        %v2343 = vunpack.c.l.bf16 %v2339
        %v2344 = vunpack.c.h.bf16 %v2339
        %v2345 = vunpack.c.l.bf16 %v2340
        %v2346 = vunpack.c.h.bf16 %v2340
        %v2347 = vunpack.c.l.bf16 %v2341
        %v2348 = vunpack.c.h.bf16 %v2341
        %v2349 = vunpack.c.l.bf16 %v2342
        %v2350 = vunpack.c.h.bf16 %v2342
        %v2351 = vmul.f32 %v2343, %v2343
        %v2352 = vmul.f32 %v2344, %v2344
        %v2353 = vmul.f32 %v2345, %v2345
        %v2354 = vmul.f32 %v2346, %v2346
        %v2355 = vmul.f32 %v2347, %v2347
        %v2356 = vmul.f32 %v2348, %v2348
        %v2357 = vmul.f32 %v2349, %v2349
        %v2358 = vmul.f32 %v2350, %v2350
        %2367 = vrot.lane.b32.xlu0 %v2351, 112
        %v2368 = vpop.permute.xlu0 %2367
        %2369 = vrot.lane.b32.xlu0 %v2352, 112
        %v2370 = vpop.permute.xlu0 %2369
        %2371 = vrot.lane.b32.xlu0 %v2353, 112
        %v2372 = vpop.permute.xlu0 %2371
        %2373 = vrot.lane.b32.xlu0 %v2354, 112
        %v2374 = vpop.permute.xlu0 %2373
        %2375 = vrot.lane.b32.xlu0 %v2355, 112
        %v2376 = vpop.permute.xlu0 %2375
        %2377 = vrot.lane.b32.xlu0 %v2356, 112
        %v2378 = vpop.permute.xlu0 %2377
        %2379 = vrot.lane.b32.xlu0 %v2357, 112
        %v2380 = vpop.permute.xlu0 %2379
        %2381 = vrot.lane.b32.xlu0 %v2358, 112
        %v2382 = vpop.permute.xlu0 %2381
        %v2391 = vsel %vm740, %v2368, 0.0
        %2392 = vadd.xlane.f32.xlu0 %v2391
        %v2393 = vpop.xlane.xlu0 %2392
        %v2394 = vsel %vm740, %v2370, 0.0
        %2395 = vadd.xlane.f32.xlu0 %v2394
        %v2396 = vpop.xlane.xlu0 %2395
        %v2397 = vsel %vm740, %v2372, 0.0
        %2398 = vadd.xlane.f32.xlu0 %v2397
        %v2399 = vpop.xlane.xlu0 %2398
        %v2400 = vsel %vm740, %v2374, 0.0
        %2401 = vadd.xlane.f32.xlu0 %v2400
        %v2402 = vpop.xlane.xlu0 %2401
        %v2403 = vsel %vm740, %v2376, 0.0
        %2404 = vadd.xlane.f32.xlu0 %v2403
        %v2405 = vpop.xlane.xlu0 %2404
        %v2406 = vsel %vm740, %v2378, 0.0
        %2407 = vadd.xlane.f32.xlu0 %v2406
        %v2408 = vpop.xlane.xlu0 %2407
        %v2409 = vsel %vm740, %v2380, 0.0
        %2410 = vadd.xlane.f32.xlu0 %v2409
        %v2411 = vpop.xlane.xlu0 %2410
        %v2412 = vsel %vm740, %v2382, 0.0
        %2413 = vadd.xlane.f32.xlu0 %v2412
        %v2414 = vpop.xlane.xlu0 %2413
        %v2415 = vmul.f32 %v2393, 0.5
        %v2416 = vmul.f32 %v2396, 0.5
        %v2417 = vmul.f32 %v2399, 0.5
        %v2418 = vmul.f32 %v2402, 0.5
        %v2419 = vmul.f32 %v2405, 0.5
        %v2420 = vmul.f32 %v2408, 0.5
        %v2421 = vmul.f32 %v2411, 0.5
        %v2422 = vmul.f32 %v2414, 0.5
        %2427 = vrot.lane.b32.xlu0 %v2339, 112
        %v2428 = vpop.permute.xlu0 %2427
        %2429 = vrot.lane.b32.xlu0 %v2340, 112
        %v2430 = vpop.permute.xlu0 %2429
        %2431 = vrot.lane.b32.xlu0 %v2341, 112
        %v2432 = vpop.permute.xlu0 %2431
        %2433 = vrot.lane.b32.xlu0 %v2342, 112
        %v2434 = vpop.permute.xlu0 %2433
        %v2436 = vsel %vm740, %v2428, 0
        %v2439 = vsel %vm740, %v2430, 0
        %v2442 = vsel %vm740, %v2432, 0
        %v2445 = vsel %vm740, %v2434, 0
        %2447 = vmatprep.subr.bf16.mxu0 0
        %2448 = vmatpush1.bf16.msra.mxu0 0
        %2449 = vmatprep.subr.bf16.mxu0 0
        %2450 = vmatpush1.bf16.msra.mxu0 0
        %2451 = vmatprep.subr.bf16.mxu0 0
        %2452 = vmatpush1.bf16.msra.mxu0 0
        %2453 = vmatprep.subr.bf16.mxu0 0
        %2454 = vmatpush1.bf16.msra.mxu0 0
        %2455 = vmatprep.subr.bf16.mxu0 0
        %2456 = vmatpush1.bf16.msra.mxu0 0
        %2457 = vmatprep.subr.bf16.mxu0 0
        %2458 = vmatpush1.bf16.msra.mxu0 0
        %2459 = vmatprep.subr.bf16.mxu0 0
        %2460 = vmatpush1.bf16.msra.mxu0 0
        %2461 = vmatprep.subr.bf16.mxu0 0
        %2462 = vmatpush1.bf16.msra.mxu0 %v2228
        %2463 = vmatprep.subr.bf16.mxu0 0
        %2464 = vmatpush2.bf16.msra.mxu0 0
        %2465 = vmatprep.subr.bf16.mxu0 0
        %2466 = vmatpush2.bf16.msra.mxu0 0
        %2467 = vmatprep.subr.bf16.mxu0 0
        %2468 = vmatpush2.bf16.msra.mxu0 0
        %2469 = vmatprep.subr.bf16.mxu0 0
        %2470 = vmatpush2.bf16.msra.mxu0 0
        %2471 = vmatprep.subr.bf16.mxu0 0
        %2472 = vmatpush2.bf16.msra.mxu0 0
        %2473 = vmatprep.subr.bf16.mxu0 0
        %2474 = vmatpush2.bf16.msra.mxu0 0
        %2475 = vmatprep.subr.bf16.mxu0 0
        %2476 = vmatpush2.bf16.msra.mxu0 0
        %2477 = vmatprep.subr.bf16.mxu0 0
        %2478 = vmatpush2.bf16.msra.mxu0 0
        %2479 = vmatprep.mubr.bf16.mxu0 0
        %2480 = vmatmul.mubr.bf16.gmra.mxu0 %v2436
        %v2481 = vpop.f32.mrf.mxu0
        %v2482 = vadd.f32 0.0, %v2481
        %v2483 = vpop.f32.mrf.mxu0
        %v2484 = vpop.f32.mrf.mxu0
        %v2485 = vadd.f32 0.0, %v2484
        %v2486 = vpop.f32.mrf.mxu0
        %2487 = vmatprep.mubr.bf16.mxu0 0
        %2488 = vmatmul.mubr.bf16.gmra.mxu0 %v2439
        %v2489 = vpop.f32.mrf.mxu0
        %v2490 = vadd.f32 0.0, %v2489
        %v2491 = vpop.f32.mrf.mxu0
        %v2492 = vpop.f32.mrf.mxu0
        %v2493 = vadd.f32 0.0, %v2492
        %v2494 = vpop.f32.mrf.mxu0
        %2495 = vmatprep.mubr.bf16.mxu0 0
        %2496 = vmatmul.mubr.bf16.gmra.mxu0 %v2442
        %v2497 = vpop.f32.mrf.mxu0
        %v2498 = vadd.f32 0.0, %v2497
        %v2499 = vpop.f32.mrf.mxu0
        %v2500 = vpop.f32.mrf.mxu0
        %v2501 = vadd.f32 0.0, %v2500
        %v2502 = vpop.f32.mrf.mxu0
        %2503 = vmatprep.mubr.bf16.mxu0 0
        %2504 = vmatmul.mubr.bf16.gmra.mxu0 %v2445
        %v2505 = vpop.f32.mrf.mxu0
        %v2506 = vadd.f32 0.0, %v2505
        %v2507 = vpop.f32.mrf.mxu0
        %v2508 = vpop.f32.mrf.mxu0
        %v2509 = vadd.f32 0.0, %v2508
        %v2510 = vpop.f32.mrf.mxu0
        %2511 = vdwg.mxu0
        %v2512 = vsub.f32 %v2482, %v2415
        %v2513 = vsub.f32 %v2485, %v2416
        %v2514 = vsub.f32 %v2490, %v2417
        %v2515 = vsub.f32 %v2493, %v2418
        %v2516 = vsub.f32 %v2498, %v2419
        %v2517 = vsub.f32 %v2501, %v2420
        %v2518 = vsub.f32 %v2506, %v2421
        %v2519 = vsub.f32 %v2509, %v2422
        %v2520 = vmul.f32 %v2512, 1.442695
        %v2521 = vpow.pop %v2520
        %v2522 = vmul.f32 %v2513, 1.442695
        %v2523 = vpow.pop %v2522
        %v2524 = vmul.f32 %v2514, 1.442695
        %v2525 = vpow.pop %v2524
        %v2526 = vmul.f32 %v2515, 1.442695
        %v2527 = vpow.pop %v2526
        %v2528 = vmul.f32 %v2516, 1.442695
        %v2529 = vpow.pop %v2528
        %v2530 = vmul.f32 %v2517, 1.442695
        %v2531 = vpow.pop %v2530
        %v2532 = vmul.f32 %v2518, 1.442695
        %v2533 = vpow.pop %v2532
        %v2534 = vmul.f32 %v2519, 1.442695
        %v2535 = vpow.pop %v2534
        %v2536 = vmul.f32 %v2521, 0.35355338
        %v2537 = vmul.f32 %v2523, 0.35355338
        %v2538 = vmul.f32 %v2525, 0.35355338
        %v2539 = vmul.f32 %v2527, 0.35355338
        %v2540 = vmul.f32 %v2529, 0.35355338
        %v2541 = vmul.f32 %v2531, 0.35355338
        %v2542 = vmul.f32 %v2533, 0.35355338
        %v2543 = vmul.f32 %v2535, 0.35355338
        %vm2544 = vcmask 64512
        %v2545 = vsel %vm2544, %v2331, 0.0
        %v2546 = vsel %vm2544, %v2332, 0.0
        %v2547 = vadd.f32 %v2545, %v2546
        %v2548 = vsel %vm2544, %v2333, 0.0
        %v2549 = vadd.f32 %v2547, %v2548
        %v2550 = vsel %vm2544, %v2334, 0.0
        %v2551 = vadd.f32 %v2549, %v2550
        %v2552 = vsel %vm2544, %v2335, 0.0
        %v2553 = vadd.f32 %v2551, %v2552
        %v2554 = vsel %vm2544, %v2336, 0.0
        %v2555 = vadd.f32 %v2553, %v2554
        %v2556 = vsel %vm2544, %v2337, 0.0
        %v2557 = vadd.f32 %v2555, %v2556
        %v2558 = vsel %vm2544, %v2338, 0.0
        %v2559 = vadd.f32 %v2557, %v2558
        %v2560 = vrot.slane %v2559, 4
        %v2561 = vadd.f32 %v2559, %v2560
        %v2562 = vrot.slane %v2561, 2
        %v2563 = vadd.f32 %v2561, %v2562
        %v2564 = vrot.slane %v2563, 1
        %v2565 = vadd.f32 %v2563, %v2564
        %v2566 = vmul.f32 %v2536, %v2565
        %v2567 = vmul.f32 %v2537, %v2565
        %v2568 = vmul.f32 %v2538, %v2565
        %v2569 = vmul.f32 %v2539, %v2565
        %v2570 = vmul.f32 %v2540, %v2565
        %v2571 = vmul.f32 %v2541, %v2565
        %v2572 = vmul.f32 %v2542, %v2565
        %v2573 = vmul.f32 %v2543, %v2565
        %v2574 = vsel %vm2544, %v2566, 0.0
        %2575 = vadd.xlane.f32.xlu0 %v2574
        %v2576 = vpop.xlane.xlu0 %2575
        %v2577 = vsel %vm2544, %v2567, 0.0
        %2578 = vadd.xlane.f32.xlu0 %v2577
        %v2579 = vpop.xlane.xlu0 %2578
        %v2580 = vsel %vm2544, %v2568, 0.0
        %2581 = vadd.xlane.f32.xlu0 %v2580
        %v2582 = vpop.xlane.xlu0 %2581
        %v2583 = vsel %vm2544, %v2569, 0.0
        %2584 = vadd.xlane.f32.xlu0 %v2583
        %v2585 = vpop.xlane.xlu0 %2584
        %v2586 = vsel %vm2544, %v2570, 0.0
        %2587 = vadd.xlane.f32.xlu0 %v2586
        %v2588 = vpop.xlane.xlu0 %2587
        %v2589 = vsel %vm2544, %v2571, 0.0
        %2590 = vadd.xlane.f32.xlu0 %v2589
        %v2591 = vpop.xlane.xlu0 %2590
        %v2592 = vsel %vm2544, %v2572, 0.0
        %2593 = vadd.xlane.f32.xlu0 %v2592
        %v2594 = vpop.xlane.xlu0 %2593
        %v2595 = vsel %vm2544, %v2573, 0.0
        %2596 = vadd.xlane.f32.xlu0 %v2595
        %v2597 = vpop.xlane.xlu0 %2596
        %v2598 = vadd.f32 %v2576, 1e-08
        %v2599 = vadd.f32 %v2579, 1e-08
        %v2600 = vadd.f32 %v2582, 1e-08
        %v2601 = vadd.f32 %v2585, 1e-08
        %v2602 = vadd.f32 %v2588, 1e-08
        %v2603 = vadd.f32 %v2591, 1e-08
        %v2604 = vadd.f32 %v2594, 1e-08
        %v2605 = vadd.f32 %v2597, 1e-08
        %v2606 = vpack.c.bf16 %v2163, %v2162
        %v2607 = vpack.c.bf16 %v2165, %v2164
        %v2608 = vpack.c.bf16 %v2167, %v2166
        %v2609 = vpack.c.bf16 %v2169, %v2168
        %v2610 = vpack.c.bf16 %v2332, %v2331
        %v2611 = vpack.c.bf16 %v2334, %v2333
        %v2612 = vpack.c.bf16 %v2336, %v2335
        %v2613 = vpack.c.bf16 %v2338, %v2337
        %2618 = vrot.lane.b32.xlu0 %v2606, 96
        %v2619 = vpop.permute.xlu0 %2618
        %2620 = vrot.lane.b32.xlu0 %v2607, 96
        %v2621 = vpop.permute.xlu0 %2620
        %2622 = vrot.lane.b32.xlu0 %v2608, 96
        %v2623 = vpop.permute.xlu0 %2622
        %2624 = vrot.lane.b32.xlu0 %v2609, 96
        %v2625 = vpop.permute.xlu0 %2624
        %2630 = vxpose.xlu0.c.b16.start [1/8] %v2619, 128
        %2631 = vxpose.xlu0.c.b16.cont [2/8] %v2621, 128
        %2632 = vxpose.xlu0.c.b16.cont [3/8] %v2623, 128
        %2633 = vxpose.xlu0.c.b16.cont [4/8] %v2625, 128
        %2634 = vxpose.xlu0.c.b16.cont [5/8] 0, 128
        %2635 = vxpose.xlu0.c.b16.cont [6/8] 0, 128
        %2636 = vxpose.xlu0.c.b16.cont [7/8] 0, 128
        %2637 = vxpose.xlu0.c.b16.end [8/8] 0, 128
        %v2638 = vpop.trf.xlu0
        %v2639 = vpop.trf.xlu0
        %v2640 = vpop.trf.xlu0
        %v2641 = vpop.trf.xlu0
        %v2642 = vpop.trf.xlu0
        %v2643 = vpop.trf.xlu0
        %v2644 = vpop.trf.xlu0
        %v2645 = vpop.trf.xlu0
        %vm2646 = vcmask 523264
        %v2648 = vsel %vm2646, %v2638, 0
        %2650 = vmatprep.subr.bf16.mxu0 0
        %2651 = vmatpush1.bf16.msra.mxu0 0
        %2652 = vmatprep.subr.bf16.mxu0 0
        %2653 = vmatpush1.bf16.msra.mxu0 0
        %2654 = vmatprep.subr.bf16.mxu0 0
        %2655 = vmatpush1.bf16.msra.mxu0 0
        %2656 = vmatprep.subr.bf16.mxu0 0
        %2657 = vmatpush1.bf16.msra.mxu0 0
        %2658 = vmatprep.subr.bf16.mxu0 0
        %2659 = vmatpush1.bf16.msra.mxu0 %v2613
        %2660 = vmatprep.subr.bf16.mxu0 0
        %2661 = vmatpush1.bf16.msra.mxu0 %v2612
        %2662 = vmatprep.subr.bf16.mxu0 0
        %2663 = vmatpush1.bf16.msra.mxu0 %v2611
        %2664 = vmatprep.subr.bf16.mxu0 0
        %2665 = vmatpush1.bf16.msra.mxu0 %v2610
        %2666 = vmatprep.subr.bf16.mxu0 0
        %2667 = vmatpush2.bf16.msra.mxu0 0
        %2668 = vmatprep.subr.bf16.mxu0 0
        %2669 = vmatpush2.bf16.msra.mxu0 0
        %2670 = vmatprep.subr.bf16.mxu0 0
        %2671 = vmatpush2.bf16.msra.mxu0 0
        %2672 = vmatprep.subr.bf16.mxu0 0
        %2673 = vmatpush2.bf16.msra.mxu0 0
        %2674 = vmatprep.subr.bf16.mxu0 0
        %2675 = vmatpush2.bf16.msra.mxu0 0
        %2676 = vmatprep.subr.bf16.mxu0 0
        %2677 = vmatpush2.bf16.msra.mxu0 0
        %2678 = vmatprep.subr.bf16.mxu0 0
        %2679 = vmatpush2.bf16.msra.mxu0 0
        %2680 = vmatprep.subr.bf16.mxu0 0
        %2681 = vmatpush2.bf16.msra.mxu0 0
        %2682 = vmatprep.mubr.bf16.mxu0 0
        %2683 = vmatmul.mubr.bf16.gmra.mxu0 %v2648
        %v2684 = vpop.f32.mrf.mxu0
        %v2685 = vadd.f32 0.0, %v2684
        %v2686 = vpop.f32.mrf.mxu0
        %v2687 = vpop.f32.mrf.mxu0
        %v2688 = vadd.f32 0.0, %v2687
        %v2689 = vpop.f32.mrf.mxu0
        %2690 = vdwg.mxu0
        %v2691 = vpack.c.bf16 %v2537, %v2536
        %v2692 = vpack.c.bf16 %v2539, %v2538
        %v2693 = vpack.c.bf16 %v2541, %v2540
        %v2694 = vpack.c.bf16 %v2543, %v2542
        %v2695 = vpack.c.bf16 %v2688, %v2685
        %v2697 = vsel %vm2544, %v2691, 0
        %v2700 = vsel %vm2544, %v2692, 0
        %v2703 = vsel %vm2544, %v2693, 0
        %v2706 = vsel %vm2544, %v2694, 0
        %v2709 = vsel %vm2544, %v2695, 0
        %2711 = vmatprep.subr.bf16.mxu0 0
        %2712 = vmatpush1.bf16.xpose.msra.mxu0 0
        %2713 = vmatprep.subr.bf16.mxu0 0
        %2714 = vmatpush1.bf16.xpose.msra.mxu0 0
        %2715 = vmatprep.subr.bf16.mxu0 0
        %2716 = vmatpush1.bf16.xpose.msra.mxu0 0
        %2717 = vmatprep.subr.bf16.mxu0 0
        %2718 = vmatpush1.bf16.xpose.msra.mxu0 0
        %2719 = vmatprep.subr.bf16.mxu0 0
        %2720 = vmatpush1.bf16.xpose.msra.mxu0 0
        %2721 = vmatprep.subr.bf16.mxu0 0
        %2722 = vmatpush1.bf16.xpose.msra.mxu0 0
        %2723 = vmatprep.subr.bf16.mxu0 0
        %2724 = vmatpush1.bf16.xpose.msra.mxu0 0
        %2725 = vmatprep.subr.bf16.mxu0 0
        %2726 = vmatpush1.bf16.xpose.msra.mxu0 %v2709
        %2727 = vmatprep.subr.bf16.mxu0 0
        %2728 = vmatpush2.bf16.xpose.msra.mxu0 0
        %2729 = vmatprep.subr.bf16.mxu0 0
        %2730 = vmatpush2.bf16.xpose.msra.mxu0 0
        %2731 = vmatprep.subr.bf16.mxu0 0
        %2732 = vmatpush2.bf16.xpose.msra.mxu0 0
        %2733 = vmatprep.subr.bf16.mxu0 0
        %2734 = vmatpush2.bf16.xpose.msra.mxu0 0
        %2735 = vmatprep.subr.bf16.mxu0 0
        %2736 = vmatpush2.bf16.xpose.msra.mxu0 0
        %2737 = vmatprep.subr.bf16.mxu0 0
        %2738 = vmatpush2.bf16.xpose.msra.mxu0 0
        %2739 = vmatprep.subr.bf16.mxu0 0
        %2740 = vmatpush2.bf16.xpose.msra.mxu0 0
        %2741 = vmatprep.subr.bf16.mxu0 0
        %2742 = vmatpush2.bf16.xpose.msra.mxu0 0
        %2743 = vmatprep.mubr.bf16.mxu0 0
        %2744 = vmatmul.mubr.bf16.gmra.mxu0 %v2697
        %v2745 = vpop.f32.mrf.mxu0
        %v2746 = vadd.f32 0.0, %v2745
        %v2747 = vpop.f32.mrf.mxu0
        %v2748 = vpop.f32.mrf.mxu0
        %v2749 = vadd.f32 0.0, %v2748
        %v2750 = vpop.f32.mrf.mxu0
        %2751 = vmatprep.mubr.bf16.mxu0 0
        %2752 = vmatmul.mubr.bf16.gmra.mxu0 %v2700
        %v2753 = vpop.f32.mrf.mxu0
        %v2754 = vadd.f32 0.0, %v2753
        %v2755 = vpop.f32.mrf.mxu0
        %v2756 = vpop.f32.mrf.mxu0
        %v2757 = vadd.f32 0.0, %v2756
        %v2758 = vpop.f32.mrf.mxu0
        %2759 = vmatprep.mubr.bf16.mxu0 0
        %2760 = vmatmul.mubr.bf16.gmra.mxu0 %v2703
        %v2761 = vpop.f32.mrf.mxu0
        %v2762 = vadd.f32 0.0, %v2761
        %v2763 = vpop.f32.mrf.mxu0
        %v2764 = vpop.f32.mrf.mxu0
        %v2765 = vadd.f32 0.0, %v2764
        %v2766 = vpop.f32.mrf.mxu0
        %2767 = vmatprep.mubr.bf16.mxu0 0
        %2768 = vmatmul.mubr.bf16.gmra.mxu0 %v2706
        %v2769 = vpop.f32.mrf.mxu0
        %v2770 = vadd.f32 0.0, %v2769
        %v2771 = vpop.f32.mrf.mxu0
        %v2772 = vpop.f32.mrf.mxu0
        %v2773 = vadd.f32 0.0, %v2772
        %v2774 = vpop.f32.mrf.mxu0
        %2775 = vdwg.mxu0
        %v2776 = vrcp.pop %v2598
        %v2777 = vmul.f32 %v2746, %v2776
        %v2778 = vrcp.pop %v2599
        %v2779 = vmul.f32 %v2749, %v2778
        %v2780 = vrcp.pop %v2600
        %v2781 = vmul.f32 %v2754, %v2780
        %v2782 = vrcp.pop %v2601
        %v2783 = vmul.f32 %v2757, %v2782
        %v2784 = vrcp.pop %v2602
        %v2785 = vmul.f32 %v2762, %v2784
        %v2786 = vrcp.pop %v2603
        %v2787 = vmul.f32 %v2765, %v2786
        %v2788 = vrcp.pop %v2604
        %v2789 = vmul.f32 %v2770, %v2788
        %v2790 = vrcp.pop %v2605
        %v2791 = vmul.f32 %v2773, %v2790
        %2800 = vrot.lane.b32.xlu0 %v2162, 96
        %v2801 = vpop.permute.xlu0 %2800
        %2802 = vrot.lane.b32.xlu0 %v2163, 96
        %v2803 = vpop.permute.xlu0 %2802
        %2804 = vrot.lane.b32.xlu0 %v2164, 96
        %v2805 = vpop.permute.xlu0 %2804
        %2806 = vrot.lane.b32.xlu0 %v2165, 96
        %v2807 = vpop.permute.xlu0 %2806
        %2808 = vrot.lane.b32.xlu0 %v2166, 96
        %v2809 = vpop.permute.xlu0 %2808
        %2810 = vrot.lane.b32.xlu0 %v2167, 96
        %v2811 = vpop.permute.xlu0 %2810
        %2812 = vrot.lane.b32.xlu0 %v2168, 96
        %v2813 = vpop.permute.xlu0 %2812
        %2814 = vrot.lane.b32.xlu0 %v2169, 96
        %v2815 = vpop.permute.xlu0 %2814
        %v2824 = vadd.f32 %v1873, %v2801
        %v2825 = vadd.f32 %v1876, %v2803
        %v2826 = vadd.f32 %v1881, %v2805
        %v2827 = vadd.f32 %v1884, %v2807
        %v2828 = vadd.f32 %v1889, %v2809
        %v2829 = vadd.f32 %v1892, %v2811
        %v2830 = vadd.f32 %v1897, %v2813
        %v2831 = vadd.f32 %v1900, %v2815
        %v2832 = vpack.c.bf16 %v2779, %v2777
        %v2833 = vpack.c.bf16 %v2783, %v2781
        %v2834 = vpack.c.bf16 %v2787, %v2785
        %v2835 = vpack.c.bf16 %v2791, %v2789
        %v2836 = vld [vmem:[%s13] sm:$0xf]
        %v2837 = vld [vmem:[%s13 + $0x4] sm:$0xf]
        %v2840 = vunpack.c.l.b16 %v2836
        %v2841 = vunpack.c.l.b16 %v2837
        %v2842 = vpack.c.b16 %v2841, %v2840
        %v2845 = vsel %vm740, %v2832, 0
        %v2848 = vsel %vm740, %v2833, 0
        %v2851 = vsel %vm740, %v2834, 0
        %v2854 = vsel %vm740, %v2835, 0
        %2856 = vmatprep.subr.bf16.mxu0 0
        %2857 = vmatpush1.bf16.msra.mxu0 0
        %2858 = vmatprep.subr.bf16.mxu0 0
        %2859 = vmatpush1.bf16.msra.mxu0 0
        %2860 = vmatprep.subr.bf16.mxu0 0
        %2861 = vmatpush1.bf16.msra.mxu0 0
        %2862 = vmatprep.subr.bf16.mxu0 0
        %2863 = vmatpush1.bf16.msra.mxu0 0
        %2864 = vmatprep.subr.bf16.mxu0 0
        %2865 = vmatpush1.bf16.msra.mxu0 0
        %2866 = vmatprep.subr.bf16.mxu0 0
        %2867 = vmatpush1.bf16.msra.mxu0 0
        %2868 = vmatprep.subr.bf16.mxu0 0
        %2869 = vmatpush1.bf16.msra.mxu0 0
        %2870 = vmatprep.subr.bf16.mxu0 0
        %2871 = vmatpush1.bf16.msra.mxu0 %v2842
        %2872 = vmatprep.subr.bf16.mxu0 0
        %2873 = vmatpush2.bf16.msra.mxu0 0
        %2874 = vmatprep.subr.bf16.mxu0 0
        %2875 = vmatpush2.bf16.msra.mxu0 0
        %2876 = vmatprep.subr.bf16.mxu0 0
        %2877 = vmatpush2.bf16.msra.mxu0 0
        %2878 = vmatprep.subr.bf16.mxu0 0
        %2879 = vmatpush2.bf16.msra.mxu0 0
        %2880 = vmatprep.subr.bf16.mxu0 0
        %2881 = vmatpush2.bf16.msra.mxu0 0
        %2882 = vmatprep.subr.bf16.mxu0 0
        %2883 = vmatpush2.bf16.msra.mxu0 0
        %2884 = vmatprep.subr.bf16.mxu0 0
        %2885 = vmatpush2.bf16.msra.mxu0 0
        %2886 = vmatprep.subr.bf16.mxu0 0
        %2887 = vmatpush2.bf16.msra.mxu0 0
        %2888 = vmatprep.mubr.bf16.mxu0 0
        %2889 = vmatmul.mubr.bf16.gmra.mxu0 %v2845
        %v2890 = vpop.f32.mrf.mxu0
        %v2891 = vadd.f32 0.0, %v2890
        %v2892 = vpop.f32.mrf.mxu0
        %v2893 = vpop.f32.mrf.mxu0
        %v2894 = vadd.f32 0.0, %v2893
        %v2895 = vpop.f32.mrf.mxu0
        %2896 = vmatprep.mubr.bf16.mxu0 0
        %2897 = vmatmul.mubr.bf16.gmra.mxu0 %v2848
        %v2898 = vpop.f32.mrf.mxu0
        %v2899 = vadd.f32 0.0, %v2898
        %v2900 = vpop.f32.mrf.mxu0
        %v2901 = vpop.f32.mrf.mxu0
        %v2902 = vadd.f32 0.0, %v2901
        %v2903 = vpop.f32.mrf.mxu0
        %2904 = vmatprep.mubr.bf16.mxu0 0
        %2905 = vmatmul.mubr.bf16.gmra.mxu0 %v2851
        %v2906 = vpop.f32.mrf.mxu0
        %v2907 = vadd.f32 0.0, %v2906
        %v2908 = vpop.f32.mrf.mxu0
        %v2909 = vpop.f32.mrf.mxu0
        %v2910 = vadd.f32 0.0, %v2909
        %v2911 = vpop.f32.mrf.mxu0
        %2912 = vmatprep.mubr.bf16.mxu0 0
        %2913 = vmatmul.mubr.bf16.gmra.mxu0 %v2854
        %v2914 = vpop.f32.mrf.mxu0
        %v2915 = vadd.f32 0.0, %v2914
        %v2916 = vpop.f32.mrf.mxu0
        %v2917 = vpop.f32.mrf.mxu0
        %v2918 = vadd.f32 0.0, %v2917
        %v2919 = vpop.f32.mrf.mxu0
        %2920 = vdwg.mxu0
        %v2921 = vadd.f32 %v2824, %v2891
        %v2922 = vadd.f32 %v2825, %v2894
        %v2923 = vadd.f32 %v2826, %v2899
        %v2924 = vadd.f32 %v2827, %v2902
        %v2925 = vadd.f32 %v2828, %v2907
        %v2926 = vadd.f32 %v2829, %v2910
        %v2927 = vadd.f32 %v2830, %v2915
        %v2928 = vadd.f32 %v2831, %v2918
        %v2929 = vld [vmem:[%s16 + $0x9] sm:$0x1]
        %v2930 = vlaneseq
        %v2931 = vshrl.u32 %v2930, 7
        %v2932 = vsub.s32 0, %v2931
        %v2933 = vrot.slane %v2929, %v2932
        %v2934 = vadd.f32 %v2921, %v2933
        %v2935 = vadd.f32 %v2922, %v2933
        %v2936 = vadd.f32 %v2923, %v2933
        %v2937 = vadd.f32 %v2924, %v2933
        %v2938 = vadd.f32 %v2925, %v2933
        %v2939 = vadd.f32 %v2926, %v2933
        %v2940 = vadd.f32 %v2927, %v2933
        %v2941 = vadd.f32 %v2928, %v2933
        %v2942 = vld [vmem:[%s16 + $0xa] sm:$0x1]
        %v2943 = vld [vmem:[%s16 + $0xb] sm:$0x1]
        %v2944 = vsel %vm740, %v2934, 0.0
        %2945 = vadd.xlane.f32.xlu0 %v2944
        %v2946 = vpop.xlane.xlu0 %2945
        %v2947 = vsel %vm740, %v2935, 0.0
        %2948 = vadd.xlane.f32.xlu0 %v2947
        %v2949 = vpop.xlane.xlu0 %2948
        %v2950 = vsel %vm740, %v2936, 0.0
        %2951 = vadd.xlane.f32.xlu0 %v2950
        %v2952 = vpop.xlane.xlu0 %2951
        %v2953 = vsel %vm740, %v2937, 0.0
        %2954 = vadd.xlane.f32.xlu0 %v2953
        %v2955 = vpop.xlane.xlu0 %2954
        %v2956 = vsel %vm740, %v2938, 0.0
        %2957 = vadd.xlane.f32.xlu0 %v2956
        %v2958 = vpop.xlane.xlu0 %2957
        %v2959 = vsel %vm740, %v2939, 0.0
        %2960 = vadd.xlane.f32.xlu0 %v2959
        %v2961 = vpop.xlane.xlu0 %2960
        %v2962 = vsel %vm740, %v2940, 0.0
        %2963 = vadd.xlane.f32.xlu0 %v2962
        %v2964 = vpop.xlane.xlu0 %2963
        %v2965 = vsel %vm740, %v2941, 0.0
        %2966 = vadd.xlane.f32.xlu0 %v2965
        %v2967 = vpop.xlane.xlu0 %2966
        %v2968 = vmul.f32 %v2946, %v1929
        %v2969 = vmul.f32 %v2949, %v1929
        %v2970 = vmul.f32 %v2952, %v1929
        %v2971 = vmul.f32 %v2955, %v1929
        %v2972 = vmul.f32 %v2958, %v1929
        %v2973 = vmul.f32 %v2961, %v1929
        %v2974 = vmul.f32 %v2964, %v1929
        %v2975 = vmul.f32 %v2967, %v1929
        %v2976 = vsub.f32 %v2934, %v2968
        %v2977 = vsub.f32 %v2935, %v2969
        %v2978 = vsub.f32 %v2936, %v2970
        %v2979 = vsub.f32 %v2937, %v2971
        %v2980 = vsub.f32 %v2938, %v2972
        %v2981 = vsub.f32 %v2939, %v2973
        %v2982 = vsub.f32 %v2940, %v2974
        %v2983 = vsub.f32 %v2941, %v2975
        %v2984 = vmul.f32 %v2976, %v2976
        %v2985 = vmul.f32 %v2977, %v2977
        %v2986 = vmul.f32 %v2978, %v2978
        %v2987 = vmul.f32 %v2979, %v2979
        %v2988 = vmul.f32 %v2980, %v2980
        %v2989 = vmul.f32 %v2981, %v2981
        %v2990 = vmul.f32 %v2982, %v2982
        %v2991 = vmul.f32 %v2983, %v2983
        %v2992 = vsel %vm740, %v2984, 0.0
        %2993 = vadd.xlane.f32.xlu0 %v2992
        %v2994 = vpop.xlane.xlu0 %2993
        %v2995 = vsel %vm740, %v2985, 0.0
        %2996 = vadd.xlane.f32.xlu0 %v2995
        %v2997 = vpop.xlane.xlu0 %2996
        %v2998 = vsel %vm740, %v2986, 0.0
        %2999 = vadd.xlane.f32.xlu0 %v2998
        %v3000 = vpop.xlane.xlu0 %2999
        %v3001 = vsel %vm740, %v2987, 0.0
        %3002 = vadd.xlane.f32.xlu0 %v3001
        %v3003 = vpop.xlane.xlu0 %3002
        %v3004 = vsel %vm740, %v2988, 0.0
        %3005 = vadd.xlane.f32.xlu0 %v3004
        %v3006 = vpop.xlane.xlu0 %3005
        %v3007 = vsel %vm740, %v2989, 0.0
        %3008 = vadd.xlane.f32.xlu0 %v3007
        %v3009 = vpop.xlane.xlu0 %3008
        %v3010 = vsel %vm740, %v2990, 0.0
        %3011 = vadd.xlane.f32.xlu0 %v3010
        %v3012 = vpop.xlane.xlu0 %3011
        %v3013 = vsel %vm740, %v2991, 0.0
        %3014 = vadd.xlane.f32.xlu0 %v3013
        %v3015 = vpop.xlane.xlu0 %3014
        %v3016 = vmul.f32 %v2994, %v1929
        %v3017 = vmul.f32 %v2997, %v1929
        %v3018 = vmul.f32 %v3000, %v1929
        %v3019 = vmul.f32 %v3003, %v1929
        %v3020 = vmul.f32 %v3006, %v1929
        %v3021 = vmul.f32 %v3009, %v1929
        %v3022 = vmul.f32 %v3012, %v1929
        %v3023 = vmul.f32 %v3015, %v1929
        %v3024 = vadd.f32 %v3016, 1e-05
        %v3025 = vadd.f32 %v3017, 1e-05
        %v3026 = vadd.f32 %v3018, 1e-05
        %v3027 = vadd.f32 %v3019, 1e-05
        %v3028 = vadd.f32 %v3020, 1e-05
        %v3029 = vadd.f32 %v3021, 1e-05
        %v3030 = vadd.f32 %v3022, 1e-05
        %v3031 = vadd.f32 %v3023, 1e-05
        %v3032 = vrsqrt.pop %v3024
        %v3033 = vrsqrt.pop %v3025
        %v3034 = vrsqrt.pop %v3026
        %v3035 = vrsqrt.pop %v3027
        %v3036 = vrsqrt.pop %v3028
        %v3037 = vrsqrt.pop %v3029
        %v3038 = vrsqrt.pop %v3030
        %v3039 = vrsqrt.pop %v3031
        %v3040 = vmul.f32 %v2976, %v3032
        %v3041 = vmul.f32 %v2977, %v3033
        %v3042 = vmul.f32 %v2978, %v3034
        %v3043 = vmul.f32 %v2979, %v3035
        %v3044 = vmul.f32 %v2980, %v3036
        %v3045 = vmul.f32 %v2981, %v3037
        %v3046 = vmul.f32 %v2982, %v3038
        %v3047 = vmul.f32 %v2983, %v3039
        %v3048 = vlaneseq
        %v3049 = vshrl.u32 %v3048, 7
        %v3050 = vsub.s32 0, %v3049
        %v3051 = vrot.slane %v2942, %v3050
        %v3052 = vmul.f32 %v3040, %v3051
        %v3053 = vmul.f32 %v3041, %v3051
        %v3054 = vmul.f32 %v3042, %v3051
        %v3055 = vmul.f32 %v3043, %v3051
        %v3056 = vmul.f32 %v3044, %v3051
        %v3057 = vmul.f32 %v3045, %v3051
        %v3058 = vmul.f32 %v3046, %v3051
        %v3059 = vmul.f32 %v3047, %v3051
        %v3060 = vlaneseq
        %v3061 = vshrl.u32 %v3060, 7
        %v3062 = vsub.s32 0, %v3061
        %v3063 = vrot.slane %v2943, %v3062
        %v3064 = vadd.f32 %v3052, %v3063
        %v3065 = vadd.f32 %v3053, %v3063
        %v3066 = vadd.f32 %v3054, %v3063
        %v3067 = vadd.f32 %v3055, %v3063
        %v3068 = vadd.f32 %v3056, %v3063
        %v3069 = vadd.f32 %v3057, %v3063
        %v3070 = vadd.f32 %v3058, %v3063
        %v3071 = vadd.f32 %v3059, %v3063
        %v3072 = vpack.c.bf16 %v3065, %v3064
        %v3073 = vpack.c.bf16 %v3067, %v3066
        %v3074 = vpack.c.bf16 %v3069, %v3068
        %v3075 = vpack.c.bf16 %v3071, %v3070
        %v3076 = vld [vmem:[%s14] sm:$0xf]
        %v3077 = vld [vmem:[%s14 + $0x4] sm:$0xf]
        %v3078 = vld [vmem:[%s16 + $0xc] sm:$0x1]
        %v3079 = vlaneseq
        %v3080 = vshrl.u32 %v3079, 7
        %v3081 = vsub.s32 0, %v3080
        %v3082 = vrot.slane %v3078, %v3081
        %v3085 = vunpack.c.l.b16 %v3076
        %v3086 = vunpack.c.l.b16 %v3077
        %v3087 = vpack.c.b16 %v3086, %v3085
        %v3090 = vsel %vm740, %v3072, 0
        %v3093 = vsel %vm740, %v3073, 0
        %v3096 = vsel %vm740, %v3074, 0
        %v3099 = vsel %vm740, %v3075, 0
        %3101 = vmatprep.subr.bf16.mxu0 0
        %3102 = vmatpush1.bf16.msra.mxu0 0
        %3103 = vmatprep.subr.bf16.mxu0 0
        %3104 = vmatpush1.bf16.msra.mxu0 0
        %3105 = vmatprep.subr.bf16.mxu0 0
        %3106 = vmatpush1.bf16.msra.mxu0 0
        %3107 = vmatprep.subr.bf16.mxu0 0
        %3108 = vmatpush1.bf16.msra.mxu0 0
        %3109 = vmatprep.subr.bf16.mxu0 0
        %3110 = vmatpush1.bf16.msra.mxu0 0
        %3111 = vmatprep.subr.bf16.mxu0 0
        %3112 = vmatpush1.bf16.msra.mxu0 0
        %3113 = vmatprep.subr.bf16.mxu0 0
        %3114 = vmatpush1.bf16.msra.mxu0 0
        %3115 = vmatprep.subr.bf16.mxu0 0
        %3116 = vmatpush1.bf16.msra.mxu0 %v3087
        %3117 = vmatprep.subr.bf16.mxu0 0
        %3118 = vmatpush2.bf16.msra.mxu0 0
        %3119 = vmatprep.subr.bf16.mxu0 0
        %3120 = vmatpush2.bf16.msra.mxu0 0
        %3121 = vmatprep.subr.bf16.mxu0 0
        %3122 = vmatpush2.bf16.msra.mxu0 0
        %3123 = vmatprep.subr.bf16.mxu0 0
        %3124 = vmatpush2.bf16.msra.mxu0 0
        %3125 = vmatprep.subr.bf16.mxu0 0
        %3126 = vmatpush2.bf16.msra.mxu0 0
        %3127 = vmatprep.subr.bf16.mxu0 0
        %3128 = vmatpush2.bf16.msra.mxu0 0
        %3129 = vmatprep.subr.bf16.mxu0 0
        %3130 = vmatpush2.bf16.msra.mxu0 0
        %3131 = vmatprep.subr.bf16.mxu0 0
        %3132 = vmatpush2.bf16.msra.mxu0 0
        %3133 = vmatprep.mubr.bf16.mxu0 0
        %3134 = vmatmul.mubr.bf16.gmra.mxu0 %v3090
        %v3135 = vpop.f32.mrf.mxu0
        %v3136 = vadd.f32 %v3082, %v3135
        %v3137 = vpop.f32.mrf.mxu0
        %v3138 = vpop.f32.mrf.mxu0
        %v3139 = vadd.f32 %v3082, %v3138
        %v3140 = vpop.f32.mrf.mxu0
        %3141 = vmatprep.mubr.bf16.mxu0 0
        %3142 = vmatmul.mubr.bf16.gmra.mxu0 %v3093
        %v3143 = vpop.f32.mrf.mxu0
        %v3144 = vadd.f32 %v3082, %v3143
        %v3145 = vpop.f32.mrf.mxu0
        %v3146 = vpop.f32.mrf.mxu0
        %v3147 = vadd.f32 %v3082, %v3146
        %v3148 = vpop.f32.mrf.mxu0
        %3149 = vmatprep.mubr.bf16.mxu0 0
        %3150 = vmatmul.mubr.bf16.gmra.mxu0 %v3096
        %v3151 = vpop.f32.mrf.mxu0
        %v3152 = vadd.f32 %v3082, %v3151
        %v3153 = vpop.f32.mrf.mxu0
        %v3154 = vpop.f32.mrf.mxu0
        %v3155 = vadd.f32 %v3082, %v3154
        %v3156 = vpop.f32.mrf.mxu0
        %3157 = vmatprep.mubr.bf16.mxu0 0
        %3158 = vmatmul.mubr.bf16.gmra.mxu0 %v3099
        %v3159 = vpop.f32.mrf.mxu0
        %v3160 = vadd.f32 %v3082, %v3159
        %v3161 = vpop.f32.mrf.mxu0
        %v3162 = vpop.f32.mrf.mxu0
        %v3163 = vadd.f32 %v3082, %v3162
        %v3164 = vpop.f32.mrf.mxu0
        %3165 = vdwg.mxu0
        %v3166 = vmul.f32 %v3136, 0.5
        %v3167 = vmul.f32 %v3139, 0.5
        %v3168 = vmul.f32 %v3144, 0.5
        %v3169 = vmul.f32 %v3147, 0.5
        %v3170 = vmul.f32 %v3152, 0.5
        %v3171 = vmul.f32 %v3155, 0.5
        %v3172 = vmul.f32 %v3160, 0.5
        %v3173 = vmul.f32 %v3163, 0.5
        %v3174 = vmul.f32 %v3136, 0.044715
        %v3175 = vmul.f32 %v3139, 0.044715
        %v3176 = vmul.f32 %v3144, 0.044715
        %v3177 = vmul.f32 %v3147, 0.044715
        %v3178 = vmul.f32 %v3152, 0.044715
        %v3179 = vmul.f32 %v3155, 0.044715
        %v3180 = vmul.f32 %v3160, 0.044715
        %v3181 = vmul.f32 %v3163, 0.044715
        %v3182 = vmul.f32 %v3174, %v3136
        %v3183 = vmul.f32 %v3175, %v3139
        %v3184 = vmul.f32 %v3176, %v3144
        %v3185 = vmul.f32 %v3177, %v3147
        %v3186 = vmul.f32 %v3178, %v3152
        %v3187 = vmul.f32 %v3179, %v3155
        %v3188 = vmul.f32 %v3180, %v3160
        %v3189 = vmul.f32 %v3181, %v3163
        %v3190 = vmul.f32 %v3182, %v3136
        %v3191 = vmul.f32 %v3183, %v3139
        %v3192 = vmul.f32 %v3184, %v3144
        %v3193 = vmul.f32 %v3185, %v3147
        %v3194 = vmul.f32 %v3186, %v3152
        %v3195 = vmul.f32 %v3187, %v3155
        %v3196 = vmul.f32 %v3188, %v3160
        %v3197 = vmul.f32 %v3189, %v3163
        %v3198 = vadd.f32 %v3136, %v3190
        %v3199 = vadd.f32 %v3139, %v3191
        %v3200 = vadd.f32 %v3144, %v3192
        %v3201 = vadd.f32 %v3147, %v3193
        %v3202 = vadd.f32 %v3152, %v3194
        %v3203 = vadd.f32 %v3155, %v3195
        %v3204 = vadd.f32 %v3160, %v3196
        %v3205 = vadd.f32 %v3163, %v3197
        %v3206 = vmul.f32 %v3198, 0.7978846
        %v3207 = vmul.f32 %v3199, 0.7978846
        %v3208 = vmul.f32 %v3200, 0.7978846
        %v3209 = vmul.f32 %v3201, 0.7978846
        %v3210 = vmul.f32 %v3202, 0.7978846
        %v3211 = vmul.f32 %v3203, 0.7978846
        %v3212 = vmul.f32 %v3204, 0.7978846
        %v3213 = vmul.f32 %v3205, 0.7978846
        %v3214 = vtanh.pop %v3206
        %v3215 = vtanh.pop %v3207
        %v3216 = vtanh.pop %v3208
        %v3217 = vtanh.pop %v3209
        %v3218 = vtanh.pop %v3210
        %v3219 = vtanh.pop %v3211
        %v3220 = vtanh.pop %v3212
        %v3221 = vtanh.pop %v3213
        %v3222 = vadd.f32 %v3214, 1.0
        %v3223 = vadd.f32 %v3215, 1.0
        %v3224 = vadd.f32 %v3216, 1.0
        %v3225 = vadd.f32 %v3217, 1.0
        %v3226 = vadd.f32 %v3218, 1.0
        %v3227 = vadd.f32 %v3219, 1.0
        %v3228 = vadd.f32 %v3220, 1.0
        %v3229 = vadd.f32 %v3221, 1.0
        %v3230 = vmul.f32 %v3166, %v3222
        %v3231 = vmul.f32 %v3167, %v3223
        %v3232 = vmul.f32 %v3168, %v3224
        %v3233 = vmul.f32 %v3169, %v3225
        %v3234 = vmul.f32 %v3170, %v3226
        %v3235 = vmul.f32 %v3171, %v3227
        %v3236 = vmul.f32 %v3172, %v3228
        %v3237 = vmul.f32 %v3173, %v3229
        %v3238 = vpack.c.bf16 %v3231, %v3230
        %v3239 = vpack.c.bf16 %v3233, %v3232
        %v3240 = vpack.c.bf16 %v3235, %v3234
        %v3241 = vpack.c.bf16 %v3237, %v3236
        %v3242 = vld [vmem:[#allocation5] sm:$0xf]
        %v3243 = vld [vmem:[#allocation5 + $0x4] sm:$0xf]
        %v3244 = vld [vmem:[%s16 + $0xd] sm:$0x1]
        %v3245 = vlaneseq
        %v3246 = vshrl.u32 %v3245, 7
        %v3247 = vsub.s32 0, %v3246
        %v3248 = vrot.slane %v3244, %v3247
        %v3251 = vunpack.c.l.b16 %v3242
        %v3252 = vunpack.c.l.b16 %v3243
        %v3253 = vpack.c.b16 %v3252, %v3251
        %v3256 = vsel %vm740, %v3238, 0
        %v3259 = vsel %vm740, %v3239, 0
        %v3262 = vsel %vm740, %v3240, 0
        %v3265 = vsel %vm740, %v3241, 0
        %3267 = vmatprep.subr.bf16.mxu0 0
        %3268 = vmatpush1.bf16.msra.mxu0 0
        %3269 = vmatprep.subr.bf16.mxu0 0
        %3270 = vmatpush1.bf16.msra.mxu0 0
        %3271 = vmatprep.subr.bf16.mxu0 0
        %3272 = vmatpush1.bf16.msra.mxu0 0
        %3273 = vmatprep.subr.bf16.mxu0 0
        %3274 = vmatpush1.bf16.msra.mxu0 0
        %3275 = vmatprep.subr.bf16.mxu0 0
        %3276 = vmatpush1.bf16.msra.mxu0 0
        %3277 = vmatprep.subr.bf16.mxu0 0
        %3278 = vmatpush1.bf16.msra.mxu0 0
        %3279 = vmatprep.subr.bf16.mxu0 0
        %3280 = vmatpush1.bf16.msra.mxu0 0
        %3281 = vmatprep.subr.bf16.mxu0 0
        %3282 = vmatpush1.bf16.msra.mxu0 %v3253
        %3283 = vmatprep.subr.bf16.mxu0 0
        %3284 = vmatpush2.bf16.msra.mxu0 0
        %3285 = vmatprep.subr.bf16.mxu0 0
        %3286 = vmatpush2.bf16.msra.mxu0 0
        %3287 = vmatprep.subr.bf16.mxu0 0
        %3288 = vmatpush2.bf16.msra.mxu0 0
        %3289 = vmatprep.subr.bf16.mxu0 0
        %3290 = vmatpush2.bf16.msra.mxu0 0
        %3291 = vmatprep.subr.bf16.mxu0 0
        %3292 = vmatpush2.bf16.msra.mxu0 0
        %3293 = vmatprep.subr.bf16.mxu0 0
        %3294 = vmatpush2.bf16.msra.mxu0 0
        %3295 = vmatprep.subr.bf16.mxu0 0
        %3296 = vmatpush2.bf16.msra.mxu0 0
        %3297 = vmatprep.subr.bf16.mxu0 0
        %3298 = vmatpush2.bf16.msra.mxu0 0
        %3299 = vmatprep.mubr.bf16.mxu0 0
        %3300 = vmatmul.mubr.bf16.gmra.mxu0 %v3256
        %v3301 = vpop.f32.mrf.mxu0
        %v3302 = vadd.f32 %v3248, %v3301
        %v3303 = vpop.f32.mrf.mxu0
        %v3304 = vpop.f32.mrf.mxu0
        %v3305 = vadd.f32 %v3248, %v3304
        %v3306 = vpop.f32.mrf.mxu0
        %3307 = vmatprep.mubr.bf16.mxu0 0
        %3308 = vmatmul.mubr.bf16.gmra.mxu0 %v3259
        %v3309 = vpop.f32.mrf.mxu0
        %v3310 = vadd.f32 %v3248, %v3309
        %v3311 = vpop.f32.mrf.mxu0
        %v3312 = vpop.f32.mrf.mxu0
        %v3313 = vadd.f32 %v3248, %v3312
        %v3314 = vpop.f32.mrf.mxu0
        %3315 = vmatprep.mubr.bf16.mxu0 0
        %3316 = vmatmul.mubr.bf16.gmra.mxu0 %v3262
        %v3317 = vpop.f32.mrf.mxu0
        %v3318 = vadd.f32 %v3248, %v3317
        %v3319 = vpop.f32.mrf.mxu0
        %v3320 = vpop.f32.mrf.mxu0
        %v3321 = vadd.f32 %v3248, %v3320
        %v3322 = vpop.f32.mrf.mxu0
        %3323 = vmatprep.mubr.bf16.mxu0 0
        %3324 = vmatmul.mubr.bf16.gmra.mxu0 %v3265
        %v3325 = vpop.f32.mrf.mxu0
        %v3326 = vadd.f32 %v3248, %v3325
        %v3327 = vpop.f32.mrf.mxu0
        %v3328 = vpop.f32.mrf.mxu0
        %v3329 = vadd.f32 %v3248, %v3328
        %v3330 = vpop.f32.mrf.mxu0
        %3331 = vdwg.mxu0
        %v3332 = vadd.f32 %v2934, %v3302
        %v3333 = vadd.f32 %v2935, %v3305
        %v3334 = vadd.f32 %v2936, %v3310
        %v3335 = vadd.f32 %v2937, %v3313
        %v3336 = vadd.f32 %v2938, %v3318
        %v3337 = vadd.f32 %v2939, %v3321
        %v3338 = vadd.f32 %v2940, %v3326
        %v3339 = vadd.f32 %v2941, %v3329
        %3340 = vst.msk [vmem:[%s596] sm:$0xff] %vm740, %v3332
        %3341 = vst.msk [vmem:[%s596 + $0x8] sm:$0xff] %vm740, %v3333
        %3342 = vst.msk [vmem:[%s596 + $0x10] sm:$0xff] %vm740, %v3334
        %3343 = vst.msk [vmem:[%s596 + $0x18] sm:$0xff] %vm740, %v3335
        %3344 = vst.msk [vmem:[%s596 + $0x20] sm:$0xff] %vm740, %v3336
        %3345 = vst.msk [vmem:[%s596 + $0x28] sm:$0xff] %vm740, %v3337
        %3346 = vst.msk [vmem:[%s596 + $0x30] sm:$0xff] %vm740, %v3338
        %3347 = vst.msk [vmem:[%s596 + $0x38] sm:$0xff] %vm740, %v3339
        %p3348 = scmp.lt.s32.totalorder %s30, 1
        %s3349 = scalar_select %p3348, %s30, 1
        %s3350 = smul.addr %s3349, 8
        %s3351 = smul.addr %s3350, 8
        %s3352 = scalar_lea.vmem %s17, %s3351
        // Predicated region
        $region97: #{tpu_custom_call.1} parent=87 // pred_check
          %p3353 = pneg %p415
        $region98: #{tpu_custom_call.1} parent=87 // pred_check_branch
          %3355 = sbr.rel (%p3353) target = $region100
        $region99: #{tpu_custom_call.1} parent=87 // pred_region
          _
        $region100: #{tpu_custom_call.1} parent=87 // pred_fallthru
          _
      $region88: #{tpu_custom_call.1} parent=5 // pred_fallthru
        _
      %p3356 = scmp.le.s32.totalorder 2, %s25
      // Predicated region
      $region101: #{tpu_custom_call.1} parent=5 // pred_check
        %p3357 = pneg %p3356
      $region102: #{tpu_custom_call.1} parent=5 // pred_check_branch
        %3359 = sbr.rel (%p3357) target = $region104
      $region103: #{tpu_custom_call.1} parent=5 // pred_region
        %s3360 = ssub.s32 %s25, 2
        // Predicated region
        $region105: #{tpu_custom_call.1} parent=103 // pred_check
          %p3361 = pneg %p421
        $region106: #{tpu_custom_call.1} parent=103 // pred_check_branch
          %3363 = sbr.rel (%p3361) target = $region108
        $region107: #{tpu_custom_call.1} parent=103 // pred_region
          %p3364 = scmp.lt.s32.totalorder %s31, 1
          %s3365 = scalar_select %p3364, %s31, 1
          %s3366 = smul.addr %s3365, 8
          %s3367 = smul.addr %s3366, 8
          %s3368 = scalar_lea.vmem %s17, %s3367
        $region108: #{tpu_custom_call.1} parent=103 // pred_fallthru
          _
      $region104: #{tpu_custom_call.1} parent=5 // pred_fallthru
        _
    $region6: #{tpu_custom_call.1} parent=1 // loop_footer
      %s29 = sadd.s32 1, %s25
    $region7: #{tpu_custom_call.1} parent=1 // loop_footer_branch
      %24 = sbr.rel target = $region3
    $region8: #{tpu_custom_call.1} parent=1 // loop_exit
      _
    %3369 = vsyncpa [#allocation4], 1
    %s3370 = scalar_lea.sflag [#allocation4], 1
    %3371 = vsyncpa %s3370, 1
    %3372 = vsyncpa [#allocation6], 1

</llo_original>
